<compile_context>
chip_gen: v7x
topology: tpu7x:2x2x1
jax: 0.10.0
libtpu: 0.0.40
codegen_flags: <defaults>
</compile_context>

<pallas_src>
import jax
import jax.numpy as jnp
from jax import lax
from jax.experimental import pallas as pl
from jax.experimental.pallas import tpu as pltpu

# ----------------------------- model config -----------------------------
B = 2               # batch
S = 8               # input sequence length (max_length)
M = 4               # num_mem (memory tokens)
D = 128             # hidden size (lane-aligned)
V = 256             # vocab size
N_LAYERS = 2
BOS_ID = 1
IGNORE_INDEX = -100
PARAM_DTYPE = jnp.bfloat16

NDEC = S + 1                 # real decoder rows (bos + text) = 9
TENC = 16                    # padded encoder length (S + M = 12 real -> 16)
TDEC = 16                    # padded decoder length (9 real -> 16)
KPREF = 8                    # KV rows kept from encoder tail (M real + 4 pad, masked)
TKV = TDEC + KPREF           # decoder key/value rows = 24, layout [decoder | mem prefix]
N_ENC_ROWS = B * TENC        # 32
N_DEC_ROWS = B * TDEC        # 32
N_IDS = N_ENC_ROWS + N_DEC_ROWS   # 64
SCALE = 1.0 / float(D) ** 0.5
NEG = -1e30


# ----------------------------- fused forward kernel -----------------------------
def _fused_forward_kernel(ids_ref, labels_ref, emb_ref, mem_ref, wqkv_ref, wo_ref,
                          logits_ref, loss_ref, kcat_ref, vcat_ref):
    f32 = jnp.float32
    emb = emb_ref[...]                                       # [V, D] bf16 (loaded once)

    # ---- token embeddings for encoder+decoder streams via one one-hot MXU matmul ----
    ids = ids_ref[...]                                       # [N_IDS, 1]; id < 0 -> zero row
    col = lax.broadcasted_iota(jnp.int32, (N_IDS, V), 1)
    onehot = jnp.where(col == ids, 1.0, 0.0).astype(PARAM_DTYPE)
    tok = jnp.dot(onehot, emb, preferred_element_type=f32).astype(PARAM_DTYPE)  # [N_IDS, D]
    # encoder rows: [text(8) | mem(4) | pad(4)] (memory slab adds the mem embeddings)
    enc_x = tok[0:N_ENC_ROWS, :].reshape(B, TENC, D) + mem_ref[...]
    # decoder rows: [bos(1) | text(8) | pad(7)]
    dec_x = tok[N_ENC_ROWS:N_IDS, :].reshape(B, TDEC, D)

    # ---- masks (built once) ----
    qi_e = lax.broadcasted_iota(jnp.int32, (TENC, TENC), 0)
    kj_e = lax.broadcasted_iota(jnp.int32, (TENC, TENC), 1)
    enc_mask = kj_e <= qi_e                                  # causal; pads sit at the end

    qi_d = lax.broadcasted_iota(jnp.int32, (TDEC, TKV), 0)
    kj_d = lax.broadcasted_iota(jnp.int32, (TDEC, TKV), 1)
    # KV slab layout: keys 0..NDEC-1 causal decoder tokens (rows NDEC..TDEC-1 are pad),
    # keys TDEC..TDEC+M-1 memory (always visible), keys beyond that are encoder pads.
    dec_mask = ((kj_d < NDEC) & (kj_d <= qi_d)) | ((kj_d >= TDEC) & (kj_d < TDEC + M))

    def qkv_proj(x, l):
        # fused QKV: one [*,D] @ [D,3D] MXU pass instead of three [D,D] passes
        t = x.shape[1]
        qkv = jnp.dot(x.reshape(B * t, D), wqkv_ref[l], preferred_element_type=f32)
        q = qkv[:, 0 * D:1 * D].astype(PARAM_DTYPE).reshape(B, t, D)
        k = qkv[:, 1 * D:2 * D].astype(PARAM_DTYPE).reshape(B, t, D)
        v = qkv[:, 2 * D:3 * D].astype(PARAM_DTYPE).reshape(B, t, D)
        return q, k, v

    def attend(q, k, v, mask):
        # bf16 operands straight into the MXU, f32 softmax, EUP reciprocal
        s = jnp.einsum("bqd,bkd->bqk", q, k, preferred_element_type=f32) * SCALE
        s = jnp.where(mask[None, :, :], s, NEG)
        m = jnp.max(s, axis=-1, keepdims=True)
        p = jnp.exp(s - m)
        p = p * pl.reciprocal(jnp.sum(p, axis=-1, keepdims=True), approx=True)
        return jnp.einsum("bqk,bkd->bqd", p.astype(PARAM_DTYPE), v,
                          preferred_element_type=f32)

    def out_proj(x, a, l):
        t = x.shape[1]
        o = jnp.dot(a.astype(PARAM_DTYPE).reshape(B * t, D), wo_ref[l],
                    preferred_element_type=f32)
        return x + o.astype(PARAM_DTYPE).reshape(B, t, D)

    # ---- compress: causal encoder over [text | memory]; stash memory KV in the
    #      per-layer scratch slabs (written once, read by the decoder loop) ----
    x = enc_x
    for l in range(N_LAYERS):
        q, k, v = qkv_proj(x, l)
        a = attend(q, k, v, enc_mask)
        x = out_proj(x, a, l)
        # rows S..S+KPREF-1 = [memory KV (M rows) | encoder-pad KV (masked in decoder)]
        kcat_ref[l, :, TDEC:TKV, :] = k[:, S:S + KPREF, :]
        vcat_ref[l, :, TDEC:TKV, :] = v[:, S:S + KPREF, :]

    # ---- decode: [bos | text] attending over the memory-KV prefix ----
    x = dec_x
    for l in range(N_LAYERS):
        q, k, v = qkv_proj(x, l)
        # in-VMEM KV concat: one fully vreg-aligned 16-row slab store per tensor
        kcat_ref[l, :, 0:TDEC, :] = k
        vcat_ref[l, :, 0:TDEC, :] = v
        a = attend(q, kcat_ref[l], vcat_ref[l], dec_mask)
        x = out_proj(x, a, l)

    # ---- LM head (tied embeddings; transpose folded into the contraction) ----
    x2 = x.reshape(B * TDEC, D)
    logits = jnp.einsum("nd,vd->nv", x2, emb, preferred_element_type=f32)   # [32, V] f32
    logits_ref[...] = logits.reshape(B, TDEC, V)[:, 0:NDEC, :]

    # ---- cross entropy (ignore_index=-100, mean over valid rows, div-by-zero guard) ----
    labels = labels_ref[...]                                 # [N_DEC_ROWS, 1] int32
    mmax = jnp.max(logits, axis=-1, keepdims=True)
    lse = jnp.log(jnp.sum(jnp.exp(logits - mmax), axis=-1, keepdims=True)) + mmax
    lcol = lax.broadcasted_iota(jnp.int32, (N_DEC_ROWS, V), 1)
    label_logit = jnp.sum(jnp.where(lcol == labels, logits, 0.0), axis=-1, keepdims=True)
    valid = labels != IGNORE_INDEX
    per = jnp.where(valid, lse - label_logit, 0.0)
    loss_sum = jnp.sum(per, axis=0, keepdims=True)
    count = jnp.sum(valid.astype(f32), axis=0, keepdims=True)
    loss_ref[...] = loss_sum / jnp.maximum(count, 1.0)


# ----------------------------- params & wrapper -----------------------------
def init_params(key):
    k_emb, k_mem, k_qkv, k_o = jax.random.split(key, 4)
    return {
        "embed": (jax.random.normal(k_emb, (V, D)) * 0.02).astype(PARAM_DTYPE),
        # nn.Parameter(torch.randn(1, num_mem, hidden)) analogue
        "memory": jax.random.normal(k_mem, (1, M, D)).astype(PARAM_DTYPE),
        # per-layer fused [Wq | Wk | Wv] and Wo (synthetic 2-layer attention-only LM)
        "Wqkv": (jax.random.normal(k_qkv, (N_LAYERS, D, 3 * D)) * 0.05).astype(PARAM_DTYPE),
        "Wo": (jax.random.normal(k_o, (N_LAYERS, D, D)) * 0.05).astype(PARAM_DTYPE),
    }


def forward(params, input_ids, labels):
    # --- tiny layout prep (int id / label padding); all heavy compute is in ONE kernel ---
    ids = input_ids.astype(jnp.int32)
    enc_ids = jnp.concatenate([ids, jnp.full((B, TENC - S), -1, jnp.int32)], axis=1)
    dec_ids = jnp.concatenate(
        [jnp.full((B, 1), BOS_ID, jnp.int32), ids,
         jnp.full((B, TDEC - NDEC), -1, jnp.int32)], axis=1)
    ids_all = jnp.concatenate([enc_ids.reshape(-1), dec_ids.reshape(-1)]).reshape(N_IDS, 1)

    labels2d = jnp.concatenate(
        [labels.astype(jnp.int32),
         jnp.full((B, TDEC - NDEC), IGNORE_INDEX, jnp.int32)], axis=1).reshape(N_DEC_ROWS, 1)

    # memory slab: zeros except rows S..S+M-1 carry the memory embeddings
    mem_slab = jnp.zeros((1, TENC, D), PARAM_DTYPE).at[:, S:S + M, :].set(params["memory"])

    logits, loss = pl.pallas_call(
        _fused_forward_kernel,
        grid=(1,),
        in_specs=[
            pl.BlockSpec((N_IDS, 1), lambda i: (0, 0)),
            pl.BlockSpec((N_DEC_ROWS, 1), lambda i: (0, 0)),
            pl.BlockSpec((V, D), lambda i: (0, 0)),
            pl.BlockSpec((1, TENC, D), lambda i: (0, 0, 0)),
            pl.BlockSpec((N_LAYERS, D, 3 * D), lambda i: (0, 0, 0)),
            pl.BlockSpec((N_LAYERS, D, D), lambda i: (0, 0, 0)),
        ],
        out_specs=(
            pl.BlockSpec((B, NDEC, V), lambda i: (0, 0, 0)),
            pl.BlockSpec((1, 1), lambda i: (0, 0)),
        ),
        out_shape=(
            jax.ShapeDtypeStruct((B, NDEC, V), jnp.float32),
            jax.ShapeDtypeStruct((1, 1), jnp.float32),
        ),
        scratch_shapes=[
            pltpu.VMEM((N_LAYERS, B, TKV, D), PARAM_DTYPE),   # K: [decoder | memory prefix]
            pltpu.VMEM((N_LAYERS, B, TKV, D), PARAM_DTYPE),   # V: [decoder | memory prefix]
        ],
        compiler_params=pltpu.CompilerParams(dimension_semantics=("arbitrary",)),
    )(ids_all, labels2d, params["embed"], mem_slab, params["Wqkv"], params["Wo"])

    return {"loss": loss[0, 0], "logits": logits}


# ----------------------------- pure-JAX reference (same dtype discipline) -----------------------------
def reference_forward(params, input_ids, labels):
    f32 = jnp.float32
    emb = params["embed"]

    def layer(x, l, past_k=None, past_v=None):
        b, t, _ = x.shape
        x2 = x.reshape(b * t, D)
        qkv = jnp.dot(x2, params["Wqkv"][l], preferred_element_type=f32)
        q = qkv[:, 0:D].astype(PARAM_DTYPE).reshape(b, t, D)
        k = qkv[:, D:2 * D].astype(PARAM_DTYPE).reshape(b, t, D)
        v = qkv[:, 2 * D:3 * D].astype(PARAM_DTYPE).reshape(b, t, D)
        if past_k is None:
            k_all, v_all, prefix = k, v, 0
        else:
            k_all = jnp.concatenate([past_k, k], axis=1)
            v_all = jnp.concatenate([past_v, v], axis=1)
            prefix = past_k.shape[1]
        tk = k_all.shape[1]
        s = jnp.einsum("bqd,bkd->bqk", q, k_all, preferred_element_type=f32) * SCALE
        mask = (jnp.arange(tk)[None, :] <= (jnp.arange(t)[:, None] + prefix))[None]
        s = jnp.where(mask, s, NEG)
        p = jax.nn.softmax(s, axis=-1)
        a = jnp.einsum("bqk,bkd->bqd", p.astype(PARAM_DTYPE), v_all,
                       preferred_element_type=f32)
        o = jnp.dot(a.astype(PARAM_DTYPE).reshape(b * t, D), params["Wo"][l],
                    preferred_element_type=f32)
        return x + o.astype(PARAM_DTYPE).reshape(b, t, D), k, v

    text_emb = jnp.take(emb, input_ids, axis=0)
    mem_emb = jnp.broadcast_to(params["memory"], (B, M, D))
    x = jnp.concatenate([text_emb, mem_emb], axis=1)
    trimmed = []
    for l in range(N_LAYERS):
        x, k, v = layer(x, l)
        trimmed.append((k[:, -M:, :], v[:, -M:, :]))

    bos = jnp.broadcast_to(emb[BOS_ID][None, None, :], (B, 1, D))
    x = jnp.concatenate([bos, text_emb], axis=1)
    for l, (pk, pv) in enumerate(trimmed):
        x, _, _ = layer(x, l, past_k=pk, past_v=pv)

    logits = jnp.einsum("nd,vd->nv", x.reshape(B * NDEC, D), emb,
                        preferred_element_type=f32)
    lab = labels.reshape(-1)
    mmax = jnp.max(logits, axis=-1, keepdims=True)
    lse = jnp.log(jnp.sum(jnp.exp(logits - mmax), axis=-1, keepdims=True)) + mmax
    label_logit = jnp.take_along_axis(logits, jnp.clip(lab, 0, V - 1)[:, None], axis=-1)
    valid = (lab != IGNORE_INDEX)[:, None]
    per = jnp.where(valid, lse - label_logit, 0.0)
    loss = jnp.sum(per) / jnp.maximum(jnp.sum(valid.astype(f32)), 1.0)
    return {"loss": loss, "logits": logits.reshape(B, NDEC, V)}


# TODO(synk): tokenizer calls, safetensors LoRA loading and autoregressive
# generation (predict) are host-side / I/O logic with no Pallas equivalent.

if __name__ == "__main__":
    key = jax.random.PRNGKey(0)
    pkey, ikey, lkey = jax.random.split(key, 3)
    params = init_params(pkey)

    input_ids = jax.random.randint(ikey, (B, S), 0, V, dtype=jnp.int32)
    labels = jax.random.randint(lkey, (B, NDEC), 0, V, dtype=jnp.int32)
    labels = labels.at[:, 0].set(IGNORE_INDEX)   # some ignored (padded-label) positions

    out = jax.jit(forward)(params, input_ids, labels)
    jax.block_until_ready(out)

    assert out["logits"].shape == (B, NDEC, V)
    assert out["loss"].shape == ()
    assert bool(jnp.isfinite(out["loss"]))

    # sanity check against a pure-JAX reference (loose tolerance: approx reciprocal + bf16)
    ref = jax.jit(reference_forward)(params, input_ids, labels)
    jax.block_until_ready(ref)
    logit_err = float(jnp.max(jnp.abs(out["logits"] - ref["logits"])))
    loss_err = abs(float(out["loss"]) - float(ref["loss"]))
    assert logit_err < 0.15, f"logits mismatch: {logit_err}"
    assert loss_err < 0.05 * max(1.0, abs(float(ref["loss"]))), f"loss mismatch: {loss_err}"

    print("KERNEL_OK")
</pallas_src>

<mosaic_0001>
module attributes {stable_mosaic.version = 11 : i64} {
  func.func @_fused_forward_kernel(%arg0: i32, %arg1: memref<64x1xi32, #tpu.memory_space<vmem>>, %arg2: memref<32x1xi32, #tpu.memory_space<vmem>>, %arg3: memref<256x128xbf16, #tpu.memory_space<vmem>>, %arg4: memref<1x16x128xbf16, #tpu.memory_space<vmem>>, %arg5: memref<2x128x384xbf16, #tpu.memory_space<vmem>>, %arg6: memref<2x128x128xbf16, #tpu.memory_space<vmem>>, %arg7: memref<2x9x256xf32, #tpu.memory_space<vmem>>, %arg8: memref<1x1xf32, #tpu.memory_space<vmem>>, %arg9: memref<2x2x24x128xbf16, #tpu.memory_space<vmem>>, %arg10: memref<2x2x24x128xbf16, #tpu.memory_space<vmem>>) attributes {dimension_semantics = [#tpu.dimension_semantics<arbitrary>], iteration_bounds = array<i64: 1>, scalar_prefetch = 0 : i64, scratch_operands = 2 : i64, tpu.core_type = #tpu.core_type<tc>, window_params = [{pipeline_mode = #tpu.pipeline_mode<synchronous>, transform_indices = @transform_0, window_bounds = array<i64: 64, 1>}, {pipeline_mode = #tpu.pipeline_mode<synchronous>, transform_indices = @transform_1, window_bounds = array<i64: 32, 1>}, {pipeline_mode = #tpu.pipeline_mode<synchronous>, transform_indices = @transform_2, window_bounds = array<i64: 256, 128>}, {pipeline_mode = #tpu.pipeline_mode<synchronous>, transform_indices = @transform_3, window_bounds = array<i64: 1, 16, 128>}, {pipeline_mode = #tpu.pipeline_mode<synchronous>, transform_indices = @transform_4, window_bounds = array<i64: 2, 128, 384>}, {pipeline_mode = #tpu.pipeline_mode<synchronous>, transform_indices = @transform_5, window_bounds = array<i64: 2, 128, 128>}, {pipeline_mode = #tpu.pipeline_mode<synchronous>, transform_indices = @transform_6, window_bounds = array<i64: 2, 9, 256>}, {pipeline_mode = #tpu.pipeline_mode<synchronous>, transform_indices = @transform_7, window_bounds = array<i64: 1, 1>}]} {
    %c0 = arith.constant 0 : index
    %c0_0 = arith.constant 0 : index
    %0 = vector.load %arg3[%c0, %c0_0] : memref<256x128xbf16, #tpu.memory_space<vmem>>, vector<256x128xbf16>
    %c0_1 = arith.constant 0 : index
    %c0_2 = arith.constant 0 : index
    %1 = vector.load %arg1[%c0_1, %c0_2] : memref<64x1xi32, #tpu.memory_space<vmem>>, vector<64x1xi32>
    %2 = tpu.iota {dimensions = array<i32: 1>} : vector<64x256xi32>
    %3 = vector.broadcast %1 : vector<64x1xi32> to vector<64x256xi32>
    %4 = arith.cmpi eq, %2, %3 : vector<64x256xi32>
    %cst = arith.constant 1.000000e+00 : f32
    %cst_3 = arith.constant 0.000000e+00 : f32
    %5 = vector.broadcast %cst : f32 to vector<64x256xf32>
    %6 = vector.broadcast %cst_3 : f32 to vector<64x256xf32>
    %7 = arith.select %4, %5, %6 : vector<64x256xi1>, vector<64x256xf32>
    %8 = arith.truncf %7 : vector<64x256xf32> to vector<64x256xbf16>
    %cst_4 = arith.constant dense<0.000000e+00> : vector<64x128xf32>
    %9 = tpu.matmul %8, %0, %cst_4 {dimension_numbers = #tpu.dot_dimension_numbers<[1], [0], [0], [1], [0, 0, 1, 1], [], []>} : vector<64x256xbf16>, vector<256x128xbf16>, vector<64x128xf32> -> vector<64x128xf32>
    %10 = arith.truncf %9 : vector<64x128xf32> to vector<64x128xbf16>
    %11 = vector.extract_strided_slice %10 {offsets = [0, 0], sizes = [32, 128], strides = [1, 1]} : vector<64x128xbf16> to vector<32x128xbf16>
    %12 = vector.shape_cast %11 : vector<32x128xbf16> to vector<2x16x128xbf16>
    %c0_5 = arith.constant 0 : index
    %c0_6 = arith.constant 0 : index
    %c0_7 = arith.constant 0 : index
    %13 = vector.load %arg4[%c0_5, %c0_6, %c0_7] : memref<1x16x128xbf16, #tpu.memory_space<vmem>>, vector<1x16x128xbf16>
    %14 = vector.broadcast %13 : vector<1x16x128xbf16> to vector<2x16x128xbf16>
    %15 = arith.addf %12, %14 : vector<2x16x128xbf16>
    %16 = vector.extract_strided_slice %10 {offsets = [32, 0], sizes = [32, 128], strides = [1, 1]} : vector<64x128xbf16> to vector<32x128xbf16>
    %17 = vector.shape_cast %16 : vector<32x128xbf16> to vector<2x16x128xbf16>
    %18 = tpu.iota {dimensions = array<i32: 0>} : vector<16x16xi32>
    %19 = tpu.iota {dimensions = array<i32: 1>} : vector<16x16xi32>
    %20 = arith.cmpi sle, %19, %18 : vector<16x16xi32>
    %21 = tpu.iota {dimensions = array<i32: 0>} : vector<16x24xi32>
    %22 = tpu.iota {dimensions = array<i32: 1>} : vector<16x24xi32>
    %c9_i32 = arith.constant 9 : i32
    %23 = vector.broadcast %c9_i32 : i32 to vector<16x24xi32>
    %24 = arith.cmpi slt, %22, %23 : vector<16x24xi32>
    %25 = arith.cmpi sle, %22, %21 : vector<16x24xi32>
    %26 = arith.andi %24, %25 : vector<16x24xi1>
    %c16_i32 = arith.constant 16 : i32
    %27 = vector.broadcast %c16_i32 : i32 to vector<16x24xi32>
    %28 = arith.cmpi sge, %22, %27 : vector<16x24xi32>
    %c20_i32 = arith.constant 20 : i32
    %29 = vector.broadcast %c20_i32 : i32 to vector<16x24xi32>
    %30 = arith.cmpi slt, %22, %29 : vector<16x24xi32>
    %31 = arith.andi %28, %30 : vector<16x24xi1>
    %32 = arith.ori %26, %31 : vector<16x24xi1>
    %33 = vector.shape_cast %15 : vector<2x16x128xbf16> to vector<32x128xbf16>
    %c0_8 = arith.constant 0 : index
    %c0_9 = arith.constant 0 : index
    %c0_10 = arith.constant 0 : index
    %34 = vector.load %arg5[%c0_8, %c0_9, %c0_10] : memref<2x128x384xbf16, #tpu.memory_space<vmem>>, vector<1x128x384xbf16>
    %35 = vector.shape_cast %34 : vector<1x128x384xbf16> to vector<128x384xbf16>
    %cst_11 = arith.constant dense<0.000000e+00> : vector<32x384xf32>
    %36 = tpu.matmul %33, %35, %cst_11 {dimension_numbers = #tpu.dot_dimension_numbers<[1], [0], [0], [1], [0, 0, 1, 1], [], []>} : vector<32x128xbf16>, vector<128x384xbf16>, vector<32x384xf32> -> vector<32x384xf32>
    %37 = vector.extract_strided_slice %36 {offsets = [0, 0], sizes = [32, 128], strides = [1, 1]} : vector<32x384xf32> to vector<32x128xf32>
    %38 = arith.truncf %37 : vector<32x128xf32> to vector<32x128xbf16>
    %39 = vector.shape_cast %38 : vector<32x128xbf16> to vector<2x16x128xbf16>
    %40 = vector.extract_strided_slice %36 {offsets = [0, 128], sizes = [32, 128], strides = [1, 1]} : vector<32x384xf32> to vector<32x128xf32>
    %41 = arith.truncf %40 : vector<32x128xf32> to vector<32x128xbf16>
    %42 = vector.shape_cast %41 : vector<32x128xbf16> to vector<2x16x128xbf16>
    %43 = vector.extract_strided_slice %36 {offsets = [0, 256], sizes = [32, 128], strides = [1, 1]} : vector<32x384xf32> to vector<32x128xf32>
    %44 = arith.truncf %43 : vector<32x128xf32> to vector<32x128xbf16>
    %45 = vector.shape_cast %44 : vector<32x128xbf16> to vector<2x16x128xbf16>
    "tpu.trace_start"() <{level = 10 : i32, message = "bqd,bkd->bqk"}> : () -> ()
    %cst_12 = arith.constant dense<0.000000e+00> : vector<2x16x16xf32>
    %46 = tpu.matmul %39, %42, %cst_12 {dimension_numbers = #tpu.dot_dimension_numbers<[2], [2], [1], [1], [0, 0, 0, 1, 1, 1], [0], [0]>} : vector<2x16x128xbf16>, vector<2x16x128xbf16>, vector<2x16x16xf32> -> vector<2x16x16xf32>
    "tpu.trace_stop"() : () -> ()
    %cst_13 = arith.constant 0.0883883461 : f32
    %47 = vector.broadcast %cst_13 : f32 to vector<2x16x16xf32>
    %48 = arith.mulf %46, %47 : vector<2x16x16xf32>
    %49 = vector.shape_cast %20 : vector<16x16xi1> to vector<1x16x16xi1>
    %cst_14 = arith.constant -1.000000e+30 : f32
    %50 = vector.shape_cast %49 : vector<1x16x16xi1> to vector<1x16x16xi1>
    %51 = vector.broadcast %50 : vector<1x16x16xi1> to vector<2x16x16xi1>
    %52 = vector.broadcast %cst_14 : f32 to vector<2x16x16xf32>
    %53 = arith.select %51, %48, %52 : vector<2x16x16xi1>, vector<2x16x16xf32>
    %cst_15 = arith.constant dense<0xFF800000> : vector<2x16xf32>
    %54 = vector.multi_reduction <maximumf>, %53, %cst_15 [2] : vector<2x16x16xf32> to vector<2x16xf32>
    %55 = vector.shape_cast %54 : vector<2x16xf32> to vector<2x16x1xf32>
    %56 = vector.broadcast %55 : vector<2x16x1xf32> to vector<2x16x16xf32>
    %57 = arith.subf %53, %56 : vector<2x16x16xf32>
    %58 = math.exp %57 : vector<2x16x16xf32>
    %cst_16 = arith.constant dense<0.000000e+00> : vector<2x16xf32>
    %59 = vector.multi_reduction <add>, %58, %cst_16 [2] : vector<2x16x16xf32> to vector<2x16xf32>
    %60 = vector.shape_cast %59 : vector<2x16xf32> to vector<2x16x1xf32>
    %61 = tpu.reciprocal %60 {approx = true} : vector<2x16x1xf32> -> vector<2x16x1xf32>
    %62 = vector.broadcast %61 : vector<2x16x1xf32> to vector<2x16x16xf32>
    %63 = arith.mulf %58, %62 : vector<2x16x16xf32>
    %64 = arith.truncf %63 : vector<2x16x16xf32> to vector<2x16x16xbf16>
    "tpu.trace_start"() <{level = 10 : i32, message = "bqk,bkd->bqd"}> : () -> ()
    %cst_17 = arith.constant dense<0.000000e+00> : vector<2x16x128xf32>
    %65 = tpu.matmul %64, %45, %cst_17 {dimension_numbers = #tpu.dot_dimension_numbers<[2], [1], [1], [2], [0, 0, 0, 1, 1, 2], [0], [0]>} : vector<2x16x16xbf16>, vector<2x16x128xbf16>, vector<2x16x128xf32> -> vector<2x16x128xf32>
    "tpu.trace_stop"() : () -> ()
    %66 = arith.truncf %65 : vector<2x16x128xf32> to vector<2x16x128xbf16>
    %67 = vector.shape_cast %66 : vector<2x16x128xbf16> to vector<32x128xbf16>
    %c0_18 = arith.constant 0 : index
    %c0_19 = arith.constant 0 : index
    %c0_20 = arith.constant 0 : index
    %68 = vector.load %arg6[%c0_18, %c0_19, %c0_20] : memref<2x128x128xbf16, #tpu.memory_space<vmem>>, vector<1x128x128xbf16>
    %69 = vector.shape_cast %68 : vector<1x128x128xbf16> to vector<128x128xbf16>
    %cst_21 = arith.constant dense<0.000000e+00> : vector<32x128xf32>
    %70 = tpu.matmul %67, %69, %cst_21 {dimension_numbers = #tpu.dot_dimension_numbers<[1], [0], [0], [1], [0, 0, 1, 1], [], []>} : vector<32x128xbf16>, vector<128x128xbf16>, vector<32x128xf32> -> vector<32x128xf32>
    %71 = arith.truncf %70 : vector<32x128xf32> to vector<32x128xbf16>
    %72 = vector.shape_cast %71 : vector<32x128xbf16> to vector<2x16x128xbf16>
    %73 = arith.addf %15, %72 : vector<2x16x128xbf16>
    %74 = vector.extract_strided_slice %42 {offsets = [0, 8, 0], sizes = [2, 8, 128], strides = [1, 1, 1]} : vector<2x16x128xbf16> to vector<2x8x128xbf16>
    %c0_22 = arith.constant 0 : index
    %c0_23 = arith.constant 0 : index
    %c16 = arith.constant 16 : index
    %c0_24 = arith.constant 0 : index
    %75 = vector.load %arg9[%c0_22, %c0_23, %c16, %c0_24] : memref<2x2x24x128xbf16, #tpu.memory_space<vmem>>, vector<1x2x8x128xbf16>
    %76 = vector.shape_cast %75 : vector<1x2x8x128xbf16> to vector<2x8x128xbf16>
    %77 = vector.shape_cast %74 : vector<2x8x128xbf16> to vector<1x2x8x128xbf16>
    tpu.vector_store %arg9[%c0_22, %c0_23, %c16, %c0_24], %77 {strides = array<i32>} : memref<2x2x24x128xbf16, #tpu.memory_space<vmem>>, vector<1x2x8x128xbf16>,
    %78 = vector.extract_strided_slice %45 {offsets = [0, 8, 0], sizes = [2, 8, 128], strides = [1, 1, 1]} : vector<2x16x128xbf16> to vector<2x8x128xbf16>
    %c0_25 = arith.constant 0 : index
    %c0_26 = arith.constant 0 : index
    %c16_27 = arith.constant 16 : index
    %c0_28 = arith.constant 0 : index
    %79 = vector.load %arg10[%c0_25, %c0_26, %c16_27, %c0_28] : memref<2x2x24x128xbf16, #tpu.memory_space<vmem>>, vector<1x2x8x128xbf16>
    %80 = vector.shape_cast %79 : vector<1x2x8x128xbf16> to vector<2x8x128xbf16>
    %81 = vector.shape_cast %78 : vector<2x8x128xbf16> to vector<1x2x8x128xbf16>
    tpu.vector_store %arg10[%c0_25, %c0_26, %c16_27, %c0_28], %81 {strides = array<i32>} : memref<2x2x24x128xbf16, #tpu.memory_space<vmem>>, vector<1x2x8x128xbf16>,
    %82 = vector.shape_cast %73 : vector<2x16x128xbf16> to vector<32x128xbf16>
    %c1 = arith.constant 1 : index
    %c0_29 = arith.constant 0 : index
    %c0_30 = arith.constant 0 : index
    %83 = vector.load %arg5[%c1, %c0_29, %c0_30] : memref<2x128x384xbf16, #tpu.memory_space<vmem>>, vector<1x128x384xbf16>
    %84 = vector.shape_cast %83 : vector<1x128x384xbf16> to vector<128x384xbf16>
    %cst_31 = arith.constant dense<0.000000e+00> : vector<32x384xf32>
    %85 = tpu.matmul %82, %84, %cst_31 {dimension_numbers = #tpu.dot_dimension_numbers<[1], [0], [0], [1], [0, 0, 1, 1], [], []>} : vector<32x128xbf16>, vector<128x384xbf16>, vector<32x384xf32> -> vector<32x384xf32>
    %86 = vector.extract_strided_slice %85 {offsets = [0, 128], sizes = [32, 128], strides = [1, 1]} : vector<32x384xf32> to vector<32x128xf32>
    %87 = arith.truncf %86 : vector<32x128xf32> to vector<32x128xbf16>
    %88 = vector.shape_cast %87 : vector<32x128xbf16> to vector<2x16x128xbf16>
    %89 = vector.extract_strided_slice %85 {offsets = [0, 256], sizes = [32, 128], strides = [1, 1]} : vector<32x384xf32> to vector<32x128xf32>
    %90 = arith.truncf %89 : vector<32x128xf32> to vector<32x128xbf16>
    %91 = vector.shape_cast %90 : vector<32x128xbf16> to vector<2x16x128xbf16>
    %92 = vector.extract_strided_slice %88 {offsets = [0, 8, 0], sizes = [2, 8, 128], strides = [1, 1, 1]} : vector<2x16x128xbf16> to vector<2x8x128xbf16>
    %c1_32 = arith.constant 1 : index
    %c0_33 = arith.constant 0 : index
    %c16_34 = arith.constant 16 : index
    %c0_35 = arith.constant 0 : index
    %93 = vector.load %arg9[%c1_32, %c0_33, %c16_34, %c0_35] : memref<2x2x24x128xbf16, #tpu.memory_space<vmem>>, vector<1x2x8x128xbf16>
    %94 = vector.shape_cast %93 : vector<1x2x8x128xbf16> to vector<2x8x128xbf16>
    %95 = vector.shape_cast %92 : vector<2x8x128xbf16> to vector<1x2x8x128xbf16>
    tpu.vector_store %arg9[%c1_32, %c0_33, %c16_34, %c0_35], %95 {strides = array<i32>} : memref<2x2x24x128xbf16, #tpu.memory_space<vmem>>, vector<1x2x8x128xbf16>,
    %96 = vector.extract_strided_slice %91 {offsets = [0, 8, 0], sizes = [2, 8, 128], strides = [1, 1, 1]} : vector<2x16x128xbf16> to vector<2x8x128xbf16>
    %c1_36 = arith.constant 1 : index
    %c0_37 = arith.constant 0 : index
    %c16_38 = arith.constant 16 : index
    %c0_39 = arith.constant 0 : index
    %97 = vector.load %arg10[%c1_36, %c0_37, %c16_38, %c0_39] : memref<2x2x24x128xbf16, #tpu.memory_space<vmem>>, vector<1x2x8x128xbf16>
    %98 = vector.shape_cast %97 : vector<1x2x8x128xbf16> to vector<2x8x128xbf16>
    %99 = vector.shape_cast %96 : vector<2x8x128xbf16> to vector<1x2x8x128xbf16>
    tpu.vector_store %arg10[%c1_36, %c0_37, %c16_38, %c0_39], %99 {strides = array<i32>} : memref<2x2x24x128xbf16, #tpu.memory_space<vmem>>, vector<1x2x8x128xbf16>,
    %100 = vector.shape_cast %17 : vector<2x16x128xbf16> to vector<32x128xbf16>
    %c0_40 = arith.constant 0 : index
    %c0_41 = arith.constant 0 : index
    %c0_42 = arith.constant 0 : index
    %101 = vector.load %arg5[%c0_40, %c0_41, %c0_42] : memref<2x128x384xbf16, #tpu.memory_space<vmem>>, vector<1x128x384xbf16>
    %102 = vector.shape_cast %101 : vector<1x128x384xbf16> to vector<128x384xbf16>
    %cst_43 = arith.constant dense<0.000000e+00> : vector<32x384xf32>
    %103 = tpu.matmul %100, %102, %cst_43 {dimension_numbers = #tpu.dot_dimension_numbers<[1], [0], [0], [1], [0, 0, 1, 1], [], []>} : vector<32x128xbf16>, vector<128x384xbf16>, vector<32x384xf32> -> vector<32x384xf32>
    %104 = vector.extract_strided_slice %103 {offsets = [0, 0], sizes = [32, 128], strides = [1, 1]} : vector<32x384xf32> to vector<32x128xf32>
    %105 = arith.truncf %104 : vector<32x128xf32> to vector<32x128xbf16>
    %106 = vector.shape_cast %105 : vector<32x128xbf16> to vector<2x16x128xbf16>
    %107 = vector.extract_strided_slice %103 {offsets = [0, 128], sizes = [32, 128], strides = [1, 1]} : vector<32x384xf32> to vector<32x128xf32>
    %108 = arith.truncf %107 : vector<32x128xf32> to vector<32x128xbf16>
    %109 = vector.shape_cast %108 : vector<32x128xbf16> to vector<2x16x128xbf16>
    %110 = vector.extract_strided_slice %103 {offsets = [0, 256], sizes = [32, 128], strides = [1, 1]} : vector<32x384xf32> to vector<32x128xf32>
    %111 = arith.truncf %110 : vector<32x128xf32> to vector<32x128xbf16>
    %112 = vector.shape_cast %111 : vector<32x128xbf16> to vector<2x16x128xbf16>
    %c0_44 = arith.constant 0 : index
    %c0_45 = arith.constant 0 : index
    %c0_46 = arith.constant 0 : index
    %c0_47 = arith.constant 0 : index
    %113 = vector.load %arg9[%c0_44, %c0_45, %c0_46, %c0_47] : memref<2x2x24x128xbf16, #tpu.memory_space<vmem>>, vector<1x2x16x128xbf16>
    %114 = vector.shape_cast %113 : vector<1x2x16x128xbf16> to vector<2x16x128xbf16>
    %115 = vector.shape_cast %109 : vector<2x16x128xbf16> to vector<1x2x16x128xbf16>
    tpu.vector_store %arg9[%c0_44, %c0_45, %c0_46, %c0_47], %115 {strides = array<i32>} : memref<2x2x24x128xbf16, #tpu.memory_space<vmem>>, vector<1x2x16x128xbf16>,
    %c0_48 = arith.constant 0 : index
    %c0_49 = arith.constant 0 : index
    %c0_50 = arith.constant 0 : index
    %c0_51 = arith.constant 0 : index
    %116 = vector.load %arg10[%c0_48, %c0_49, %c0_50, %c0_51] : memref<2x2x24x128xbf16, #tpu.memory_space<vmem>>, vector<1x2x16x128xbf16>
    %117 = vector.shape_cast %116 : vector<1x2x16x128xbf16> to vector<2x16x128xbf16>
    %118 = vector.shape_cast %112 : vector<2x16x128xbf16> to vector<1x2x16x128xbf16>
    tpu.vector_store %arg10[%c0_48, %c0_49, %c0_50, %c0_51], %118 {strides = array<i32>} : memref<2x2x24x128xbf16, #tpu.memory_space<vmem>>, vector<1x2x16x128xbf16>,
    %c0_52 = arith.constant 0 : index
    %c0_53 = arith.constant 0 : index
    %c0_54 = arith.constant 0 : index
    %c0_55 = arith.constant 0 : index
    %119 = vector.load %arg9[%c0_52, %c0_53, %c0_54, %c0_55] : memref<2x2x24x128xbf16, #tpu.memory_space<vmem>>, vector<1x2x24x128xbf16>
    %120 = vector.shape_cast %119 : vector<1x2x24x128xbf16> to vector<2x24x128xbf16>
    %c0_56 = arith.constant 0 : index
    %c0_57 = arith.constant 0 : index
    %c0_58 = arith.constant 0 : index
    %c0_59 = arith.constant 0 : index
    %121 = vector.load %arg10[%c0_56, %c0_57, %c0_58, %c0_59] : memref<2x2x24x128xbf16, #tpu.memory_space<vmem>>, vector<1x2x24x128xbf16>
    %122 = vector.shape_cast %121 : vector<1x2x24x128xbf16> to vector<2x24x128xbf16>
    "tpu.trace_start"() <{level = 10 : i32, message = "bqd,bkd->bqk"}> : () -> ()
    %cst_60 = arith.constant dense<0.000000e+00> : vector<2x16x24xf32>
    %123 = tpu.matmul %106, %120, %cst_60 {dimension_numbers = #tpu.dot_dimension_numbers<[2], [2], [1], [1], [0, 0, 0, 1, 1, 1], [0], [0]>} : vector<2x16x128xbf16>, vector<2x24x128xbf16>, vector<2x16x24xf32> -> vector<2x16x24xf32>
    "tpu.trace_stop"() : () -> ()
    %cst_61 = arith.constant 0.0883883461 : f32
    %124 = vector.broadcast %cst_61 : f32 to vector<2x16x24xf32>
    %125 = arith.mulf %123, %124 : vector<2x16x24xf32>
    %126 = vector.shape_cast %32 : vector<16x24xi1> to vector<1x16x24xi1>
    %cst_62 = arith.constant -1.000000e+30 : f32
    %127 = vector.shape_cast %126 : vector<1x16x24xi1> to vector<1x16x24xi1>
    %128 = vector.broadcast %127 : vector<1x16x24xi1> to vector<2x16x24xi1>
    %129 = vector.broadcast %cst_62 : f32 to vector<2x16x24xf32>
    %130 = arith.select %128, %125, %129 : vector<2x16x24xi1>, vector<2x16x24xf32>
    %cst_63 = arith.constant dense<0xFF800000> : vector<2x16xf32>
    %131 = vector.multi_reduction <maximumf>, %130, %cst_63 [2] : vector<2x16x24xf32> to vector<2x16xf32>
    %132 = vector.shape_cast %131 : vector<2x16xf32> to vector<2x16x1xf32>
    %133 = vector.broadcast %132 : vector<2x16x1xf32> to vector<2x16x24xf32>
    %134 = arith.subf %130, %133 : vector<2x16x24xf32>
    %135 = math.exp %134 : vector<2x16x24xf32>
    %cst_64 = arith.constant dense<0.000000e+00> : vector<2x16xf32>
    %136 = vector.multi_reduction <add>, %135, %cst_64 [2] : vector<2x16x24xf32> to vector<2x16xf32>
    %137 = vector.shape_cast %136 : vector<2x16xf32> to vector<2x16x1xf32>
    %138 = tpu.reciprocal %137 {approx = true} : vector<2x16x1xf32> -> vector<2x16x1xf32>
    %139 = vector.broadcast %138 : vector<2x16x1xf32> to vector<2x16x24xf32>
    %140 = arith.mulf %135, %139 : vector<2x16x24xf32>
    %141 = arith.truncf %140 : vector<2x16x24xf32> to vector<2x16x24xbf16>
    "tpu.trace_start"() <{level = 10 : i32, message = "bqk,bkd->bqd"}> : () -> ()
    %cst_65 = arith.constant dense<0.000000e+00> : vector<2x16x128xf32>
    %142 = tpu.matmul %141, %122, %cst_65 {dimension_numbers = #tpu.dot_dimension_numbers<[2], [1], [1], [2], [0, 0, 0, 1, 1, 2], [0], [0]>} : vector<2x16x24xbf16>, vector<2x24x128xbf16>, vector<2x16x128xf32> -> vector<2x16x128xf32>
    "tpu.trace_stop"() : () -> ()
    %143 = arith.truncf %142 : vector<2x16x128xf32> to vector<2x16x128xbf16>
    %144 = vector.shape_cast %143 : vector<2x16x128xbf16> to vector<32x128xbf16>
    %c0_66 = arith.constant 0 : index
    %c0_67 = arith.constant 0 : index
    %c0_68 = arith.constant 0 : index
    %145 = vector.load %arg6[%c0_66, %c0_67, %c0_68] : memref<2x128x128xbf16, #tpu.memory_space<vmem>>, vector<1x128x128xbf16>
    %146 = vector.shape_cast %145 : vector<1x128x128xbf16> to vector<128x128xbf16>
    %cst_69 = arith.constant dense<0.000000e+00> : vector<32x128xf32>
    %147 = tpu.matmul %144, %146, %cst_69 {dimension_numbers = #tpu.dot_dimension_numbers<[1], [0], [0], [1], [0, 0, 1, 1], [], []>} : vector<32x128xbf16>, vector<128x128xbf16>, vector<32x128xf32> -> vector<32x128xf32>
    %148 = arith.truncf %147 : vector<32x128xf32> to vector<32x128xbf16>
    %149 = vector.shape_cast %148 : vector<32x128xbf16> to vector<2x16x128xbf16>
    %150 = arith.addf %17, %149 : vector<2x16x128xbf16>
    %151 = vector.shape_cast %150 : vector<2x16x128xbf16> to vector<32x128xbf16>
    %c1_70 = arith.constant 1 : index
    %c0_71 = arith.constant 0 : index
    %c0_72 = arith.constant 0 : index
    %152 = vector.load %arg5[%c1_70, %c0_71, %c0_72] : memref<2x128x384xbf16, #tpu.memory_space<vmem>>, vector<1x128x384xbf16>
    %153 = vector.shape_cast %152 : vector<1x128x384xbf16> to vector<128x384xbf16>
    %cst_73 = arith.constant dense<0.000000e+00> : vector<32x384xf32>
    %154 = tpu.matmul %151, %153, %cst_73 {dimension_numbers = #tpu.dot_dimension_numbers<[1], [0], [0], [1], [0, 0, 1, 1], [], []>} : vector<32x128xbf16>, vector<128x384xbf16>, vector<32x384xf32> -> vector<32x384xf32>
    %155 = vector.extract_strided_slice %154 {offsets = [0, 0], sizes = [32, 128], strides = [1, 1]} : vector<32x384xf32> to vector<32x128xf32>
    %156 = arith.truncf %155 : vector<32x128xf32> to vector<32x128xbf16>
    %157 = vector.shape_cast %156 : vector<32x128xbf16> to vector<2x16x128xbf16>
    %158 = vector.extract_strided_slice %154 {offsets = [0, 128], sizes = [32, 128], strides = [1, 1]} : vector<32x384xf32> to vector<32x128xf32>
    %159 = arith.truncf %158 : vector<32x128xf32> to vector<32x128xbf16>
    %160 = vector.shape_cast %159 : vector<32x128xbf16> to vector<2x16x128xbf16>
    %161 = vector.extract_strided_slice %154 {offsets = [0, 256], sizes = [32, 128], strides = [1, 1]} : vector<32x384xf32> to vector<32x128xf32>
    %162 = arith.truncf %161 : vector<32x128xf32> to vector<32x128xbf16>
    %163 = vector.shape_cast %162 : vector<32x128xbf16> to vector<2x16x128xbf16>
    %c1_74 = arith.constant 1 : index
    %c0_75 = arith.constant 0 : index
    %c0_76 = arith.constant 0 : index
    %c0_77 = arith.constant 0 : index
    %164 = vector.load %arg9[%c1_74, %c0_75, %c0_76, %c0_77] : memref<2x2x24x128xbf16, #tpu.memory_space<vmem>>, vector<1x2x16x128xbf16>
    %165 = vector.shape_cast %164 : vector<1x2x16x128xbf16> to vector<2x16x128xbf16>
    %166 = vector.shape_cast %160 : vector<2x16x128xbf16> to vector<1x2x16x128xbf16>
    tpu.vector_store %arg9[%c1_74, %c0_75, %c0_76, %c0_77], %166 {strides = array<i32>} : memref<2x2x24x128xbf16, #tpu.memory_space<vmem>>, vector<1x2x16x128xbf16>,
    %c1_78 = arith.constant 1 : index
    %c0_79 = arith.constant 0 : index
    %c0_80 = arith.constant 0 : index
    %c0_81 = arith.constant 0 : index
    %167 = vector.load %arg10[%c1_78, %c0_79, %c0_80, %c0_81] : memref<2x2x24x128xbf16, #tpu.memory_space<vmem>>, vector<1x2x16x128xbf16>
    %168 = vector.shape_cast %167 : vector<1x2x16x128xbf16> to vector<2x16x128xbf16>
    %169 = vector.shape_cast %163 : vector<2x16x128xbf16> to vector<1x2x16x128xbf16>
    tpu.vector_store %arg10[%c1_78, %c0_79, %c0_80, %c0_81], %169 {strides = array<i32>} : memref<2x2x24x128xbf16, #tpu.memory_space<vmem>>, vector<1x2x16x128xbf16>,
    %c1_82 = arith.constant 1 : index
    %c0_83 = arith.constant 0 : index
    %c0_84 = arith.constant 0 : index
    %c0_85 = arith.constant 0 : index
    %170 = vector.load %arg9[%c1_82, %c0_83, %c0_84, %c0_85] : memref<2x2x24x128xbf16, #tpu.memory_space<vmem>>, vector<1x2x24x128xbf16>
    %171 = vector.shape_cast %170 : vector<1x2x24x128xbf16> to vector<2x24x128xbf16>
    %c1_86 = arith.constant 1 : index
    %c0_87 = arith.constant 0 : index
    %c0_88 = arith.constant 0 : index
    %c0_89 = arith.constant 0 : index
    %172 = vector.load %arg10[%c1_86, %c0_87, %c0_88, %c0_89] : memref<2x2x24x128xbf16, #tpu.memory_space<vmem>>, vector<1x2x24x128xbf16>
    %173 = vector.shape_cast %172 : vector<1x2x24x128xbf16> to vector<2x24x128xbf16>
    "tpu.trace_start"() <{level = 10 : i32, message = "bqd,bkd->bqk"}> : () -> ()
    %cst_90 = arith.constant dense<0.000000e+00> : vector<2x16x24xf32>
    %174 = tpu.matmul %157, %171, %cst_90 {dimension_numbers = #tpu.dot_dimension_numbers<[2], [2], [1], [1], [0, 0, 0, 1, 1, 1], [0], [0]>} : vector<2x16x128xbf16>, vector<2x24x128xbf16>, vector<2x16x24xf32> -> vector<2x16x24xf32>
    "tpu.trace_stop"() : () -> ()
    %cst_91 = arith.constant 0.0883883461 : f32
    %175 = vector.broadcast %cst_91 : f32 to vector<2x16x24xf32>
    %176 = arith.mulf %174, %175 : vector<2x16x24xf32>
    %177 = vector.shape_cast %32 : vector<16x24xi1> to vector<1x16x24xi1>
    %cst_92 = arith.constant -1.000000e+30 : f32
    %178 = vector.shape_cast %177 : vector<1x16x24xi1> to vector<1x16x24xi1>
    %179 = vector.broadcast %178 : vector<1x16x24xi1> to vector<2x16x24xi1>
    %180 = vector.broadcast %cst_92 : f32 to vector<2x16x24xf32>
    %181 = arith.select %179, %176, %180 : vector<2x16x24xi1>, vector<2x16x24xf32>
    %cst_93 = arith.constant dense<0xFF800000> : vector<2x16xf32>
    %182 = vector.multi_reduction <maximumf>, %181, %cst_93 [2] : vector<2x16x24xf32> to vector<2x16xf32>
    %183 = vector.shape_cast %182 : vector<2x16xf32> to vector<2x16x1xf32>
    %184 = vector.broadcast %183 : vector<2x16x1xf32> to vector<2x16x24xf32>
    %185 = arith.subf %181, %184 : vector<2x16x24xf32>
    %186 = math.exp %185 : vector<2x16x24xf32>
    %cst_94 = arith.constant dense<0.000000e+00> : vector<2x16xf32>
    %187 = vector.multi_reduction <add>, %186, %cst_94 [2] : vector<2x16x24xf32> to vector<2x16xf32>
    %188 = vector.shape_cast %187 : vector<2x16xf32> to vector<2x16x1xf32>
    %189 = tpu.reciprocal %188 {approx = true} : vector<2x16x1xf32> -> vector<2x16x1xf32>
    %190 = vector.broadcast %189 : vector<2x16x1xf32> to vector<2x16x24xf32>
    %191 = arith.mulf %186, %190 : vector<2x16x24xf32>
    %192 = arith.truncf %191 : vector<2x16x24xf32> to vector<2x16x24xbf16>
    "tpu.trace_start"() <{level = 10 : i32, message = "bqk,bkd->bqd"}> : () -> ()
    %cst_95 = arith.constant dense<0.000000e+00> : vector<2x16x128xf32>
    %193 = tpu.matmul %192, %173, %cst_95 {dimension_numbers = #tpu.dot_dimension_numbers<[2], [1], [1], [2], [0, 0, 0, 1, 1, 2], [0], [0]>} : vector<2x16x24xbf16>, vector<2x24x128xbf16>, vector<2x16x128xf32> -> vector<2x16x128xf32>
    "tpu.trace_stop"() : () -> ()
    %194 = arith.truncf %193 : vector<2x16x128xf32> to vector<2x16x128xbf16>
    %195 = vector.shape_cast %194 : vector<2x16x128xbf16> to vector<32x128xbf16>
    %c1_96 = arith.constant 1 : index
    %c0_97 = arith.constant 0 : index
    %c0_98 = arith.constant 0 : index
    %196 = vector.load %arg6[%c1_96, %c0_97, %c0_98] : memref<2x128x128xbf16, #tpu.memory_space<vmem>>, vector<1x128x128xbf16>
    %197 = vector.shape_cast %196 : vector<1x128x128xbf16> to vector<128x128xbf16>
    %cst_99 = arith.constant dense<0.000000e+00> : vector<32x128xf32>
    %198 = tpu.matmul %195, %197, %cst_99 {dimension_numbers = #tpu.dot_dimension_numbers<[1], [0], [0], [1], [0, 0, 1, 1], [], []>} : vector<32x128xbf16>, vector<128x128xbf16>, vector<32x128xf32> -> vector<32x128xf32>
    %199 = arith.truncf %198 : vector<32x128xf32> to vector<32x128xbf16>
    %200 = vector.shape_cast %199 : vector<32x128xbf16> to vector<2x16x128xbf16>
    %201 = arith.addf %150, %200 : vector<2x16x128xbf16>
    %202 = vector.shape_cast %201 : vector<2x16x128xbf16> to vector<32x128xbf16>
    "tpu.trace_start"() <{level = 10 : i32, message = "nd,vd->nv"}> : () -> ()
    %cst_100 = arith.constant dense<0.000000e+00> : vector<32x256xf32>
    %203 = tpu.matmul %202, %0, %cst_100 {dimension_numbers = #tpu.dot_dimension_numbers<[1], [1], [0], [0], [0, 0, 1, 0], [], []>} : vector<32x128xbf16>, vector<256x128xbf16>, vector<32x256xf32> -> vector<32x256xf32>
    "tpu.trace_stop"() : () -> ()
    %204 = vector.shape_cast %203 : vector<32x256xf32> to vector<2x16x256xf32>
    %205 = vector.extract_strided_slice %204 {offsets = [0, 0, 0], sizes = [2, 9, 256], strides = [1, 1, 1]} : vector<2x16x256xf32> to vector<2x9x256xf32>
    %c0_101 = arith.constant 0 : index
    %c0_102 = arith.constant 0 : index
    %c0_103 = arith.constant 0 : index
    %206 = vector.load %arg7[%c0_101, %c0_102, %c0_103] : memref<2x9x256xf32, #tpu.memory_space<vmem>>, vector<2x9x256xf32>
    tpu.vector_store %arg7[%c0_101, %c0_102, %c0_103], %205 {strides = array<i32>} : memref<2x9x256xf32, #tpu.memory_space<vmem>>, vector<2x9x256xf32>,
    %c0_104 = arith.constant 0 : index
    %c0_105 = arith.constant 0 : index
    %207 = vector.load %arg2[%c0_104, %c0_105] : memref<32x1xi32, #tpu.memory_space<vmem>>, vector<32x1xi32>
    %cst_106 = arith.constant dense<0xFF800000> : vector<32xf32>
    %208 = vector.multi_reduction <maximumf>, %203, %cst_106 [1] : vector<32x256xf32> to vector<32xf32>
    %209 = vector.shape_cast %208 : vector<32xf32> to vector<32x1xf32>
    %210 = vector.broadcast %209 : vector<32x1xf32> to vector<32x256xf32>
    %211 = arith.subf %203, %210 : vector<32x256xf32>
    %212 = math.exp %211 : vector<32x256xf32>
    %cst_107 = arith.constant dense<0.000000e+00> : vector<32xf32>
    %213 = vector.multi_reduction <add>, %212, %cst_107 [1] : vector<32x256xf32> to vector<32xf32>
    %214 = vector.shape_cast %213 : vector<32xf32> to vector<32x1xf32>
    %215 = math.log %214 : vector<32x1xf32>
    %216 = arith.addf %215, %209 : vector<32x1xf32>
    %217 = tpu.iota {dimensions = array<i32: 1>} : vector<32x256xi32>
    %218 = vector.broadcast %207 : vector<32x1xi32> to vector<32x256xi32>
    %219 = arith.cmpi eq, %217, %218 : vector<32x256xi32>
    %cst_108 = arith.constant 0.000000e+00 : f32
    %220 = vector.broadcast %cst_108 : f32 to vector<32x256xf32>
    %221 = arith.select %219, %203, %220 : vector<32x256xi1>, vector<32x256xf32>
    %cst_109 = arith.constant dense<0.000000e+00> : vector<32xf32>
    %222 = vector.multi_reduction <add>, %221, %cst_109 [1] : vector<32x256xf32> to vector<32xf32>
    %223 = vector.shape_cast %222 : vector<32xf32> to vector<32x1xf32>
    %c-100_i32 = arith.constant -100 : i32
    %224 = vector.broadcast %c-100_i32 : i32 to vector<32x1xi32>
    %225 = arith.cmpi ne, %207, %224 : vector<32x1xi32>
    %226 = arith.subf %216, %223 : vector<32x1xf32>
    %cst_110 = arith.constant 0.000000e+00 : f32
    %227 = vector.broadcast %cst_110 : f32 to vector<32x1xf32>
    %228 = arith.select %225, %226, %227 : vector<32x1xi1>, vector<32x1xf32>
    %cst_111 = arith.constant dense<0.000000e+00> : vector<1xf32>
    %229 = vector.multi_reduction <add>, %228, %cst_111 [0] : vector<32x1xf32> to vector<1xf32>
    %230 = vector.shape_cast %229 : vector<1xf32> to vector<1x1xf32>
    %231 = arith.extui %225 : vector<32x1xi1> to vector<32x1xi32>
    %232 = arith.sitofp %231 : vector<32x1xi32> to vector<32x1xf32>
    %cst_112 = arith.constant dense<0.000000e+00> : vector<1xf32>
    %233 = vector.multi_reduction <add>, %232, %cst_112 [0] : vector<32x1xf32> to vector<1xf32>
    %234 = vector.shape_cast %233 : vector<1xf32> to vector<1x1xf32>
    %cst_113 = arith.constant 1.000000e+00 : f32
    %235 = vector.broadcast %cst_113 : f32 to vector<1x1xf32>
    %236 = arith.maximumf %234, %235 : vector<1x1xf32>
    %237 = arith.divf %230, %236 : vector<1x1xf32>
    %c0_114 = arith.constant 0 : index
    %c0_115 = arith.constant 0 : index
    %238 = vector.load %arg8[%c0_114, %c0_115] : memref<1x1xf32, #tpu.memory_space<vmem>>, vector<1x1xf32>
    tpu.vector_store %arg8[%c0_114, %c0_115], %237 {strides = array<i32>} : memref<1x1xf32, #tpu.memory_space<vmem>>, vector<1x1xf32>,
    return
  }
  func.func @transform_0(%arg0: i32) -> (i32, i32) {
    %c0_i32 = arith.constant 0 : i32
    %c0_i32_0 = arith.constant 0 : i32
    %c0_i32_1 = arith.constant 0 : i32
    return %c0_i32, %c0_i32_0 : i32, i32
  }
  func.func @transform_1(%arg0: i32) -> (i32, i32) {
    %c0_i32 = arith.constant 0 : i32
    %c0_i32_0 = arith.constant 0 : i32
    %c0_i32_1 = arith.constant 0 : i32
    return %c0_i32, %c0_i32_0 : i32, i32
  }
  func.func @transform_2(%arg0: i32) -> (i32, i32) {
    %c0_i32 = arith.constant 0 : i32
    %c0_i32_0 = arith.constant 0 : i32
    %c0_i32_1 = arith.constant 0 : i32
    return %c0_i32, %c0_i32_0 : i32, i32
  }
  func.func @transform_3(%arg0: i32) -> (i32, i32, i32) {
    %c0_i32 = arith.constant 0 : i32
    %c0_i32_0 = arith.constant 0 : i32
    %c0_i32_1 = arith.constant 0 : i32
    %c0_i32_2 = arith.constant 0 : i32
    return %c0_i32, %c0_i32_0, %c0_i32_1 : i32, i32, i32
  }
  func.func @transform_4(%arg0: i32) -> (i32, i32, i32) {
    %c0_i32 = arith.constant 0 : i32
    %c0_i32_0 = arith.constant 0 : i32
    %c0_i32_1 = arith.constant 0 : i32
    %c0_i32_2 = arith.constant 0 : i32
    return %c0_i32, %c0_i32_0, %c0_i32_1 : i32, i32, i32
  }
  func.func @transform_5(%arg0: i32) -> (i32, i32, i32) {
    %c0_i32 = arith.constant 0 : i32
    %c0_i32_0 = arith.constant 0 : i32
    %c0_i32_1 = arith.constant 0 : i32
    %c0_i32_2 = arith.constant 0 : i32
    return %c0_i32, %c0_i32_0, %c0_i32_1 : i32, i32, i32
  }
  func.func @transform_6(%arg0: i32) -> (i32, i32, i32) {
    %c0_i32 = arith.constant 0 : i32
    %c0_i32_0 = arith.constant 0 : i32
    %c0_i32_1 = arith.constant 0 : i32
    %c0_i32_2 = arith.constant 0 : i32
    return %c0_i32, %c0_i32_0, %c0_i32_1 : i32, i32, i32
  }
  func.func @transform_7(%arg0: i32) -> (i32, i32) {
    %c0_i32 = arith.constant 0 : i32
    %c0_i32_0 = arith.constant 0 : i32
    %c0_i32_1 = arith.constant 0 : i32
    return %c0_i32, %c0_i32_0 : i32, i32
  }
}

</mosaic_0001>

<llo_original>
// kernel: forward.1
$region0: #{forward.1}
  #allocation0 [shape = 'u32[]', space=smem, size = 0x4, offset = 0x4, fixed_abs, tag = 'smem constant byte address 0x4 - core index']
  #allocation1 [shape = 'u32[144,128]{1,0:T(1,128)}', space=vmem, size = 0x12000, scoped, tag = 'internal scratch']
  #allocation2 [shape = 'bf16[2,2,24,128]{3,2,1,0:T(8,128)(2,1)}', space=vmem, size = 0x6000, scoped, tag = 'scratch operand']
  #allocation3 [shape = 'bf16[2,2,24,128]{3,2,1,0:T(8,128)(2,1)}', space=vmem, size = 0x6000, scoped, tag = 'scratch operand']
  %s0 = inlined_call_operand.vmem [shape: s32[64,1], index: 0, kind: input, shape index: {}]
  %s1 = inlined_call_operand.vmem [shape: s32[32,1], index: 1, kind: input, shape index: {}]
  %s2 = inlined_call_operand.vmem [shape: bf16[256,128], index: 2, kind: input, shape index: {}]
  %s3 = inlined_call_operand.vmem [shape: bf16[1,16,128], index: 3, kind: input, shape index: {}]
  %s4 = inlined_call_operand.hbm [shape: bf16[2,128,384], index: 4, kind: input, shape index: {}]
  %s5 = inlined_call_operand.hbm [shape: bf16[2,128,128], index: 5, kind: input, shape index: {}]
  %s6 = inlined_call_operand.vmem [shape: f32[2,9,256], index: 6, kind: output, shape index: {0}]
  %s7 = inlined_call_operand.hbm [shape: f32[1,1], index: 7, kind: output, shape index: {1}]
  %8 = xla_tuple %s6, %s7
  %s9 = sld [smem:[#allocation0]]
  $region50: #{forward.1} parent=0
    _
  %s11 = ssub.s32 1, %s9
  %s12 = scalar_select 0, %s11, %s9
  $region1: #{forward.1} parent=0
    #allocation4 [shape = 'u8[196608]{0}', space=vmem, size = 0x30000, scoped, tag = 'input window, operand 4, single buffered']
    #allocation5 [shape = 's32[1]{0}', space=sflag, size = 0x4, scoped, tag = 'scoped memory for forward.1']
    #allocation6 [shape = 's32[1]{0}', space=sflag, size = 0x4, scoped, tag = 'scoped memory for forward.1']
    #allocation7 [shape = 'u8[65536]{0}', space=vmem, size = 0x10000, scoped, tag = 'input window, operand 5, single buffered']
    #allocation8 [shape = 's32[1]{0}', space=sflag, size = 0x4, scoped, tag = 'scoped memory for forward.1']
    #allocation9 [shape = 'u8[512]{0}', space=vmem, size = 0x400, scoped, tag = 'output window, operand 1, single buffered']
    %13 = vsyncpa [#allocation5], 0
    %14 = vsyncpa [#allocation8], 0
    %15 = vsyncpa [#allocation6], 0
    // Predicated region
    $region2: #{forward.1} parent=1 // pred_check
      _
    $region3: #{forward.1} parent=1 // pred_check_branch
      %17 = sbr.rel (0) target = $region5
    $region4: #{forward.1} parent=1 // pred_region
      _
    $region5: #{forward.1} parent=1 // pred_fallthru
      _
    // Predicated region
    $region6: #{forward.1} parent=1 // pred_check
      _
    $region7: #{forward.1} parent=1 // pred_check_branch
      %19 = sbr.rel (0) target = $region9
    $region8: #{forward.1} parent=1 // pred_region
      _
    $region9: #{forward.1} parent=1 // pred_fallthru
      _
    // Predicated region
    $region10: #{forward.1} parent=1 // pred_check
      _
    $region11: #{forward.1} parent=1 // pred_check_branch
      %21 = sbr.rel (0) target = $region13
    $region12: #{forward.1} parent=1 // pred_region
      _
    $region13: #{forward.1} parent=1 // pred_fallthru
      _
    // Predicated region
    $region14: #{forward.1} parent=1 // pred_check
      _
    $region15: #{forward.1} parent=1 // pred_check_branch
      %23 = sbr.rel (0) target = $region17
    $region16: #{forward.1} parent=1 // pred_region
      _
    $region17: #{forward.1} parent=1 // pred_fallthru
      _
    // Predicated region
    $region18: #{forward.1} parent=1 // pred_check
      _
    $region19: #{forward.1} parent=1 // pred_check_branch
      %25 = sbr.rel (0) target = $region21
    $region20: #{forward.1} parent=1 // pred_region
      %s27 = ssub.s32 6144, 6144
      %28 = vsyncadd [#allocation5], %s27
      %s29 = sshll.u32 [#allocation4], 4
      %s30 = int_to_ptr.vmem [resolvable:$true] %s29
      %35 = dma.hbm_to_vmem [thread:$0]  %s4, 6144, %s30, [#allocation5], 192, 192, 12
    $region21: #{forward.1} parent=1 // pred_fallthru
      _
    // Predicated region
    $region22: #{forward.1} parent=1 // pred_check
      _
    $region23: #{forward.1} parent=1 // pred_check_branch
      %37 = sbr.rel (0) target = $region25
    $region24: #{forward.1} parent=1 // pred_region
      %s39 = ssub.s32 2048, 2048
      %40 = vsyncadd [#allocation8], %s39
      %s41 = sshll.u32 [#allocation7], 4
      %s42 = int_to_ptr.vmem [resolvable:$true] %s41
      %47 = dma.hbm_to_vmem [thread:$0]  %s5, 2048, %s42, [#allocation8], 64, 64, 4
    $region25: #{forward.1} parent=1 // pred_fallthru
      _
    // Predicated region
    $region26: #{forward.1} parent=1 // pred_check
      _
    $region27: #{forward.1} parent=1 // pred_check_branch
      %49 = sbr.rel (0) target = $region29
    $region28: #{forward.1} parent=1 // pred_region
      %50 = dma.done [#allocation5], 6144
    $region29: #{forward.1} parent=1 // pred_fallthru
      _
    // Predicated region
    $region30: #{forward.1} parent=1 // pred_check
      _
    $region31: #{forward.1} parent=1 // pred_check_branch
      %52 = sbr.rel (0) target = $region33
    $region32: #{forward.1} parent=1 // pred_region
      %53 = dma.done [#allocation8], 2048
    $region33: #{forward.1} parent=1 // pred_fallthru
      _
    %v55 = vld [vmem:[%s2] sm:$0xf]
    %v56 = vld [vmem:[%s2 + $0x4] sm:$0xf]
    %v57 = vld [vmem:[%s2 + $0x8] sm:$0xf]
    %v58 = vld [vmem:[%s2 + $0xc] sm:$0xf]
    %v59 = vld [vmem:[%s2 + $0x10] sm:$0xf]
    %v60 = vld [vmem:[%s2 + $0x14] sm:$0xf]
    %v61 = vld [vmem:[%s2 + $0x18] sm:$0xf]
    %v62 = vld [vmem:[%s2 + $0x1c] sm:$0xf]
    %v63 = vld [vmem:[%s2 + $0x20] sm:$0xf]
    %v64 = vld [vmem:[%s2 + $0x24] sm:$0xf]
    %v65 = vld [vmem:[%s2 + $0x28] sm:$0xf]
    %v66 = vld [vmem:[%s2 + $0x2c] sm:$0xf]
    %v67 = vld [vmem:[%s2 + $0x30] sm:$0xf]
    %v68 = vld [vmem:[%s2 + $0x34] sm:$0xf]
    %v69 = vld [vmem:[%s2 + $0x38] sm:$0xf]
    %v70 = vld [vmem:[%s2 + $0x3c] sm:$0xf]
    %v71 = vld [vmem:[%s2 + $0x40] sm:$0xf]
    %v72 = vld [vmem:[%s2 + $0x44] sm:$0xf]
    %v73 = vld [vmem:[%s2 + $0x48] sm:$0xf]
    %v74 = vld [vmem:[%s2 + $0x4c] sm:$0xf]
    %v75 = vld [vmem:[%s2 + $0x50] sm:$0xf]
    %v76 = vld [vmem:[%s2 + $0x54] sm:$0xf]
    %v77 = vld [vmem:[%s2 + $0x58] sm:$0xf]
    %v78 = vld [vmem:[%s2 + $0x5c] sm:$0xf]
    %v79 = vld [vmem:[%s2 + $0x60] sm:$0xf]
    %v80 = vld [vmem:[%s2 + $0x64] sm:$0xf]
    %v81 = vld [vmem:[%s2 + $0x68] sm:$0xf]
    %v82 = vld [vmem:[%s2 + $0x6c] sm:$0xf]
    %v83 = vld [vmem:[%s2 + $0x70] sm:$0xf]
    %v84 = vld [vmem:[%s2 + $0x74] sm:$0xf]
    %v85 = vld [vmem:[%s2 + $0x78] sm:$0xf]
    %v86 = vld [vmem:[%s2 + $0x7c] sm:$0xf]
    %v87 = vld [vmem:[%s0] sm:$0xff]
    %v88 = vld [vmem:[%s0 + $0x8] sm:$0xff]
    %v89 = vld [vmem:[%s0 + $0x10] sm:$0xff]
    %v90 = vld [vmem:[%s0 + $0x18] sm:$0xff]
    %v91 = vld [vmem:[%s0 + $0x20] sm:$0xff]
    %v92 = vld [vmem:[%s0 + $0x28] sm:$0xff]
    %v93 = vld [vmem:[%s0 + $0x30] sm:$0xff]
    %v94 = vld [vmem:[%s0 + $0x38] sm:$0xff]
    %v95 = vlaneseq
    %v96 = vand.u32 %v95, 127
    %v97 = vadd.s32 %v96, 128
    %98 = vset.pattern.permute.xlu0 0
    %99 = vperm.xlu0 %98, %v87
    %v100 = vpop.permute.xlu0 %99
    %101 = vset.pattern.permute.xlu0 0
    %102 = vperm.xlu0 %101, %v88
    %v103 = vpop.permute.xlu0 %102
    %104 = vset.pattern.permute.xlu0 0
    %105 = vperm.xlu0 %104, %v89
    %v106 = vpop.permute.xlu0 %105
    %107 = vset.pattern.permute.xlu0 0
    %108 = vperm.xlu0 %107, %v90
    %v109 = vpop.permute.xlu0 %108
    %110 = vset.pattern.permute.xlu0 0
    %111 = vperm.xlu0 %110, %v91
    %v112 = vpop.permute.xlu0 %111
    %113 = vset.pattern.permute.xlu0 0
    %114 = vperm.xlu0 %113, %v92
    %v115 = vpop.permute.xlu0 %114
    %116 = vset.pattern.permute.xlu0 0
    %117 = vperm.xlu0 %116, %v93
    %v118 = vpop.permute.xlu0 %117
    %119 = vset.pattern.permute.xlu0 0
    %120 = vperm.xlu0 %119, %v94
    %v121 = vpop.permute.xlu0 %120
    %vm122 = vcmp.eq.s32.totalorder %v96, %v100
    %vm123 = vcmp.eq.s32.totalorder %v97, %v100
    %vm124 = vcmp.eq.s32.totalorder %v96, %v103
    %vm125 = vcmp.eq.s32.totalorder %v97, %v103
    %vm126 = vcmp.eq.s32.totalorder %v96, %v106
    %vm127 = vcmp.eq.s32.totalorder %v97, %v106
    %vm128 = vcmp.eq.s32.totalorder %v96, %v109
    %vm129 = vcmp.eq.s32.totalorder %v97, %v109
    %vm130 = vcmp.eq.s32.totalorder %v96, %v112
    %vm131 = vcmp.eq.s32.totalorder %v97, %v112
    %vm132 = vcmp.eq.s32.totalorder %v96, %v115
    %vm133 = vcmp.eq.s32.totalorder %v97, %v115
    %vm134 = vcmp.eq.s32.totalorder %v96, %v118
    %vm135 = vcmp.eq.s32.totalorder %v97, %v118
    %vm136 = vcmp.eq.s32.totalorder %v96, %v121
    %vm137 = vcmp.eq.s32.totalorder %v97, %v121
    %v138 = vsel %vm122, 1.0, 0.0
    %v139 = vsel %vm123, 1.0, 0.0
    %v140 = vsel %vm124, 1.0, 0.0
    %v141 = vsel %vm125, 1.0, 0.0
    %v142 = vsel %vm126, 1.0, 0.0
    %v143 = vsel %vm127, 1.0, 0.0
    %v144 = vsel %vm128, 1.0, 0.0
    %v145 = vsel %vm129, 1.0, 0.0
    %v146 = vsel %vm130, 1.0, 0.0
    %v147 = vsel %vm131, 1.0, 0.0
    %v148 = vsel %vm132, 1.0, 0.0
    %v149 = vsel %vm133, 1.0, 0.0
    %v150 = vsel %vm134, 1.0, 0.0
    %v151 = vsel %vm135, 1.0, 0.0
    %v152 = vsel %vm136, 1.0, 0.0
    %v153 = vsel %vm137, 1.0, 0.0
    %v154 = vpack.c.bf16 %v140, %v138
    %v155 = vpack.c.bf16 %v141, %v139
    %v156 = vpack.c.bf16 %v144, %v142
    %v157 = vpack.c.bf16 %v145, %v143
    %v158 = vpack.c.bf16 %v148, %v146
    %v159 = vpack.c.bf16 %v149, %v147
    %v160 = vpack.c.bf16 %v152, %v150
    %v161 = vpack.c.bf16 %v153, %v151
    %v194 = vunpack.c.l.b16 %v55
    %v195 = vunpack.c.l.b16 %v56
    %v196 = vunpack.c.l.b16 %v57
    %v197 = vunpack.c.l.b16 %v58
    %v198 = vunpack.c.l.b16 %v59
    %v199 = vunpack.c.l.b16 %v60
    %v200 = vunpack.c.l.b16 %v61
    %v201 = vunpack.c.l.b16 %v62
    %v202 = vunpack.c.l.b16 %v63
    %v203 = vunpack.c.l.b16 %v64
    %v204 = vunpack.c.l.b16 %v65
    %v205 = vunpack.c.l.b16 %v66
    %v206 = vunpack.c.l.b16 %v67
    %v207 = vunpack.c.l.b16 %v68
    %v208 = vunpack.c.l.b16 %v69
    %v209 = vunpack.c.l.b16 %v70
    %v210 = vunpack.c.l.b16 %v71
    %v211 = vunpack.c.l.b16 %v72
    %v212 = vunpack.c.l.b16 %v73
    %v213 = vunpack.c.l.b16 %v74
    %v214 = vunpack.c.l.b16 %v75
    %v215 = vunpack.c.l.b16 %v76
    %v216 = vunpack.c.l.b16 %v77
    %v217 = vunpack.c.l.b16 %v78
    %v218 = vunpack.c.l.b16 %v79
    %v219 = vunpack.c.l.b16 %v80
    %v220 = vunpack.c.l.b16 %v81
    %v221 = vunpack.c.l.b16 %v82
    %v222 = vunpack.c.l.b16 %v83
    %v223 = vunpack.c.l.b16 %v84
    %v224 = vunpack.c.l.b16 %v85
    %v225 = vunpack.c.l.b16 %v86
    %v226 = vpack.c.b16 %v195, %v194
    %v227 = vpack.c.b16 %v197, %v196
    %v228 = vpack.c.b16 %v199, %v198
    %v229 = vpack.c.b16 %v201, %v200
    %v230 = vpack.c.b16 %v203, %v202
    %v231 = vpack.c.b16 %v205, %v204
    %v232 = vpack.c.b16 %v207, %v206
    %v233 = vpack.c.b16 %v209, %v208
    %v234 = vpack.c.b16 %v211, %v210
    %v235 = vpack.c.b16 %v213, %v212
    %v236 = vpack.c.b16 %v215, %v214
    %v237 = vpack.c.b16 %v217, %v216
    %v238 = vpack.c.b16 %v219, %v218
    %v239 = vpack.c.b16 %v221, %v220
    %v240 = vpack.c.b16 %v223, %v222
    %v241 = vpack.c.b16 %v225, %v224
    %258 = vmatprep.subr.bf16.mxu0 0
    %259 = vmatpush1.bf16.msra.mxu0 %v226
    %260 = vmatprep.subr.bf16.mxu0 0
    %261 = vmatpush1.bf16.msra.mxu0 %v227
    %262 = vmatprep.subr.bf16.mxu0 0
    %263 = vmatpush1.bf16.msra.mxu0 %v228
    %264 = vmatprep.subr.bf16.mxu0 0
    %265 = vmatpush1.bf16.msra.mxu0 %v229
    %266 = vmatprep.subr.bf16.mxu0 0
    %267 = vmatpush1.bf16.msra.mxu0 %v230
    %268 = vmatprep.subr.bf16.mxu0 0
    %269 = vmatpush1.bf16.msra.mxu0 %v231
    %270 = vmatprep.subr.bf16.mxu0 0
    %271 = vmatpush1.bf16.msra.mxu0 %v232
    %272 = vmatprep.subr.bf16.mxu0 0
    %273 = vmatpush1.bf16.msra.mxu0 %v233
    %274 = vmatprep.subr.bf16.mxu0 0
    %275 = vmatpush1.bf16.msra.mxu0 %v234
    %276 = vmatprep.subr.bf16.mxu0 0
    %277 = vmatpush1.bf16.msra.mxu0 %v235
    %278 = vmatprep.subr.bf16.mxu0 0
    %279 = vmatpush1.bf16.msra.mxu0 %v236
    %280 = vmatprep.subr.bf16.mxu0 0
    %281 = vmatpush1.bf16.msra.mxu0 %v237
    %282 = vmatprep.subr.bf16.mxu0 0
    %283 = vmatpush1.bf16.msra.mxu0 %v238
    %284 = vmatprep.subr.bf16.mxu0 0
    %285 = vmatpush1.bf16.msra.mxu0 %v239
    %286 = vmatprep.subr.bf16.mxu0 0
    %287 = vmatpush1.bf16.msra.mxu0 %v240
    %288 = vmatprep.subr.bf16.mxu0 0
    %289 = vmatpush1.bf16.msra.mxu0 %v241
    %290 = vmatprep.mubr.bf16.mxu0 %v155
    %291 = vmatmul.mubr.bf16.gmra.mrb[0].mxu0 %v154
    %v292 = vpop.f32.mrb[0].mxu0
    %v293 = vadd.f32 0.0, %v292
    %v294 = vpop.f32.mrb[0].mxu0
    %v295 = vpop.f32.mrb[0].mxu0
    %v296 = vadd.f32 0.0, %v295
    %v297 = vpop.f32.mrb[0].mxu0
    %298 = vmatprep.mubr.bf16.mxu0 %v157
    %299 = vmatmul.mubr.bf16.gmra.mrb[0].mxu0 %v156
    %v300 = vpop.f32.mrb[0].mxu0
    %v301 = vadd.f32 0.0, %v300
    %v302 = vpop.f32.mrb[0].mxu0
    %v303 = vpop.f32.mrb[0].mxu0
    %v304 = vadd.f32 0.0, %v303
    %v305 = vpop.f32.mrb[0].mxu0
    %306 = vmatprep.mubr.bf16.mxu0 %v159
    %307 = vmatmul.mubr.bf16.gmra.mrb[0].mxu0 %v158
    %v308 = vpop.f32.mrb[0].mxu0
    %v309 = vadd.f32 0.0, %v308
    %v310 = vpop.f32.mrb[0].mxu0
    %v311 = vpop.f32.mrb[0].mxu0
    %v312 = vadd.f32 0.0, %v311
    %v313 = vpop.f32.mrb[0].mxu0
    %314 = vmatprep.mubr.bf16.mxu0 %v161
    %315 = vmatmul.mubr.bf16.gmra.mrb[0].mxu0 %v160
    %v316 = vpop.f32.mrb[0].mxu0
    %v317 = vadd.f32 0.0, %v316
    %v318 = vpop.f32.mrb[0].mxu0
    %v319 = vpop.f32.mrb[0].mxu0
    %v320 = vadd.f32 0.0, %v319
    %v321 = vpop.f32.mrb[0].mxu0
    %322 = vdwg.mxu0
    %v323 = vpack.c.bf16 %v296, %v293
    %v324 = vpack.c.bf16 %v304, %v301
    %v325 = vpack.c.bf16 %v312, %v309
    %v326 = vpack.c.bf16 %v320, %v317
    %v327 = vld [vmem:[%s3] sm:$0xf]
    %v328 = vld [vmem:[%s3 + $0x4] sm:$0xf]
    %v331 = vunpack.c.l.b16 %v327
    %v332 = vunpack.c.l.b16 %v328
    %v333 = vpack.c.b16 %v332, %v331
    %v335 = vadd.bf16 %v323, %v333
    %v336 = vadd.bf16 %v324, %v333
    %v337 = vlaneseq
    %v338 = vshrl.u32 %v337, 7
    %v339 = vadd.s32 %v338, 8
    %vm340 = vcmp.le.s32.totalorder %v96, %v338
    %vm341 = vcmp.le.s32.totalorder %v96, %v339
    %vm342 = vcmp.lt.s32.totalorder %v96, 9
    %vm343 = vmand %vm342, %vm340
    %vm344 = vmand %vm342, %vm341
    %vm345 = vcmp.ge.s32.totalorder %v96, 16
    %vm346 = vcmp.lt.s32.totalorder %v96, 20
    %vm347 = vmand %vm345, %vm346
    %vm348 = vmor %vm343, %vm347
    %vm349 = vmor %vm344, %vm347
    %v350 = vld [vmem:[#allocation4] sm:$0xff]
    %v351 = vld [vmem:[#allocation4 + $0x8] sm:$0xf]
    %v352 = vld [vmem:[#allocation4 + $0xc] sm:$0xff]
    %v353 = vld [vmem:[#allocation4 + $0x14] sm:$0xf]
    %v354 = vld [vmem:[#allocation4 + $0x18] sm:$0xff]
    %v355 = vld [vmem:[#allocation4 + $0x20] sm:$0xf]
    %v356 = vld [vmem:[#allocation4 + $0x24] sm:$0xff]
    %v357 = vld [vmem:[#allocation4 + $0x2c] sm:$0xf]
    %v358 = vld [vmem:[#allocation4 + $0x30] sm:$0xff]
    %v359 = vld [vmem:[#allocation4 + $0x38] sm:$0xf]
    %v360 = vld [vmem:[#allocation4 + $0x3c] sm:$0xff]
    %v361 = vld [vmem:[#allocation4 + $0x44] sm:$0xf]
    %v362 = vld [vmem:[#allocation4 + $0x48] sm:$0xff]
    %v363 = vld [vmem:[#allocation4 + $0x50] sm:$0xf]
    %v364 = vld [vmem:[#allocation4 + $0x54] sm:$0xff]
    %v365 = vld [vmem:[#allocation4 + $0x5c] sm:$0xf]
    %v366 = vld [vmem:[#allocation4 + $0x60] sm:$0xff]
    %v367 = vld [vmem:[#allocation4 + $0x68] sm:$0xf]
    %v368 = vld [vmem:[#allocation4 + $0x6c] sm:$0xff]
    %v369 = vld [vmem:[#allocation4 + $0x74] sm:$0xf]
    %v370 = vld [vmem:[#allocation4 + $0x78] sm:$0xff]
    %v371 = vld [vmem:[#allocation4 + $0x80] sm:$0xf]
    %v372 = vld [vmem:[#allocation4 + $0x84] sm:$0xff]
    %v373 = vld [vmem:[#allocation4 + $0x8c] sm:$0xf]
    %v374 = vld [vmem:[#allocation4 + $0x90] sm:$0xff]
    %v375 = vld [vmem:[#allocation4 + $0x98] sm:$0xf]
    %v376 = vld [vmem:[#allocation4 + $0x9c] sm:$0xff]
    %v377 = vld [vmem:[#allocation4 + $0xa4] sm:$0xf]
    %v378 = vld [vmem:[#allocation4 + $0xa8] sm:$0xff]
    %v379 = vld [vmem:[#allocation4 + $0xb0] sm:$0xf]
    %v380 = vld [vmem:[#allocation4 + $0xb4] sm:$0xff]
    %v381 = vld [vmem:[#allocation4 + $0xbc] sm:$0xf]
    %v414 = vunpack.c.l.b16 %v350
    %v415 = vunpack.c.h.b16 %v350
    %v416 = vunpack.c.l.b16 %v351
    %v417 = vunpack.c.l.b16 %v352
    %v418 = vunpack.c.h.b16 %v352
    %v419 = vunpack.c.l.b16 %v353
    %v420 = vunpack.c.l.b16 %v354
    %v421 = vunpack.c.h.b16 %v354
    %v422 = vunpack.c.l.b16 %v355
    %v423 = vunpack.c.l.b16 %v356
    %v424 = vunpack.c.h.b16 %v356
    %v425 = vunpack.c.l.b16 %v357
    %v426 = vunpack.c.l.b16 %v358
    %v427 = vunpack.c.h.b16 %v358
    %v428 = vunpack.c.l.b16 %v359
    %v429 = vunpack.c.l.b16 %v360
    %v430 = vunpack.c.h.b16 %v360
    %v431 = vunpack.c.l.b16 %v361
    %v432 = vunpack.c.l.b16 %v362
    %v433 = vunpack.c.h.b16 %v362
    %v434 = vunpack.c.l.b16 %v363
    %v435 = vunpack.c.l.b16 %v364
    %v436 = vunpack.c.h.b16 %v364
    %v437 = vunpack.c.l.b16 %v365
    %v438 = vunpack.c.l.b16 %v366
    %v439 = vunpack.c.h.b16 %v366
    %v440 = vunpack.c.l.b16 %v367
    %v441 = vunpack.c.l.b16 %v368
    %v442 = vunpack.c.h.b16 %v368
    %v443 = vunpack.c.l.b16 %v369
    %v444 = vunpack.c.l.b16 %v370
    %v445 = vunpack.c.h.b16 %v370
    %v446 = vunpack.c.l.b16 %v371
    %v447 = vunpack.c.l.b16 %v372
    %v448 = vunpack.c.h.b16 %v372
    %v449 = vunpack.c.l.b16 %v373
    %v450 = vunpack.c.l.b16 %v374
    %v451 = vunpack.c.h.b16 %v374
    %v452 = vunpack.c.l.b16 %v375
    %v453 = vunpack.c.l.b16 %v376
    %v454 = vunpack.c.h.b16 %v376
    %v455 = vunpack.c.l.b16 %v377
    %v456 = vunpack.c.l.b16 %v378
    %v457 = vunpack.c.h.b16 %v378
    %v458 = vunpack.c.l.b16 %v379
    %v459 = vunpack.c.l.b16 %v380
    %v460 = vunpack.c.h.b16 %v380
    %v461 = vunpack.c.l.b16 %v381
    %v462 = vpack.c.b16 %v417, %v414
    %v463 = vpack.c.b16 %v418, %v415
    %v464 = vpack.c.b16 %v419, %v416
    %v465 = vpack.c.b16 %v423, %v420
    %v466 = vpack.c.b16 %v424, %v421
    %v467 = vpack.c.b16 %v425, %v422
    %v468 = vpack.c.b16 %v429, %v426
    %v469 = vpack.c.b16 %v430, %v427
    %v470 = vpack.c.b16 %v431, %v428
    %v471 = vpack.c.b16 %v435, %v432
    %v472 = vpack.c.b16 %v436, %v433
    %v473 = vpack.c.b16 %v437, %v434
    %v474 = vpack.c.b16 %v441, %v438
    %v475 = vpack.c.b16 %v442, %v439
    %v476 = vpack.c.b16 %v443, %v440
    %v477 = vpack.c.b16 %v447, %v444
    %v478 = vpack.c.b16 %v448, %v445
    %v479 = vpack.c.b16 %v449, %v446
    %v480 = vpack.c.b16 %v453, %v450
    %v481 = vpack.c.b16 %v454, %v451
    %v482 = vpack.c.b16 %v455, %v452
    %v483 = vpack.c.b16 %v459, %v456
    %v484 = vpack.c.b16 %v460, %v457
    %v485 = vpack.c.b16 %v461, %v458
    %510 = vmatprep.subr.bf16.mxu0 %v463
    %511 = vmatpush1.bf16.msra.mxu0 %v462
    %512 = vmatprep.subr.bf16.mxu0 %v466
    %513 = vmatpush1.bf16.msra.mxu0 %v465
    %514 = vmatprep.subr.bf16.mxu0 %v469
    %515 = vmatpush1.bf16.msra.mxu0 %v468
    %516 = vmatprep.subr.bf16.mxu0 %v472
    %517 = vmatpush1.bf16.msra.mxu0 %v471
    %518 = vmatprep.subr.bf16.mxu0 %v475
    %519 = vmatpush1.bf16.msra.mxu0 %v474
    %520 = vmatprep.subr.bf16.mxu0 %v478
    %521 = vmatpush1.bf16.msra.mxu0 %v477
    %522 = vmatprep.subr.bf16.mxu0 %v481
    %523 = vmatpush1.bf16.msra.mxu0 %v480
    %524 = vmatprep.subr.bf16.mxu0 %v484
    %525 = vmatpush1.bf16.msra.mxu0 %v483
    %526 = vmatprep.subr.bf16.mxu0 0
    %527 = vmatpush1.bf16.msra.mxu0 0
    %528 = vmatprep.subr.bf16.mxu0 0
    %529 = vmatpush1.bf16.msra.mxu0 0
    %530 = vmatprep.subr.bf16.mxu0 0
    %531 = vmatpush1.bf16.msra.mxu0 0
    %532 = vmatprep.subr.bf16.mxu0 0
    %533 = vmatpush1.bf16.msra.mxu0 0
    %534 = vmatprep.subr.bf16.mxu0 0
    %535 = vmatpush1.bf16.msra.mxu0 0
    %536 = vmatprep.subr.bf16.mxu0 0
    %537 = vmatpush1.bf16.msra.mxu0 0
    %538 = vmatprep.subr.bf16.mxu0 0
    %539 = vmatpush1.bf16.msra.mxu0 0
    %540 = vmatprep.subr.bf16.mxu0 0
    %541 = vmatpush1.bf16.msra.mxu0 0
    %542 = vmatprep.mubr.bf16.mxu0 0
    %543 = vmatmul.mubr.bf16.gmra.mrb[0].mxu0 %v335
    %v544 = vpop.f32.mrb[0].mxu0
    %v545 = vadd.f32 0.0, %v544
    %v546 = vpop.f32.mrb[0].mxu0
    %v547 = vadd.f32 0.0, %v546
    %v548 = vpop.f32.mrb[0].mxu0
    %v549 = vadd.f32 0.0, %v548
    %v550 = vpop.f32.mrb[0].mxu0
    %v551 = vadd.f32 0.0, %v550
    %552 = vmatprep.mubr.bf16.mxu0 0
    %553 = vmatmul.mubr.bf16.gmra.mrb[0].mxu0 %v336
    %v554 = vpop.f32.mrb[0].mxu0
    %v555 = vadd.f32 0.0, %v554
    %v556 = vpop.f32.mrb[0].mxu0
    %v557 = vadd.f32 0.0, %v556
    %v558 = vpop.f32.mrb[0].mxu0
    %v559 = vadd.f32 0.0, %v558
    %v560 = vpop.f32.mrb[0].mxu0
    %v561 = vadd.f32 0.0, %v560
    %562 = vdwg.mxu0
    %563 = vmatprep.subr.bf16.mxu0 0
    %564 = vmatpush1.bf16.msra.mxu0 %v464
    %565 = vmatprep.subr.bf16.mxu0 0
    %566 = vmatpush1.bf16.msra.mxu0 %v467
    %567 = vmatprep.subr.bf16.mxu0 0
    %568 = vmatpush1.bf16.msra.mxu0 %v470
    %569 = vmatprep.subr.bf16.mxu0 0
    %570 = vmatpush1.bf16.msra.mxu0 %v473
    %571 = vmatprep.subr.bf16.mxu0 0
    %572 = vmatpush1.bf16.msra.mxu0 %v476
    %573 = vmatprep.subr.bf16.mxu0 0
    %574 = vmatpush1.bf16.msra.mxu0 %v479
    %575 = vmatprep.subr.bf16.mxu0 0
    %576 = vmatpush1.bf16.msra.mxu0 %v482
    %577 = vmatprep.subr.bf16.mxu0 0
    %578 = vmatpush1.bf16.msra.mxu0 %v485
    %579 = vmatprep.subr.bf16.mxu0 0
    %580 = vmatpush1.bf16.msra.mxu0 0
    %581 = vmatprep.subr.bf16.mxu0 0
    %582 = vmatpush1.bf16.msra.mxu0 0
    %583 = vmatprep.subr.bf16.mxu0 0
    %584 = vmatpush1.bf16.msra.mxu0 0
    %585 = vmatprep.subr.bf16.mxu0 0
    %586 = vmatpush1.bf16.msra.mxu0 0
    %587 = vmatprep.subr.bf16.mxu0 0
    %588 = vmatpush1.bf16.msra.mxu0 0
    %589 = vmatprep.subr.bf16.mxu0 0
    %590 = vmatpush1.bf16.msra.mxu0 0
    %591 = vmatprep.subr.bf16.mxu0 0
    %592 = vmatpush1.bf16.msra.mxu0 0
    %593 = vmatprep.subr.bf16.mxu0 0
    %594 = vmatpush1.bf16.msra.mxu0 0
    %595 = vmatprep.mubr.bf16.mxu0 0
    %596 = vmatmul.mubr.bf16.gmra.mrb[0].mxu0 %v335
    %v597 = vpop.f32.mrb[0].mxu0
    %v598 = vadd.f32 0.0, %v597
    %v599 = vpop.f32.mrb[0].mxu0
    %v600 = vpop.f32.mrb[0].mxu0
    %v601 = vadd.f32 0.0, %v600
    %v602 = vpop.f32.mrb[0].mxu0
    %603 = vmatprep.mubr.bf16.mxu0 0
    %604 = vmatmul.mubr.bf16.gmra.mrb[0].mxu0 %v336
    %v605 = vpop.f32.mrb[0].mxu0
    %v606 = vadd.f32 0.0, %v605
    %v607 = vpop.f32.mrb[0].mxu0
    %v608 = vpop.f32.mrb[0].mxu0
    %v609 = vadd.f32 0.0, %v608
    %v610 = vpop.f32.mrb[0].mxu0
    %611 = vdwg.mxu0
    %v612 = vpack.c.bf16 %v549, %v545
    %v613 = vpack.c.bf16 %v559, %v555
    %v614 = vpack.c.bf16 %v551, %v547
    %v615 = vpack.c.bf16 %v561, %v557
    %v616 = vpack.c.bf16 %v601, %v598
    %v617 = vpack.c.bf16 %v609, %v606
    %618 = vmatprep.subr.bf16.mxu0 0
    %619 = vmatpush1.bf16.xpose.msra.mxu0 %v614
    %620 = vmatprep.subr.bf16.mxu0 0
    %621 = vmatpush1.bf16.xpose.msra.mxu0 0
    %622 = vmatprep.subr.bf16.mxu0 0
    %623 = vmatpush1.bf16.xpose.msra.mxu0 0
    %624 = vmatprep.subr.bf16.mxu0 0
    %625 = vmatpush1.bf16.xpose.msra.mxu0 0
    %626 = vmatprep.subr.bf16.mxu0 0
    %627 = vmatpush1.bf16.xpose.msra.mxu0 0
    %628 = vmatprep.subr.bf16.mxu0 0
    %629 = vmatpush1.bf16.xpose.msra.mxu0 0
    %630 = vmatprep.subr.bf16.mxu0 0
    %631 = vmatpush1.bf16.xpose.msra.mxu0 0
    %632 = vmatprep.subr.bf16.mxu0 0
    %633 = vmatpush1.bf16.xpose.msra.mxu0 0
    %634 = vmatprep.subr.bf16.mxu0 0
    %635 = vmatpush1.bf16.xpose.msra.mxu0 0
    %636 = vmatprep.subr.bf16.mxu0 0
    %637 = vmatpush1.bf16.xpose.msra.mxu0 0
    %638 = vmatprep.subr.bf16.mxu0 0
    %639 = vmatpush1.bf16.xpose.msra.mxu0 0
    %640 = vmatprep.subr.bf16.mxu0 0
    %641 = vmatpush1.bf16.xpose.msra.mxu0 0
    %642 = vmatprep.subr.bf16.mxu0 0
    %643 = vmatpush1.bf16.xpose.msra.mxu0 0
    %644 = vmatprep.subr.bf16.mxu0 0
    %645 = vmatpush1.bf16.xpose.msra.mxu0 0
    %646 = vmatprep.subr.bf16.mxu0 0
    %647 = vmatpush1.bf16.xpose.msra.mxu0 0
    %648 = vmatprep.subr.bf16.mxu0 0
    %649 = vmatpush1.bf16.xpose.msra.mxu0 0
    %650 = vmatprep.mubr.bf16.mxu0 0
    %651 = vmatmul.mubr.bf16.gmra.mrb[0].mxu0 %v612
    %v652 = vpop.f32.mrb[0].mxu0
    %v653 = vadd.f32 0.0, %v652
    %v654 = vpop.f32.mrb[0].mxu0
    %v655 = vpop.f32.mrb[0].mxu0
    %v656 = vadd.f32 0.0, %v655
    %v657 = vpop.f32.mrb[0].mxu0
    %658 = vdwg.mxu0
    %659 = vmatprep.subr.bf16.mxu0 0
    %660 = vmatpush1.bf16.xpose.msra.mxu0 %v615
    %661 = vmatprep.subr.bf16.mxu0 0
    %662 = vmatpush1.bf16.xpose.msra.mxu0 0
    %663 = vmatprep.subr.bf16.mxu0 0
    %664 = vmatpush1.bf16.xpose.msra.mxu0 0
    %665 = vmatprep.subr.bf16.mxu0 0
    %666 = vmatpush1.bf16.xpose.msra.mxu0 0
    %667 = vmatprep.subr.bf16.mxu0 0
    %668 = vmatpush1.bf16.xpose.msra.mxu0 0
    %669 = vmatprep.subr.bf16.mxu0 0
    %670 = vmatpush1.bf16.xpose.msra.mxu0 0
    %671 = vmatprep.subr.bf16.mxu0 0
    %672 = vmatpush1.bf16.xpose.msra.mxu0 0
    %673 = vmatprep.subr.bf16.mxu0 0
    %674 = vmatpush1.bf16.xpose.msra.mxu0 0
    %675 = vmatprep.subr.bf16.mxu0 0
    %676 = vmatpush1.bf16.xpose.msra.mxu0 0
    %677 = vmatprep.subr.bf16.mxu0 0
    %678 = vmatpush1.bf16.xpose.msra.mxu0 0
    %679 = vmatprep.subr.bf16.mxu0 0
    %680 = vmatpush1.bf16.xpose.msra.mxu0 0
    %681 = vmatprep.subr.bf16.mxu0 0
    %682 = vmatpush1.bf16.xpose.msra.mxu0 0
    %683 = vmatprep.subr.bf16.mxu0 0
    %684 = vmatpush1.bf16.xpose.msra.mxu0 0
    %685 = vmatprep.subr.bf16.mxu0 0
    %686 = vmatpush1.bf16.xpose.msra.mxu0 0
    %687 = vmatprep.subr.bf16.mxu0 0
    %688 = vmatpush1.bf16.xpose.msra.mxu0 0
    %689 = vmatprep.subr.bf16.mxu0 0
    %690 = vmatpush1.bf16.xpose.msra.mxu0 0
    %691 = vmatprep.mubr.bf16.mxu0 0
    %692 = vmatmul.mubr.bf16.gmra.mrb[0].mxu0 %v613
    %v693 = vpop.f32.mrb[0].mxu0
    %v694 = vadd.f32 0.0, %v693
    %v695 = vpop.f32.mrb[0].mxu0
    %v696 = vpop.f32.mrb[0].mxu0
    %v697 = vadd.f32 0.0, %v696
    %v698 = vpop.f32.mrb[0].mxu0
    %699 = vdwg.mxu0
    %v700 = vmul.f32 %v653, 0.088388346
    %v701 = vmul.f32 %v656, 0.088388346
    %v702 = vmul.f32 %v694, 0.088388346
    %v703 = vmul.f32 %v697, 0.088388346
    %v704 = vsel %vm340, 1, 0
    %v705 = vsel %vm341, 1, 0
    %vm706 = vcmp.eq.s32.totalorder %v704, 1
    %vm707 = vcmp.eq.s32.totalorder %v705, 1
    %v708 = vsel %vm706, %v700, -1e+30
    %v709 = vsel %vm707, %v701, -1e+30
    %v710 = vsel %vm706, %v702, -1e+30
    %v711 = vsel %vm707, %v703, -1e+30
    %vm712 = vcmask 130048
    %v713 = vsel %vm712, %v708, -inf
    %714 = vmax.xlane.f32.xlu0 %v713
    %v715 = vpop.xlane.xlu0 %714
    %v716 = vsel %vm712, %v709, -inf
    %717 = vmax.xlane.f32.xlu0 %v716
    %v718 = vpop.xlane.xlu0 %717
    %v719 = vsel %vm712, %v710, -inf
    %720 = vmax.xlane.f32.xlu0 %v719
    %v721 = vpop.xlane.xlu0 %720
    %v722 = vsel %vm712, %v711, -inf
    %723 = vmax.xlane.f32.xlu0 %v722
    %v724 = vpop.xlane.xlu0 %723
    %v725 = vsub.f32 %v708, %v715
    %v726 = vsub.f32 %v709, %v718
    %v727 = vsub.f32 %v710, %v721
    %v728 = vsub.f32 %v711, %v724
    %v729 = vmul.f32 %v725, 1.442695
    %v730 = vpow.pop %v729
    %v731 = vmul.f32 %v726, 1.442695
    %v732 = vpow.pop %v731
    %v733 = vmul.f32 %v727, 1.442695
    %v734 = vpow.pop %v733
    %v735 = vmul.f32 %v728, 1.442695
    %v736 = vpow.pop %v735
    %v737 = vsel %vm712, %v730, 0.0
    %738 = vadd.xlane.f32.xlu0 %v737
    %v739 = vpop.xlane.xlu0 %738
    %v740 = vsel %vm712, %v732, 0.0
    %741 = vadd.xlane.f32.xlu0 %v740
    %v742 = vpop.xlane.xlu0 %741
    %v743 = vsel %vm712, %v734, 0.0
    %744 = vadd.xlane.f32.xlu0 %v743
    %v745 = vpop.xlane.xlu0 %744
    %v746 = vsel %vm712, %v736, 0.0
    %747 = vadd.xlane.f32.xlu0 %v746
    %v748 = vpop.xlane.xlu0 %747
    %v749 = vrcp.pop %v739
    %v750 = vrcp.pop %v742
    %v751 = vrcp.pop %v745
    %v752 = vrcp.pop %v748
    %v753 = vmul.f32 %v730, %v749
    %v754 = vmul.f32 %v732, %v750
    %v755 = vmul.f32 %v734, %v751
    %v756 = vmul.f32 %v736, %v752
    %v757 = vpack.c.bf16 %v754, %v753
    %v758 = vpack.c.bf16 %v756, %v755
    %v760 = vsel %vm712, %v757, 0
    %762 = vmatprep.subr.bf16.mxu0 0
    %763 = vmatpush1.bf16.msra.mxu0 %v616
    %764 = vmatprep.subr.bf16.mxu0 0
    %765 = vmatpush1.bf16.msra.mxu0 0
    %766 = vmatprep.subr.bf16.mxu0 0
    %767 = vmatpush1.bf16.msra.mxu0 0
    %768 = vmatprep.subr.bf16.mxu0 0
    %769 = vmatpush1.bf16.msra.mxu0 0
    %770 = vmatprep.subr.bf16.mxu0 0
    %771 = vmatpush1.bf16.msra.mxu0 0
    %772 = vmatprep.subr.bf16.mxu0 0
    %773 = vmatpush1.bf16.msra.mxu0 0
    %774 = vmatprep.subr.bf16.mxu0 0
    %775 = vmatpush1.bf16.msra.mxu0 0
    %776 = vmatprep.subr.bf16.mxu0 0
    %777 = vmatpush1.bf16.msra.mxu0 0
    %778 = vmatprep.subr.bf16.mxu0 0
    %779 = vmatpush1.bf16.msra.mxu0 0
    %780 = vmatprep.subr.bf16.mxu0 0
    %781 = vmatpush1.bf16.msra.mxu0 0
    %782 = vmatprep.subr.bf16.mxu0 0
    %783 = vmatpush1.bf16.msra.mxu0 0
    %784 = vmatprep.subr.bf16.mxu0 0
    %785 = vmatpush1.bf16.msra.mxu0 0
    %786 = vmatprep.subr.bf16.mxu0 0
    %787 = vmatpush1.bf16.msra.mxu0 0
    %788 = vmatprep.subr.bf16.mxu0 0
    %789 = vmatpush1.bf16.msra.mxu0 0
    %790 = vmatprep.subr.bf16.mxu0 0
    %791 = vmatpush1.bf16.msra.mxu0 0
    %792 = vmatprep.subr.bf16.mxu0 0
    %793 = vmatpush1.bf16.msra.mxu0 0
    %794 = vmatprep.mubr.bf16.mxu0 0
    %795 = vmatmul.mubr.bf16.gmra.mrb[0].mxu0 %v760
    %v796 = vpop.f32.mrb[0].mxu0
    %v797 = vadd.f32 0.0, %v796
    %v798 = vpop.f32.mrb[0].mxu0
    %v799 = vpop.f32.mrb[0].mxu0
    %v800 = vadd.f32 0.0, %v799
    %v801 = vpop.f32.mrb[0].mxu0
    %802 = vdwg.mxu0
    %v804 = vsel %vm712, %v758, 0
    %806 = vmatprep.subr.bf16.mxu0 0
    %807 = vmatpush1.bf16.msra.mxu0 %v617
    %808 = vmatprep.subr.bf16.mxu0 0
    %809 = vmatpush1.bf16.msra.mxu0 0
    %810 = vmatprep.subr.bf16.mxu0 0
    %811 = vmatpush1.bf16.msra.mxu0 0
    %812 = vmatprep.subr.bf16.mxu0 0
    %813 = vmatpush1.bf16.msra.mxu0 0
    %814 = vmatprep.subr.bf16.mxu0 0
    %815 = vmatpush1.bf16.msra.mxu0 0
    %816 = vmatprep.subr.bf16.mxu0 0
    %817 = vmatpush1.bf16.msra.mxu0 0
    %818 = vmatprep.subr.bf16.mxu0 0
    %819 = vmatpush1.bf16.msra.mxu0 0
    %820 = vmatprep.subr.bf16.mxu0 0
    %821 = vmatpush1.bf16.msra.mxu0 0
    %822 = vmatprep.subr.bf16.mxu0 0
    %823 = vmatpush1.bf16.msra.mxu0 0
    %824 = vmatprep.subr.bf16.mxu0 0
    %825 = vmatpush1.bf16.msra.mxu0 0
    %826 = vmatprep.subr.bf16.mxu0 0
    %827 = vmatpush1.bf16.msra.mxu0 0
    %828 = vmatprep.subr.bf16.mxu0 0
    %829 = vmatpush1.bf16.msra.mxu0 0
    %830 = vmatprep.subr.bf16.mxu0 0
    %831 = vmatpush1.bf16.msra.mxu0 0
    %832 = vmatprep.subr.bf16.mxu0 0
    %833 = vmatpush1.bf16.msra.mxu0 0
    %834 = vmatprep.subr.bf16.mxu0 0
    %835 = vmatpush1.bf16.msra.mxu0 0
    %836 = vmatprep.subr.bf16.mxu0 0
    %837 = vmatpush1.bf16.msra.mxu0 0
    %838 = vmatprep.mubr.bf16.mxu0 0
    %839 = vmatmul.mubr.bf16.gmra.mrb[0].mxu0 %v804
    %v840 = vpop.f32.mrb[0].mxu0
    %v841 = vadd.f32 0.0, %v840
    %v842 = vpop.f32.mrb[0].mxu0
    %v843 = vpop.f32.mrb[0].mxu0
    %v844 = vadd.f32 0.0, %v843
    %v845 = vpop.f32.mrb[0].mxu0
    %846 = vdwg.mxu0
    %v847 = vpack.c.bf16 %v800, %v797
    %v848 = vpack.c.bf16 %v844, %v841
    %v849 = vld [vmem:[#allocation7] sm:$0xf]
    %v850 = vld [vmem:[#allocation7 + $0x4] sm:$0xf]
    %v851 = vld [vmem:[#allocation7 + $0x8] sm:$0xf]
    %v852 = vld [vmem:[#allocation7 + $0xc] sm:$0xf]
    %v853 = vld [vmem:[#allocation7 + $0x10] sm:$0xf]
    %v854 = vld [vmem:[#allocation7 + $0x14] sm:$0xf]
    %v855 = vld [vmem:[#allocation7 + $0x18] sm:$0xf]
    %v856 = vld [vmem:[#allocation7 + $0x1c] sm:$0xf]
    %v857 = vld [vmem:[#allocation7 + $0x20] sm:$0xf]
    %v858 = vld [vmem:[#allocation7 + $0x24] sm:$0xf]
    %v859 = vld [vmem:[#allocation7 + $0x28] sm:$0xf]
    %v860 = vld [vmem:[#allocation7 + $0x2c] sm:$0xf]
    %v861 = vld [vmem:[#allocation7 + $0x30] sm:$0xf]
    %v862 = vld [vmem:[#allocation7 + $0x34] sm:$0xf]
    %v863 = vld [vmem:[#allocation7 + $0x38] sm:$0xf]
    %v864 = vld [vmem:[#allocation7 + $0x3c] sm:$0xf]
    %v881 = vunpack.c.l.b16 %v849
    %v882 = vunpack.c.l.b16 %v850
    %v883 = vunpack.c.l.b16 %v851
    %v884 = vunpack.c.l.b16 %v852
    %v885 = vunpack.c.l.b16 %v853
    %v886 = vunpack.c.l.b16 %v854
    %v887 = vunpack.c.l.b16 %v855
    %v888 = vunpack.c.l.b16 %v856
    %v889 = vunpack.c.l.b16 %v857
    %v890 = vunpack.c.l.b16 %v858
    %v891 = vunpack.c.l.b16 %v859
    %v892 = vunpack.c.l.b16 %v860
    %v893 = vunpack.c.l.b16 %v861
    %v894 = vunpack.c.l.b16 %v862
    %v895 = vunpack.c.l.b16 %v863
    %v896 = vunpack.c.l.b16 %v864
    %v897 = vpack.c.b16 %v882, %v881
    %v898 = vpack.c.b16 %v884, %v883
    %v899 = vpack.c.b16 %v886, %v885
    %v900 = vpack.c.b16 %v888, %v887
    %v901 = vpack.c.b16 %v890, %v889
    %v902 = vpack.c.b16 %v892, %v891
    %v903 = vpack.c.b16 %v894, %v893
    %v904 = vpack.c.b16 %v896, %v895
    %913 = vmatprep.subr.bf16.mxu0 0
    %914 = vmatpush1.bf16.msra.mxu0 %v897
    %915 = vmatprep.subr.bf16.mxu0 0
    %916 = vmatpush1.bf16.msra.mxu0 %v898
    %917 = vmatprep.subr.bf16.mxu0 0
    %918 = vmatpush1.bf16.msra.mxu0 %v899
    %919 = vmatprep.subr.bf16.mxu0 0
    %920 = vmatpush1.bf16.msra.mxu0 %v900
    %921 = vmatprep.subr.bf16.mxu0 0
    %922 = vmatpush1.bf16.msra.mxu0 %v901
    %923 = vmatprep.subr.bf16.mxu0 0
    %924 = vmatpush1.bf16.msra.mxu0 %v902
    %925 = vmatprep.subr.bf16.mxu0 0
    %926 = vmatpush1.bf16.msra.mxu0 %v903
    %927 = vmatprep.subr.bf16.mxu0 0
    %928 = vmatpush1.bf16.msra.mxu0 %v904
    %929 = vmatprep.subr.bf16.mxu0 0
    %930 = vmatpush1.bf16.msra.mxu0 0
    %931 = vmatprep.subr.bf16.mxu0 0
    %932 = vmatpush1.bf16.msra.mxu0 0
    %933 = vmatprep.subr.bf16.mxu0 0
    %934 = vmatpush1.bf16.msra.mxu0 0
    %935 = vmatprep.subr.bf16.mxu0 0
    %936 = vmatpush1.bf16.msra.mxu0 0
    %937 = vmatprep.subr.bf16.mxu0 0
    %938 = vmatpush1.bf16.msra.mxu0 0
    %939 = vmatprep.subr.bf16.mxu0 0
    %940 = vmatpush1.bf16.msra.mxu0 0
    %941 = vmatprep.subr.bf16.mxu0 0
    %942 = vmatpush1.bf16.msra.mxu0 0
    %943 = vmatprep.subr.bf16.mxu0 0
    %944 = vmatpush1.bf16.msra.mxu0 0
    %945 = vmatprep.mubr.bf16.mxu0 0
    %946 = vmatmul.mubr.bf16.gmra.mrb[0].mxu0 %v847
    %v947 = vpop.f32.mrb[0].mxu0
    %v948 = vadd.f32 0.0, %v947
    %v949 = vpop.f32.mrb[0].mxu0
    %v950 = vpop.f32.mrb[0].mxu0
    %v951 = vadd.f32 0.0, %v950
    %v952 = vpop.f32.mrb[0].mxu0
    %953 = vmatprep.mubr.bf16.mxu0 0
    %954 = vmatmul.mubr.bf16.gmra.mrb[0].mxu0 %v848
    %v955 = vpop.f32.mrb[0].mxu0
    %v956 = vadd.f32 0.0, %v955
    %v957 = vpop.f32.mrb[0].mxu0
    %v958 = vpop.f32.mrb[0].mxu0
    %v959 = vadd.f32 0.0, %v958
    %v960 = vpop.f32.mrb[0].mxu0
    %961 = vdwg.mxu0
    %v962 = vpack.c.bf16 %v951, %v948
    %v963 = vpack.c.bf16 %v959, %v956
    %v964 = vadd.bf16 %v335, %v962
    %v965 = vadd.bf16 %v336, %v963
    %v968 = vunpack.c.h.b16 %v614
    %v969 = vunpack.c.h.b16 %v615
    %v970 = vpack.c.b16 %v968, %v968
    %v971 = vpack.c.b16 %v969, %v969
    %974 = vst [vmem:[#allocation2 + $0x8] sm:$0xf] %v970
    %975 = vst [vmem:[#allocation2 + $0x14] sm:$0xf] %v971
    %v978 = vunpack.c.h.b16 %v616
    %v979 = vunpack.c.h.b16 %v617
    %v980 = vpack.c.b16 %v978, %v978
    %v981 = vpack.c.b16 %v979, %v979
    %984 = vst [vmem:[#allocation3 + $0x8] sm:$0xf] %v980
    %985 = vst [vmem:[#allocation3 + $0x14] sm:$0xf] %v981
    %s986 = scalar_lea.vmem [#allocation4], 192
    %v987 = vld [vmem:[%s986] sm:$0xff]
    %v988 = vld [vmem:[%s986 + $0x8] sm:$0xf]
    %v989 = vld [vmem:[%s986 + $0xc] sm:$0xff]
    %v990 = vld [vmem:[%s986 + $0x14] sm:$0xf]
    %v991 = vld [vmem:[%s986 + $0x18] sm:$0xff]
    %v992 = vld [vmem:[%s986 + $0x20] sm:$0xf]
    %v993 = vld [vmem:[%s986 + $0x24] sm:$0xff]
    %v994 = vld [vmem:[%s986 + $0x2c] sm:$0xf]
    %v995 = vld [vmem:[%s986 + $0x30] sm:$0xff]
    %v996 = vld [vmem:[%s986 + $0x38] sm:$0xf]
    %v997 = vld [vmem:[%s986 + $0x3c] sm:$0xff]
    %v998 = vld [vmem:[%s986 + $0x44] sm:$0xf]
    %v999 = vld [vmem:[%s986 + $0x48] sm:$0xff]
    %v1000 = vld [vmem:[%s986 + $0x50] sm:$0xf]
    %v1001 = vld [vmem:[%s986 + $0x54] sm:$0xff]
    %v1002 = vld [vmem:[%s986 + $0x5c] sm:$0xf]
    %v1003 = vld [vmem:[%s986 + $0x60] sm:$0xff]
    %v1004 = vld [vmem:[%s986 + $0x68] sm:$0xf]
    %v1005 = vld [vmem:[%s986 + $0x6c] sm:$0xff]
    %v1006 = vld [vmem:[%s986 + $0x74] sm:$0xf]
    %v1007 = vld [vmem:[%s986 + $0x78] sm:$0xff]
    %v1008 = vld [vmem:[%s986 + $0x80] sm:$0xf]
    %v1009 = vld [vmem:[%s986 + $0x84] sm:$0xff]
    %v1010 = vld [vmem:[%s986 + $0x8c] sm:$0xf]
    %v1011 = vld [vmem:[%s986 + $0x90] sm:$0xff]
    %v1012 = vld [vmem:[%s986 + $0x98] sm:$0xf]
    %v1013 = vld [vmem:[%s986 + $0x9c] sm:$0xff]
    %v1014 = vld [vmem:[%s986 + $0xa4] sm:$0xf]
    %v1015 = vld [vmem:[%s986 + $0xa8] sm:$0xff]
    %v1016 = vld [vmem:[%s986 + $0xb0] sm:$0xf]
    %v1017 = vld [vmem:[%s986 + $0xb4] sm:$0xff]
    %v1018 = vld [vmem:[%s986 + $0xbc] sm:$0xf]
    %v1051 = vunpack.c.l.b16 %v987
    %v1052 = vunpack.c.h.b16 %v987
    %v1053 = vunpack.c.l.b16 %v988
    %v1054 = vunpack.c.l.b16 %v989
    %v1055 = vunpack.c.h.b16 %v989
    %v1056 = vunpack.c.l.b16 %v990
    %v1057 = vunpack.c.l.b16 %v991
    %v1058 = vunpack.c.h.b16 %v991
    %v1059 = vunpack.c.l.b16 %v992
    %v1060 = vunpack.c.l.b16 %v993
    %v1061 = vunpack.c.h.b16 %v993
    %v1062 = vunpack.c.l.b16 %v994
    %v1063 = vunpack.c.l.b16 %v995
    %v1064 = vunpack.c.h.b16 %v995
    %v1065 = vunpack.c.l.b16 %v996
    %v1066 = vunpack.c.l.b16 %v997
    %v1067 = vunpack.c.h.b16 %v997
    %v1068 = vunpack.c.l.b16 %v998
    %v1069 = vunpack.c.l.b16 %v999
    %v1070 = vunpack.c.h.b16 %v999
    %v1071 = vunpack.c.l.b16 %v1000
    %v1072 = vunpack.c.l.b16 %v1001
    %v1073 = vunpack.c.h.b16 %v1001
    %v1074 = vunpack.c.l.b16 %v1002
    %v1075 = vunpack.c.l.b16 %v1003
    %v1076 = vunpack.c.h.b16 %v1003
    %v1077 = vunpack.c.l.b16 %v1004
    %v1078 = vunpack.c.l.b16 %v1005
    %v1079 = vunpack.c.h.b16 %v1005
    %v1080 = vunpack.c.l.b16 %v1006
    %v1081 = vunpack.c.l.b16 %v1007
    %v1082 = vunpack.c.h.b16 %v1007
    %v1083 = vunpack.c.l.b16 %v1008
    %v1084 = vunpack.c.l.b16 %v1009
    %v1085 = vunpack.c.h.b16 %v1009
    %v1086 = vunpack.c.l.b16 %v1010
    %v1087 = vunpack.c.l.b16 %v1011
    %v1088 = vunpack.c.h.b16 %v1011
    %v1089 = vunpack.c.l.b16 %v1012
    %v1090 = vunpack.c.l.b16 %v1013
    %v1091 = vunpack.c.h.b16 %v1013
    %v1092 = vunpack.c.l.b16 %v1014
    %v1093 = vunpack.c.l.b16 %v1015
    %v1094 = vunpack.c.h.b16 %v1015
    %v1095 = vunpack.c.l.b16 %v1016
    %v1096 = vunpack.c.l.b16 %v1017
    %v1097 = vunpack.c.h.b16 %v1017
    %v1098 = vunpack.c.l.b16 %v1018
    %v1099 = vpack.c.b16 %v1054, %v1051
    %v1100 = vpack.c.b16 %v1055, %v1052
    %v1101 = vpack.c.b16 %v1056, %v1053
    %v1102 = vpack.c.b16 %v1060, %v1057
    %v1103 = vpack.c.b16 %v1061, %v1058
    %v1104 = vpack.c.b16 %v1062, %v1059
    %v1105 = vpack.c.b16 %v1066, %v1063
    %v1106 = vpack.c.b16 %v1067, %v1064
    %v1107 = vpack.c.b16 %v1068, %v1065
    %v1108 = vpack.c.b16 %v1072, %v1069
    %v1109 = vpack.c.b16 %v1073, %v1070
    %v1110 = vpack.c.b16 %v1074, %v1071
    %v1111 = vpack.c.b16 %v1078, %v1075
    %v1112 = vpack.c.b16 %v1079, %v1076
    %v1113 = vpack.c.b16 %v1080, %v1077
    %v1114 = vpack.c.b16 %v1084, %v1081
    %v1115 = vpack.c.b16 %v1085, %v1082
    %v1116 = vpack.c.b16 %v1086, %v1083
    %v1117 = vpack.c.b16 %v1090, %v1087
    %v1118 = vpack.c.b16 %v1091, %v1088
    %v1119 = vpack.c.b16 %v1092, %v1089
    %v1120 = vpack.c.b16 %v1096, %v1093
    %v1121 = vpack.c.b16 %v1097, %v1094
    %v1122 = vpack.c.b16 %v1098, %v1095
    %1147 = vmatprep.subr.bf16.mxu0 %v1100
    %1148 = vmatpush1.bf16.msra.mxu0 %v1099
    %1149 = vmatprep.subr.bf16.mxu0 %v1103
    %1150 = vmatpush1.bf16.msra.mxu0 %v1102
    %1151 = vmatprep.subr.bf16.mxu0 %v1106
    %1152 = vmatpush1.bf16.msra.mxu0 %v1105
    %1153 = vmatprep.subr.bf16.mxu0 %v1109
    %1154 = vmatpush1.bf16.msra.mxu0 %v1108
    %1155 = vmatprep.subr.bf16.mxu0 %v1112
    %1156 = vmatpush1.bf16.msra.mxu0 %v1111
    %1157 = vmatprep.subr.bf16.mxu0 %v1115
    %1158 = vmatpush1.bf16.msra.mxu0 %v1114
    %1159 = vmatprep.subr.bf16.mxu0 %v1118
    %1160 = vmatpush1.bf16.msra.mxu0 %v1117
    %1161 = vmatprep.subr.bf16.mxu0 %v1121
    %1162 = vmatpush1.bf16.msra.mxu0 %v1120
    %1163 = vmatprep.subr.bf16.mxu0 0
    %1164 = vmatpush1.bf16.msra.mxu0 0
    %1165 = vmatprep.subr.bf16.mxu0 0
    %1166 = vmatpush1.bf16.msra.mxu0 0
    %1167 = vmatprep.subr.bf16.mxu0 0
    %1168 = vmatpush1.bf16.msra.mxu0 0
    %1169 = vmatprep.subr.bf16.mxu0 0
    %1170 = vmatpush1.bf16.msra.mxu0 0
    %1171 = vmatprep.subr.bf16.mxu0 0
    %1172 = vmatpush1.bf16.msra.mxu0 0
    %1173 = vmatprep.subr.bf16.mxu0 0
    %1174 = vmatpush1.bf16.msra.mxu0 0
    %1175 = vmatprep.subr.bf16.mxu0 0
    %1176 = vmatpush1.bf16.msra.mxu0 0
    %1177 = vmatprep.subr.bf16.mxu0 0
    %1178 = vmatpush1.bf16.msra.mxu0 0
    %1179 = vmatprep.mubr.bf16.mxu0 0
    %1180 = vmatmul.mubr.bf16.gmra.mrb[0].mxu0 %v964
    %v1181 = vpop.f32.mrb[0].mxu0
    %v1182 = vpop.f32.mrb[0].mxu0
    %v1183 = vadd.f32 0.0, %v1182
    %v1184 = vpop.f32.mrb[0].mxu0
    %v1185 = vpop.f32.mrb[0].mxu0
    %v1186 = vadd.f32 0.0, %v1185
    %1187 = vmatprep.mubr.bf16.mxu0 0
    %1188 = vmatmul.mubr.bf16.gmra.mrb[0].mxu0 %v965
    %v1189 = vpop.f32.mrb[0].mxu0
    %v1190 = vpop.f32.mrb[0].mxu0
    %v1191 = vadd.f32 0.0, %v1190
    %v1192 = vpop.f32.mrb[0].mxu0
    %v1193 = vpop.f32.mrb[0].mxu0
    %v1194 = vadd.f32 0.0, %v1193
    %1195 = vdwg.mxu0
    %1196 = vmatprep.subr.bf16.mxu0 0
    %1197 = vmatpush1.bf16.msra.mxu0 %v1101
    %1198 = vmatprep.subr.bf16.mxu0 0
    %1199 = vmatpush1.bf16.msra.mxu0 %v1104
    %1200 = vmatprep.subr.bf16.mxu0 0
    %1201 = vmatpush1.bf16.msra.mxu0 %v1107
    %1202 = vmatprep.subr.bf16.mxu0 0
    %1203 = vmatpush1.bf16.msra.mxu0 %v1110
    %1204 = vmatprep.subr.bf16.mxu0 0
    %1205 = vmatpush1.bf16.msra.mxu0 %v1113
    %1206 = vmatprep.subr.bf16.mxu0 0
    %1207 = vmatpush1.bf16.msra.mxu0 %v1116
    %1208 = vmatprep.subr.bf16.mxu0 0
    %1209 = vmatpush1.bf16.msra.mxu0 %v1119
    %1210 = vmatprep.subr.bf16.mxu0 0
    %1211 = vmatpush1.bf16.msra.mxu0 %v1122
    %1212 = vmatprep.subr.bf16.mxu0 0
    %1213 = vmatpush1.bf16.msra.mxu0 0
    %1214 = vmatprep.subr.bf16.mxu0 0
    %1215 = vmatpush1.bf16.msra.mxu0 0
    %1216 = vmatprep.subr.bf16.mxu0 0
    %1217 = vmatpush1.bf16.msra.mxu0 0
    %1218 = vmatprep.subr.bf16.mxu0 0
    %1219 = vmatpush1.bf16.msra.mxu0 0
    %1220 = vmatprep.subr.bf16.mxu0 0
    %1221 = vmatpush1.bf16.msra.mxu0 0
    %1222 = vmatprep.subr.bf16.mxu0 0
    %1223 = vmatpush1.bf16.msra.mxu0 0
    %1224 = vmatprep.subr.bf16.mxu0 0
    %1225 = vmatpush1.bf16.msra.mxu0 0
    %1226 = vmatprep.subr.bf16.mxu0 0
    %1227 = vmatpush1.bf16.msra.mxu0 0
    %1228 = vmatprep.mubr.bf16.mxu0 0
    %1229 = vmatmul.mubr.bf16.gmra.mrb[0].mxu0 %v964
    %v1230 = vpop.f32.mrb[0].mxu0
    %v1231 = vadd.f32 0.0, %v1230
    %v1232 = vpop.f32.mrb[0].mxu0
    %v1233 = vpop.f32.mrb[0].mxu0
    %v1234 = vadd.f32 0.0, %v1233
    %v1235 = vpop.f32.mrb[0].mxu0
    %1236 = vmatprep.mubr.bf16.mxu0 0
    %1237 = vmatmul.mubr.bf16.gmra.mrb[0].mxu0 %v965
    %v1238 = vpop.f32.mrb[0].mxu0
    %v1239 = vadd.f32 0.0, %v1238
    %v1240 = vpop.f32.mrb[0].mxu0
    %v1241 = vpop.f32.mrb[0].mxu0
    %v1242 = vadd.f32 0.0, %v1241
    %v1243 = vpop.f32.mrb[0].mxu0
    %1244 = vdwg.mxu0
    %v1245 = vpack.c.bf16 %v1186, %v1183
    %v1246 = vpack.c.bf16 %v1194, %v1191
    %v1247 = vpack.c.bf16 %v1234, %v1231
    %v1248 = vpack.c.bf16 %v1242, %v1239
    %v1251 = vunpack.c.h.b16 %v1245
    %v1252 = vunpack.c.h.b16 %v1246
    %v1253 = vpack.c.b16 %v1251, %v1251
    %v1254 = vpack.c.b16 %v1252, %v1252
    %s1257 = scalar_lea.vmem [#allocation2], 24
    %1258 = vst [vmem:[%s1257 + $0x8] sm:$0xf] %v1253
    %1259 = vst [vmem:[%s1257 + $0x14] sm:$0xf] %v1254
    %v1262 = vunpack.c.h.b16 %v1247
    %v1263 = vunpack.c.h.b16 %v1248
    %v1264 = vpack.c.b16 %v1262, %v1262
    %v1265 = vpack.c.b16 %v1263, %v1263
    %s1268 = scalar_lea.vmem [#allocation3], 24
    %1269 = vst [vmem:[%s1268 + $0x8] sm:$0xf] %v1264
    %1270 = vst [vmem:[%s1268 + $0x14] sm:$0xf] %v1265
    %v1271 = vld [vmem:[#allocation4] sm:$0xff]
    %v1272 = vld [vmem:[#allocation4 + $0x8] sm:$0xf]
    %v1273 = vld [vmem:[#allocation4 + $0xc] sm:$0xff]
    %v1274 = vld [vmem:[#allocation4 + $0x14] sm:$0xf]
    %v1275 = vld [vmem:[#allocation4 + $0x18] sm:$0xff]
    %v1276 = vld [vmem:[#allocation4 + $0x20] sm:$0xf]
    %v1277 = vld [vmem:[#allocation4 + $0x24] sm:$0xff]
    %v1278 = vld [vmem:[#allocation4 + $0x2c] sm:$0xf]
    %v1279 = vld [vmem:[#allocation4 + $0x30] sm:$0xff]
    %v1280 = vld [vmem:[#allocation4 + $0x38] sm:$0xf]
    %v1281 = vld [vmem:[#allocation4 + $0x3c] sm:$0xff]
    %v1282 = vld [vmem:[#allocation4 + $0x44] sm:$0xf]
    %v1283 = vld [vmem:[#allocation4 + $0x48] sm:$0xff]
    %v1284 = vld [vmem:[#allocation4 + $0x50] sm:$0xf]
    %v1285 = vld [vmem:[#allocation4 + $0x54] sm:$0xff]
    %v1286 = vld [vmem:[#allocation4 + $0x5c] sm:$0xf]
    %v1287 = vld [vmem:[#allocation4 + $0x60] sm:$0xff]
    %v1288 = vld [vmem:[#allocation4 + $0x68] sm:$0xf]
    %v1289 = vld [vmem:[#allocation4 + $0x6c] sm:$0xff]
    %v1290 = vld [vmem:[#allocation4 + $0x74] sm:$0xf]
    %v1291 = vld [vmem:[#allocation4 + $0x78] sm:$0xff]
    %v1292 = vld [vmem:[#allocation4 + $0x80] sm:$0xf]
    %v1293 = vld [vmem:[#allocation4 + $0x84] sm:$0xff]
    %v1294 = vld [vmem:[#allocation4 + $0x8c] sm:$0xf]
    %v1295 = vld [vmem:[#allocation4 + $0x90] sm:$0xff]
    %v1296 = vld [vmem:[#allocation4 + $0x98] sm:$0xf]
    %v1297 = vld [vmem:[#allocation4 + $0x9c] sm:$0xff]
    %v1298 = vld [vmem:[#allocation4 + $0xa4] sm:$0xf]
    %v1299 = vld [vmem:[#allocation4 + $0xa8] sm:$0xff]
    %v1300 = vld [vmem:[#allocation4 + $0xb0] sm:$0xf]
    %v1301 = vld [vmem:[#allocation4 + $0xb4] sm:$0xff]
    %v1302 = vld [vmem:[#allocation4 + $0xbc] sm:$0xf]
    %v1335 = vunpack.c.l.b16 %v1271
    %v1336 = vunpack.c.h.b16 %v1271
    %v1337 = vunpack.c.l.b16 %v1272
    %v1338 = vunpack.c.l.b16 %v1273
    %v1339 = vunpack.c.h.b16 %v1273
    %v1340 = vunpack.c.l.b16 %v1274
    %v1341 = vunpack.c.l.b16 %v1275
    %v1342 = vunpack.c.h.b16 %v1275
    %v1343 = vunpack.c.l.b16 %v1276
    %v1344 = vunpack.c.l.b16 %v1277
    %v1345 = vunpack.c.h.b16 %v1277
    %v1346 = vunpack.c.l.b16 %v1278
    %v1347 = vunpack.c.l.b16 %v1279
    %v1348 = vunpack.c.h.b16 %v1279
    %v1349 = vunpack.c.l.b16 %v1280
    %v1350 = vunpack.c.l.b16 %v1281
    %v1351 = vunpack.c.h.b16 %v1281
    %v1352 = vunpack.c.l.b16 %v1282
    %v1353 = vunpack.c.l.b16 %v1283
    %v1354 = vunpack.c.h.b16 %v1283
    %v1355 = vunpack.c.l.b16 %v1284
    %v1356 = vunpack.c.l.b16 %v1285
    %v1357 = vunpack.c.h.b16 %v1285
    %v1358 = vunpack.c.l.b16 %v1286
    %v1359 = vunpack.c.l.b16 %v1287
    %v1360 = vunpack.c.h.b16 %v1287
    %v1361 = vunpack.c.l.b16 %v1288
    %v1362 = vunpack.c.l.b16 %v1289
    %v1363 = vunpack.c.h.b16 %v1289
    %v1364 = vunpack.c.l.b16 %v1290
    %v1365 = vunpack.c.l.b16 %v1291
    %v1366 = vunpack.c.h.b16 %v1291
    %v1367 = vunpack.c.l.b16 %v1292
    %v1368 = vunpack.c.l.b16 %v1293
    %v1369 = vunpack.c.h.b16 %v1293
    %v1370 = vunpack.c.l.b16 %v1294
    %v1371 = vunpack.c.l.b16 %v1295
    %v1372 = vunpack.c.h.b16 %v1295
    %v1373 = vunpack.c.l.b16 %v1296
    %v1374 = vunpack.c.l.b16 %v1297
    %v1375 = vunpack.c.h.b16 %v1297
    %v1376 = vunpack.c.l.b16 %v1298
    %v1377 = vunpack.c.l.b16 %v1299
    %v1378 = vunpack.c.h.b16 %v1299
    %v1379 = vunpack.c.l.b16 %v1300
    %v1380 = vunpack.c.l.b16 %v1301
    %v1381 = vunpack.c.h.b16 %v1301
    %v1382 = vunpack.c.l.b16 %v1302
    %v1383 = vpack.c.b16 %v1338, %v1335
    %v1384 = vpack.c.b16 %v1339, %v1336
    %v1385 = vpack.c.b16 %v1340, %v1337
    %v1386 = vpack.c.b16 %v1344, %v1341
    %v1387 = vpack.c.b16 %v1345, %v1342
    %v1388 = vpack.c.b16 %v1346, %v1343
    %v1389 = vpack.c.b16 %v1350, %v1347
    %v1390 = vpack.c.b16 %v1351, %v1348
    %v1391 = vpack.c.b16 %v1352, %v1349
    %v1392 = vpack.c.b16 %v1356, %v1353
    %v1393 = vpack.c.b16 %v1357, %v1354
    %v1394 = vpack.c.b16 %v1358, %v1355
    %v1395 = vpack.c.b16 %v1362, %v1359
    %v1396 = vpack.c.b16 %v1363, %v1360
    %v1397 = vpack.c.b16 %v1364, %v1361
    %v1398 = vpack.c.b16 %v1368, %v1365
    %v1399 = vpack.c.b16 %v1369, %v1366
    %v1400 = vpack.c.b16 %v1370, %v1367
    %v1401 = vpack.c.b16 %v1374, %v1371
    %v1402 = vpack.c.b16 %v1375, %v1372
    %v1403 = vpack.c.b16 %v1376, %v1373
    %v1404 = vpack.c.b16 %v1380, %v1377
    %v1405 = vpack.c.b16 %v1381, %v1378
    %v1406 = vpack.c.b16 %v1382, %v1379
    %1431 = vmatprep.subr.bf16.mxu0 %v1384
    %1432 = vmatpush1.bf16.msra.mxu0 %v1383
    %1433 = vmatprep.subr.bf16.mxu0 %v1387
    %1434 = vmatpush1.bf16.msra.mxu0 %v1386
    %1435 = vmatprep.subr.bf16.mxu0 %v1390
    %1436 = vmatpush1.bf16.msra.mxu0 %v1389
    %1437 = vmatprep.subr.bf16.mxu0 %v1393
    %1438 = vmatpush1.bf16.msra.mxu0 %v1392
    %1439 = vmatprep.subr.bf16.mxu0 %v1396
    %1440 = vmatpush1.bf16.msra.mxu0 %v1395
    %1441 = vmatprep.subr.bf16.mxu0 %v1399
    %1442 = vmatpush1.bf16.msra.mxu0 %v1398
    %1443 = vmatprep.subr.bf16.mxu0 %v1402
    %1444 = vmatpush1.bf16.msra.mxu0 %v1401
    %1445 = vmatprep.subr.bf16.mxu0 %v1405
    %1446 = vmatpush1.bf16.msra.mxu0 %v1404
    %1447 = vmatprep.subr.bf16.mxu0 0
    %1448 = vmatpush1.bf16.msra.mxu0 0
    %1449 = vmatprep.subr.bf16.mxu0 0
    %1450 = vmatpush1.bf16.msra.mxu0 0
    %1451 = vmatprep.subr.bf16.mxu0 0
    %1452 = vmatpush1.bf16.msra.mxu0 0
    %1453 = vmatprep.subr.bf16.mxu0 0
    %1454 = vmatpush1.bf16.msra.mxu0 0
    %1455 = vmatprep.subr.bf16.mxu0 0
    %1456 = vmatpush1.bf16.msra.mxu0 0
    %1457 = vmatprep.subr.bf16.mxu0 0
    %1458 = vmatpush1.bf16.msra.mxu0 0
    %1459 = vmatprep.subr.bf16.mxu0 0
    %1460 = vmatpush1.bf16.msra.mxu0 0
    %1461 = vmatprep.subr.bf16.mxu0 0
    %1462 = vmatpush1.bf16.msra.mxu0 0
    %1463 = vmatprep.mubr.bf16.mxu0 0
    %1464 = vmatmul.mubr.bf16.gmra.mrb[0].mxu0 %v325
    %v1465 = vpop.f32.mrb[0].mxu0
    %v1466 = vadd.f32 0.0, %v1465
    %v1467 = vpop.f32.mrb[0].mxu0
    %v1468 = vadd.f32 0.0, %v1467
    %v1469 = vpop.f32.mrb[0].mxu0
    %v1470 = vadd.f32 0.0, %v1469
    %v1471 = vpop.f32.mrb[0].mxu0
    %v1472 = vadd.f32 0.0, %v1471
    %1473 = vmatprep.mubr.bf16.mxu0 0
    %1474 = vmatmul.mubr.bf16.gmra.mrb[0].mxu0 %v326
    %v1475 = vpop.f32.mrb[0].mxu0
    %v1476 = vadd.f32 0.0, %v1475
    %v1477 = vpop.f32.mrb[0].mxu0
    %v1478 = vadd.f32 0.0, %v1477
    %v1479 = vpop.f32.mrb[0].mxu0
    %v1480 = vadd.f32 0.0, %v1479
    %v1481 = vpop.f32.mrb[0].mxu0
    %v1482 = vadd.f32 0.0, %v1481
    %1483 = vdwg.mxu0
    %1484 = vmatprep.subr.bf16.mxu0 0
    %1485 = vmatpush1.bf16.msra.mxu0 %v1385
    %1486 = vmatprep.subr.bf16.mxu0 0
    %1487 = vmatpush1.bf16.msra.mxu0 %v1388
    %1488 = vmatprep.subr.bf16.mxu0 0
    %1489 = vmatpush1.bf16.msra.mxu0 %v1391
    %1490 = vmatprep.subr.bf16.mxu0 0
    %1491 = vmatpush1.bf16.msra.mxu0 %v1394
    %1492 = vmatprep.subr.bf16.mxu0 0
    %1493 = vmatpush1.bf16.msra.mxu0 %v1397
    %1494 = vmatprep.subr.bf16.mxu0 0
    %1495 = vmatpush1.bf16.msra.mxu0 %v1400
    %1496 = vmatprep.subr.bf16.mxu0 0
    %1497 = vmatpush1.bf16.msra.mxu0 %v1403
    %1498 = vmatprep.subr.bf16.mxu0 0
    %1499 = vmatpush1.bf16.msra.mxu0 %v1406
    %1500 = vmatprep.subr.bf16.mxu0 0
    %1501 = vmatpush1.bf16.msra.mxu0 0
    %1502 = vmatprep.subr.bf16.mxu0 0
    %1503 = vmatpush1.bf16.msra.mxu0 0
    %1504 = vmatprep.subr.bf16.mxu0 0
    %1505 = vmatpush1.bf16.msra.mxu0 0
    %1506 = vmatprep.subr.bf16.mxu0 0
    %1507 = vmatpush1.bf16.msra.mxu0 0
    %1508 = vmatprep.subr.bf16.mxu0 0
    %1509 = vmatpush1.bf16.msra.mxu0 0
    %1510 = vmatprep.subr.bf16.mxu0 0
    %1511 = vmatpush1.bf16.msra.mxu0 0
    %1512 = vmatprep.subr.bf16.mxu0 0
    %1513 = vmatpush1.bf16.msra.mxu0 0
    %1514 = vmatprep.subr.bf16.mxu0 0
    %1515 = vmatpush1.bf16.msra.mxu0 0
    %1516 = vmatprep.mubr.bf16.mxu0 0
    %1517 = vmatmul.mubr.bf16.gmra.mrb[0].mxu0 %v325
    %v1518 = vpop.f32.mrb[0].mxu0
    %v1519 = vadd.f32 0.0, %v1518
    %v1520 = vpop.f32.mrb[0].mxu0
    %v1521 = vpop.f32.mrb[0].mxu0
    %v1522 = vadd.f32 0.0, %v1521
    %v1523 = vpop.f32.mrb[0].mxu0
    %1524 = vmatprep.mubr.bf16.mxu0 0
    %1525 = vmatmul.mubr.bf16.gmra.mrb[0].mxu0 %v326
    %v1526 = vpop.f32.mrb[0].mxu0
    %v1527 = vadd.f32 0.0, %v1526
    %v1528 = vpop.f32.mrb[0].mxu0
    %v1529 = vpop.f32.mrb[0].mxu0
    %v1530 = vadd.f32 0.0, %v1529
    %v1531 = vpop.f32.mrb[0].mxu0
    %1532 = vdwg.mxu0
    %v1533 = vpack.c.bf16 %v1470, %v1466
    %v1534 = vpack.c.bf16 %v1480, %v1476
    %v1535 = vpack.c.bf16 %v1472, %v1468
    %v1536 = vpack.c.bf16 %v1482, %v1478
    %v1537 = vpack.c.bf16 %v1522, %v1519
    %v1538 = vpack.c.bf16 %v1530, %v1527
    %v1541 = vunpack.c.l.b16 %v1535
    %v1542 = vunpack.c.h.b16 %v1535
    %v1543 = vunpack.c.l.b16 %v1536
    %v1544 = vunpack.c.h.b16 %v1536
    %v1545 = vpack.c.b16 %v1541, %v1541
    %v1546 = vpack.c.b16 %v1542, %v1542
    %v1547 = vpack.c.b16 %v1543, %v1543
    %v1548 = vpack.c.b16 %v1544, %v1544
    %1553 = vst [vmem:[#allocation2] sm:$0xf] %v1545
    %1554 = vst [vmem:[#allocation2 + $0x4] sm:$0xf] %v1546
    %1555 = vst [vmem:[#allocation2 + $0xc] sm:$0xf] %v1547
    %1556 = vst [vmem:[#allocation2 + $0x10] sm:$0xf] %v1548
    %v1559 = vunpack.c.l.b16 %v1537
    %v1560 = vunpack.c.h.b16 %v1537
    %v1561 = vunpack.c.l.b16 %v1538
    %v1562 = vunpack.c.h.b16 %v1538
    %v1563 = vpack.c.b16 %v1559, %v1559
    %v1564 = vpack.c.b16 %v1560, %v1560
    %v1565 = vpack.c.b16 %v1561, %v1561
    %v1566 = vpack.c.b16 %v1562, %v1562
    %1571 = vst [vmem:[#allocation3] sm:$0xf] %v1563
    %1572 = vst [vmem:[#allocation3 + $0x4] sm:$0xf] %v1564
    %1573 = vst [vmem:[#allocation3 + $0xc] sm:$0xf] %v1565
    %1574 = vst [vmem:[#allocation3 + $0x10] sm:$0xf] %v1566
    %v1575 = vld [vmem:[#allocation2] sm:$0xf]
    %v1576 = vld [vmem:[#allocation2 + $0x4] sm:$0xf]
    %v1577 = vld [vmem:[#allocation2 + $0x8] sm:$0xf]
    %v1578 = vld [vmem:[#allocation2 + $0xc] sm:$0xf]
    %v1579 = vld [vmem:[#allocation2 + $0x10] sm:$0xf]
    %v1580 = vld [vmem:[#allocation2 + $0x14] sm:$0xf]
    %v1581 = vld [vmem:[#allocation3] sm:$0xf]
    %v1582 = vld [vmem:[#allocation3 + $0x4] sm:$0xf]
    %v1583 = vld [vmem:[#allocation3 + $0x8] sm:$0xf]
    %v1584 = vld [vmem:[#allocation3 + $0xc] sm:$0xf]
    %v1585 = vld [vmem:[#allocation3 + $0x10] sm:$0xf]
    %v1586 = vld [vmem:[#allocation3 + $0x14] sm:$0xf]
    %v1590 = vunpack.c.l.b16 %v1575
    %v1591 = vunpack.c.l.b16 %v1576
    %v1592 = vunpack.c.l.b16 %v1577
    %v1593 = vpack.c.b16 %v1591, %v1590
    %v1594 = vpack.c.b16 %v1592, %v1592
    %1597 = vmatprep.subr.bf16.mxu0 0
    %1598 = vmatpush1.bf16.xpose.msra.mxu0 %v1593
    %1599 = vmatprep.subr.bf16.mxu0 0
    %1600 = vmatpush1.bf16.xpose.msra.mxu0 %v1594
    %1601 = vmatprep.subr.bf16.mxu0 0
    %1602 = vmatpush1.bf16.xpose.msra.mxu0 0
    %1603 = vmatprep.subr.bf16.mxu0 0
    %1604 = vmatpush1.bf16.xpose.msra.mxu0 0
    %1605 = vmatprep.subr.bf16.mxu0 0
    %1606 = vmatpush1.bf16.xpose.msra.mxu0 0
    %1607 = vmatprep.subr.bf16.mxu0 0
    %1608 = vmatpush1.bf16.xpose.msra.mxu0 0
    %1609 = vmatprep.subr.bf16.mxu0 0
    %1610 = vmatpush1.bf16.xpose.msra.mxu0 0
    %1611 = vmatprep.subr.bf16.mxu0 0
    %1612 = vmatpush1.bf16.xpose.msra.mxu0 0
    %1613 = vmatprep.subr.bf16.mxu0 0
    %1614 = vmatpush1.bf16.xpose.msra.mxu0 0
    %1615 = vmatprep.subr.bf16.mxu0 0
    %1616 = vmatpush1.bf16.xpose.msra.mxu0 0
    %1617 = vmatprep.subr.bf16.mxu0 0
    %1618 = vmatpush1.bf16.xpose.msra.mxu0 0
    %1619 = vmatprep.subr.bf16.mxu0 0
    %1620 = vmatpush1.bf16.xpose.msra.mxu0 0
    %1621 = vmatprep.subr.bf16.mxu0 0
    %1622 = vmatpush1.bf16.xpose.msra.mxu0 0
    %1623 = vmatprep.subr.bf16.mxu0 0
    %1624 = vmatpush1.bf16.xpose.msra.mxu0 0
    %1625 = vmatprep.subr.bf16.mxu0 0
    %1626 = vmatpush1.bf16.xpose.msra.mxu0 0
    %1627 = vmatprep.subr.bf16.mxu0 0
    %1628 = vmatpush1.bf16.xpose.msra.mxu0 0
    %1629 = vmatprep.mubr.bf16.mxu0 0
    %1630 = vmatmul.mubr.bf16.gmra.mrb[0].mxu0 %v1533
    %v1631 = vpop.f32.mrb[0].mxu0
    %v1632 = vadd.f32 0.0, %v1631
    %v1633 = vpop.f32.mrb[0].mxu0
    %v1634 = vpop.f32.mrb[0].mxu0
    %v1635 = vadd.f32 0.0, %v1634
    %v1636 = vpop.f32.mrb[0].mxu0
    %1637 = vdwg.mxu0
    %v1641 = vunpack.c.l.b16 %v1578
    %v1642 = vunpack.c.l.b16 %v1579
    %v1643 = vunpack.c.l.b16 %v1580
    %v1644 = vpack.c.b16 %v1642, %v1641
    %v1645 = vpack.c.b16 %v1643, %v1643
    %1648 = vmatprep.subr.bf16.mxu0 0
    %1649 = vmatpush1.bf16.xpose.msra.mxu0 %v1644
    %1650 = vmatprep.subr.bf16.mxu0 0
    %1651 = vmatpush1.bf16.xpose.msra.mxu0 %v1645
    %1652 = vmatprep.subr.bf16.mxu0 0
    %1653 = vmatpush1.bf16.xpose.msra.mxu0 0
    %1654 = vmatprep.subr.bf16.mxu0 0
    %1655 = vmatpush1.bf16.xpose.msra.mxu0 0
    %1656 = vmatprep.subr.bf16.mxu0 0
    %1657 = vmatpush1.bf16.xpose.msra.mxu0 0
    %1658 = vmatprep.subr.bf16.mxu0 0
    %1659 = vmatpush1.bf16.xpose.msra.mxu0 0
    %1660 = vmatprep.subr.bf16.mxu0 0
    %1661 = vmatpush1.bf16.xpose.msra.mxu0 0
    %1662 = vmatprep.subr.bf16.mxu0 0
    %1663 = vmatpush1.bf16.xpose.msra.mxu0 0
    %1664 = vmatprep.subr.bf16.mxu0 0
    %1665 = vmatpush1.bf16.xpose.msra.mxu0 0
    %1666 = vmatprep.subr.bf16.mxu0 0
    %1667 = vmatpush1.bf16.xpose.msra.mxu0 0
    %1668 = vmatprep.subr.bf16.mxu0 0
    %1669 = vmatpush1.bf16.xpose.msra.mxu0 0
    %1670 = vmatprep.subr.bf16.mxu0 0
    %1671 = vmatpush1.bf16.xpose.msra.mxu0 0
    %1672 = vmatprep.subr.bf16.mxu0 0
    %1673 = vmatpush1.bf16.xpose.msra.mxu0 0
    %1674 = vmatprep.subr.bf16.mxu0 0
    %1675 = vmatpush1.bf16.xpose.msra.mxu0 0
    %1676 = vmatprep.subr.bf16.mxu0 0
    %1677 = vmatpush1.bf16.xpose.msra.mxu0 0
    %1678 = vmatprep.subr.bf16.mxu0 0
    %1679 = vmatpush1.bf16.xpose.msra.mxu0 0
    %1680 = vmatprep.mubr.bf16.mxu0 0
    %1681 = vmatmul.mubr.bf16.gmra.mrb[0].mxu0 %v1534
    %v1682 = vpop.f32.mrb[0].mxu0
    %v1683 = vadd.f32 0.0, %v1682
    %v1684 = vpop.f32.mrb[0].mxu0
    %v1685 = vpop.f32.mrb[0].mxu0
    %v1686 = vadd.f32 0.0, %v1685
    %v1687 = vpop.f32.mrb[0].mxu0
    %1688 = vdwg.mxu0
    %v1689 = vmul.f32 %v1632, 0.088388346
    %v1690 = vmul.f32 %v1635, 0.088388346
    %v1691 = vmul.f32 %v1683, 0.088388346
    %v1692 = vmul.f32 %v1686, 0.088388346
    %v1693 = vsel %vm348, 1, 0
    %v1694 = vsel %vm349, 1, 0
    %vm1695 = vcmp.eq.s32.totalorder %v1693, 1
    %vm1696 = vcmp.eq.s32.totalorder %v1694, 1
    %v1697 = vsel %vm1695, %v1689, -1e+30
    %v1698 = vsel %vm1696, %v1690, -1e+30
    %v1699 = vsel %vm1695, %v1691, -1e+30
    %v1700 = vsel %vm1696, %v1692, -1e+30
    %vm1701 = vcmask 195584
    %v1702 = vsel %vm1701, %v1697, -inf
    %1703 = vmax.xlane.f32.xlu0 %v1702
    %v1704 = vpop.xlane.xlu0 %1703
    %v1705 = vsel %vm1701, %v1698, -inf
    %1706 = vmax.xlane.f32.xlu0 %v1705
    %v1707 = vpop.xlane.xlu0 %1706
    %v1708 = vsel %vm1701, %v1699, -inf
    %1709 = vmax.xlane.f32.xlu0 %v1708
    %v1710 = vpop.xlane.xlu0 %1709
    %v1711 = vsel %vm1701, %v1700, -inf
    %1712 = vmax.xlane.f32.xlu0 %v1711
    %v1713 = vpop.xlane.xlu0 %1712
    %v1714 = vsub.f32 %v1697, %v1704
    %v1715 = vsub.f32 %v1698, %v1707
    %v1716 = vsub.f32 %v1699, %v1710
    %v1717 = vsub.f32 %v1700, %v1713
    %v1718 = vmul.f32 %v1714, 1.442695
    %v1719 = vpow.pop %v1718
    %v1720 = vmul.f32 %v1715, 1.442695
    %v1721 = vpow.pop %v1720
    %v1722 = vmul.f32 %v1716, 1.442695
    %v1723 = vpow.pop %v1722
    %v1724 = vmul.f32 %v1717, 1.442695
    %v1725 = vpow.pop %v1724
    %v1726 = vsel %vm1701, %v1719, 0.0
    %1727 = vadd.xlane.f32.xlu0 %v1726
    %v1728 = vpop.xlane.xlu0 %1727
    %v1729 = vsel %vm1701, %v1721, 0.0
    %1730 = vadd.xlane.f32.xlu0 %v1729
    %v1731 = vpop.xlane.xlu0 %1730
    %v1732 = vsel %vm1701, %v1723, 0.0
    %1733 = vadd.xlane.f32.xlu0 %v1732
    %v1734 = vpop.xlane.xlu0 %1733
    %v1735 = vsel %vm1701, %v1725, 0.0
    %1736 = vadd.xlane.f32.xlu0 %v1735
    %v1737 = vpop.xlane.xlu0 %1736
    %v1738 = vrcp.pop %v1728
    %v1739 = vrcp.pop %v1731
    %v1740 = vrcp.pop %v1734
    %v1741 = vrcp.pop %v1737
    %v1742 = vmul.f32 %v1719, %v1738
    %v1743 = vmul.f32 %v1721, %v1739
    %v1744 = vmul.f32 %v1723, %v1740
    %v1745 = vmul.f32 %v1725, %v1741
    %v1746 = vpack.c.bf16 %v1743, %v1742
    %v1747 = vpack.c.bf16 %v1745, %v1744
    %v1751 = vunpack.c.l.b16 %v1581
    %v1752 = vunpack.c.l.b16 %v1582
    %v1753 = vunpack.c.l.b16 %v1583
    %v1754 = vpack.c.b16 %v1752, %v1751
    %v1755 = vpack.c.b16 %v1753, %v1753
    %v1758 = vsel %vm1701, %v1746, 0
    %vm1760 = vcmask 1043456
    %v1762 = vsel %vm1760, %v1755, 0
    %1764 = vmatprep.subr.bf16.mxu0 0
    %1765 = vmatpush1.bf16.msra.mxu0 %v1754
    %1766 = vmatprep.subr.bf16.mxu0 0
    %1767 = vmatpush1.bf16.msra.mxu0 %v1762
    %1768 = vmatprep.subr.bf16.mxu0 0
    %1769 = vmatpush1.bf16.msra.mxu0 0
    %1770 = vmatprep.subr.bf16.mxu0 0
    %1771 = vmatpush1.bf16.msra.mxu0 0
    %1772 = vmatprep.subr.bf16.mxu0 0
    %1773 = vmatpush1.bf16.msra.mxu0 0
    %1774 = vmatprep.subr.bf16.mxu0 0
    %1775 = vmatpush1.bf16.msra.mxu0 0
    %1776 = vmatprep.subr.bf16.mxu0 0
    %1777 = vmatpush1.bf16.msra.mxu0 0
    %1778 = vmatprep.subr.bf16.mxu0 0
    %1779 = vmatpush1.bf16.msra.mxu0 0
    %1780 = vmatprep.subr.bf16.mxu0 0
    %1781 = vmatpush1.bf16.msra.mxu0 0
    %1782 = vmatprep.subr.bf16.mxu0 0
    %1783 = vmatpush1.bf16.msra.mxu0 0
    %1784 = vmatprep.subr.bf16.mxu0 0
    %1785 = vmatpush1.bf16.msra.mxu0 0
    %1786 = vmatprep.subr.bf16.mxu0 0
    %1787 = vmatpush1.bf16.msra.mxu0 0
    %1788 = vmatprep.subr.bf16.mxu0 0
    %1789 = vmatpush1.bf16.msra.mxu0 0
    %1790 = vmatprep.subr.bf16.mxu0 0
    %1791 = vmatpush1.bf16.msra.mxu0 0
    %1792 = vmatprep.subr.bf16.mxu0 0
    %1793 = vmatpush1.bf16.msra.mxu0 0
    %1794 = vmatprep.subr.bf16.mxu0 0
    %1795 = vmatpush1.bf16.msra.mxu0 0
    %1796 = vmatprep.mubr.bf16.mxu0 0
    %1797 = vmatmul.mubr.bf16.gmra.mrb[0].mxu0 %v1758
    %v1798 = vpop.f32.mrb[0].mxu0
    %v1799 = vadd.f32 0.0, %v1798
    %v1800 = vpop.f32.mrb[0].mxu0
    %v1801 = vpop.f32.mrb[0].mxu0
    %v1802 = vadd.f32 0.0, %v1801
    %v1803 = vpop.f32.mrb[0].mxu0
    %1804 = vdwg.mxu0
    %v1808 = vunpack.c.l.b16 %v1584
    %v1809 = vunpack.c.l.b16 %v1585
    %v1810 = vunpack.c.l.b16 %v1586
    %v1811 = vpack.c.b16 %v1809, %v1808
    %v1812 = vpack.c.b16 %v1810, %v1810
    %v1815 = vsel %vm1701, %v1747, 0
    %v1818 = vsel %vm1760, %v1812, 0
    %1820 = vmatprep.subr.bf16.mxu0 0
    %1821 = vmatpush1.bf16.msra.mxu0 %v1811
    %1822 = vmatprep.subr.bf16.mxu0 0
    %1823 = vmatpush1.bf16.msra.mxu0 %v1818
    %1824 = vmatprep.subr.bf16.mxu0 0
    %1825 = vmatpush1.bf16.msra.mxu0 0
    %1826 = vmatprep.subr.bf16.mxu0 0
    %1827 = vmatpush1.bf16.msra.mxu0 0
    %1828 = vmatprep.subr.bf16.mxu0 0
    %1829 = vmatpush1.bf16.msra.mxu0 0
    %1830 = vmatprep.subr.bf16.mxu0 0
    %1831 = vmatpush1.bf16.msra.mxu0 0
    %1832 = vmatprep.subr.bf16.mxu0 0
    %1833 = vmatpush1.bf16.msra.mxu0 0
    %1834 = vmatprep.subr.bf16.mxu0 0
    %1835 = vmatpush1.bf16.msra.mxu0 0
    %1836 = vmatprep.subr.bf16.mxu0 0
    %1837 = vmatpush1.bf16.msra.mxu0 0
    %1838 = vmatprep.subr.bf16.mxu0 0
    %1839 = vmatpush1.bf16.msra.mxu0 0
    %1840 = vmatprep.subr.bf16.mxu0 0
    %1841 = vmatpush1.bf16.msra.mxu0 0
    %1842 = vmatprep.subr.bf16.mxu0 0
    %1843 = vmatpush1.bf16.msra.mxu0 0
    %1844 = vmatprep.subr.bf16.mxu0 0
    %1845 = vmatpush1.bf16.msra.mxu0 0
    %1846 = vmatprep.subr.bf16.mxu0 0
    %1847 = vmatpush1.bf16.msra.mxu0 0
    %1848 = vmatprep.subr.bf16.mxu0 0
    %1849 = vmatpush1.bf16.msra.mxu0 0
    %1850 = vmatprep.subr.bf16.mxu0 0
    %1851 = vmatpush1.bf16.msra.mxu0 0
    %1852 = vmatprep.mubr.bf16.mxu0 0
    %1853 = vmatmul.mubr.bf16.gmra.mrb[0].mxu0 %v1815
    %v1854 = vpop.f32.mrb[0].mxu0
    %v1855 = vadd.f32 0.0, %v1854
    %v1856 = vpop.f32.mrb[0].mxu0
    %v1857 = vpop.f32.mrb[0].mxu0
    %v1858 = vadd.f32 0.0, %v1857
    %v1859 = vpop.f32.mrb[0].mxu0
    %1860 = vdwg.mxu0
    %v1861 = vpack.c.bf16 %v1802, %v1799
    %v1862 = vpack.c.bf16 %v1858, %v1855
    %v1863 = vld [vmem:[#allocation7] sm:$0xf]
    %v1864 = vld [vmem:[#allocation7 + $0x4] sm:$0xf]
    %v1865 = vld [vmem:[#allocation7 + $0x8] sm:$0xf]
    %v1866 = vld [vmem:[#allocation7 + $0xc] sm:$0xf]
    %v1867 = vld [vmem:[#allocation7 + $0x10] sm:$0xf]
    %v1868 = vld [vmem:[#allocation7 + $0x14] sm:$0xf]
    %v1869 = vld [vmem:[#allocation7 + $0x18] sm:$0xf]
    %v1870 = vld [vmem:[#allocation7 + $0x1c] sm:$0xf]
    %v1871 = vld [vmem:[#allocation7 + $0x20] sm:$0xf]
    %v1872 = vld [vmem:[#allocation7 + $0x24] sm:$0xf]
    %v1873 = vld [vmem:[#allocation7 + $0x28] sm:$0xf]
    %v1874 = vld [vmem:[#allocation7 + $0x2c] sm:$0xf]
    %v1875 = vld [vmem:[#allocation7 + $0x30] sm:$0xf]
    %v1876 = vld [vmem:[#allocation7 + $0x34] sm:$0xf]
    %v1877 = vld [vmem:[#allocation7 + $0x38] sm:$0xf]
    %v1878 = vld [vmem:[#allocation7 + $0x3c] sm:$0xf]
    %v1895 = vunpack.c.l.b16 %v1863
    %v1896 = vunpack.c.l.b16 %v1864
    %v1897 = vunpack.c.l.b16 %v1865
    %v1898 = vunpack.c.l.b16 %v1866
    %v1899 = vunpack.c.l.b16 %v1867
    %v1900 = vunpack.c.l.b16 %v1868
    %v1901 = vunpack.c.l.b16 %v1869
    %v1902 = vunpack.c.l.b16 %v1870
    %v1903 = vunpack.c.l.b16 %v1871
    %v1904 = vunpack.c.l.b16 %v1872
    %v1905 = vunpack.c.l.b16 %v1873
    %v1906 = vunpack.c.l.b16 %v1874
    %v1907 = vunpack.c.l.b16 %v1875
    %v1908 = vunpack.c.l.b16 %v1876
    %v1909 = vunpack.c.l.b16 %v1877
    %v1910 = vunpack.c.l.b16 %v1878
    %v1911 = vpack.c.b16 %v1896, %v1895
    %v1912 = vpack.c.b16 %v1898, %v1897
    %v1913 = vpack.c.b16 %v1900, %v1899
    %v1914 = vpack.c.b16 %v1902, %v1901
    %v1915 = vpack.c.b16 %v1904, %v1903
    %v1916 = vpack.c.b16 %v1906, %v1905
    %v1917 = vpack.c.b16 %v1908, %v1907
    %v1918 = vpack.c.b16 %v1910, %v1909
    %1927 = vmatprep.subr.bf16.mxu0 0
    %1928 = vmatpush1.bf16.msra.mxu0 %v1911
    %1929 = vmatprep.subr.bf16.mxu0 0
    %1930 = vmatpush1.bf16.msra.mxu0 %v1912
    %1931 = vmatprep.subr.bf16.mxu0 0
    %1932 = vmatpush1.bf16.msra.mxu0 %v1913
    %1933 = vmatprep.subr.bf16.mxu0 0
    %1934 = vmatpush1.bf16.msra.mxu0 %v1914
    %1935 = vmatprep.subr.bf16.mxu0 0
    %1936 = vmatpush1.bf16.msra.mxu0 %v1915
    %1937 = vmatprep.subr.bf16.mxu0 0
    %1938 = vmatpush1.bf16.msra.mxu0 %v1916
    %1939 = vmatprep.subr.bf16.mxu0 0
    %1940 = vmatpush1.bf16.msra.mxu0 %v1917
    %1941 = vmatprep.subr.bf16.mxu0 0
    %1942 = vmatpush1.bf16.msra.mxu0 %v1918
    %1943 = vmatprep.subr.bf16.mxu0 0
    %1944 = vmatpush1.bf16.msra.mxu0 0
    %1945 = vmatprep.subr.bf16.mxu0 0
    %1946 = vmatpush1.bf16.msra.mxu0 0
    %1947 = vmatprep.subr.bf16.mxu0 0
    %1948 = vmatpush1.bf16.msra.mxu0 0
    %1949 = vmatprep.subr.bf16.mxu0 0
    %1950 = vmatpush1.bf16.msra.mxu0 0
    %1951 = vmatprep.subr.bf16.mxu0 0
    %1952 = vmatpush1.bf16.msra.mxu0 0
    %1953 = vmatprep.subr.bf16.mxu0 0
    %1954 = vmatpush1.bf16.msra.mxu0 0
    %1955 = vmatprep.subr.bf16.mxu0 0
    %1956 = vmatpush1.bf16.msra.mxu0 0
    %1957 = vmatprep.subr.bf16.mxu0 0
    %1958 = vmatpush1.bf16.msra.mxu0 0
    %1959 = vmatprep.mubr.bf16.mxu0 0
    %1960 = vmatmul.mubr.bf16.gmra.mrb[0].mxu0 %v1861
    %v1961 = vpop.f32.mrb[0].mxu0
    %v1962 = vadd.f32 0.0, %v1961
    %v1963 = vpop.f32.mrb[0].mxu0
    %v1964 = vpop.f32.mrb[0].mxu0
    %v1965 = vadd.f32 0.0, %v1964
    %v1966 = vpop.f32.mrb[0].mxu0
    %1967 = vmatprep.mubr.bf16.mxu0 0
    %1968 = vmatmul.mubr.bf16.gmra.mrb[0].mxu0 %v1862
    %v1969 = vpop.f32.mrb[0].mxu0
    %v1970 = vadd.f32 0.0, %v1969
    %v1971 = vpop.f32.mrb[0].mxu0
    %v1972 = vpop.f32.mrb[0].mxu0
    %v1973 = vadd.f32 0.0, %v1972
    %v1974 = vpop.f32.mrb[0].mxu0
    %1975 = vdwg.mxu0
    %v1976 = vpack.c.bf16 %v1965, %v1962
    %v1977 = vpack.c.bf16 %v1973, %v1970
    %v1978 = vadd.bf16 %v325, %v1976
    %v1979 = vadd.bf16 %v326, %v1977
    %v1980 = vld [vmem:[%s986] sm:$0xff]
    %v1981 = vld [vmem:[%s986 + $0x8] sm:$0xf]
    %v1982 = vld [vmem:[%s986 + $0xc] sm:$0xff]
    %v1983 = vld [vmem:[%s986 + $0x14] sm:$0xf]
    %v1984 = vld [vmem:[%s986 + $0x18] sm:$0xff]
    %v1985 = vld [vmem:[%s986 + $0x20] sm:$0xf]
    %v1986 = vld [vmem:[%s986 + $0x24] sm:$0xff]
    %v1987 = vld [vmem:[%s986 + $0x2c] sm:$0xf]
    %v1988 = vld [vmem:[%s986 + $0x30] sm:$0xff]
    %v1989 = vld [vmem:[%s986 + $0x38] sm:$0xf]
    %v1990 = vld [vmem:[%s986 + $0x3c] sm:$0xff]
    %v1991 = vld [vmem:[%s986 + $0x44] sm:$0xf]
    %v1992 = vld [vmem:[%s986 + $0x48] sm:$0xff]
    %v1993 = vld [vmem:[%s986 + $0x50] sm:$0xf]
    %v1994 = vld [vmem:[%s986 + $0x54] sm:$0xff]
    %v1995 = vld [vmem:[%s986 + $0x5c] sm:$0xf]
    %v1996 = vld [vmem:[%s986 + $0x60] sm:$0xff]
    %v1997 = vld [vmem:[%s986 + $0x68] sm:$0xf]
    %v1998 = vld [vmem:[%s986 + $0x6c] sm:$0xff]
    %v1999 = vld [vmem:[%s986 + $0x74] sm:$0xf]
    %v2000 = vld [vmem:[%s986 + $0x78] sm:$0xff]
    %v2001 = vld [vmem:[%s986 + $0x80] sm:$0xf]
    %v2002 = vld [vmem:[%s986 + $0x84] sm:$0xff]
    %v2003 = vld [vmem:[%s986 + $0x8c] sm:$0xf]
    %v2004 = vld [vmem:[%s986 + $0x90] sm:$0xff]
    %v2005 = vld [vmem:[%s986 + $0x98] sm:$0xf]
    %v2006 = vld [vmem:[%s986 + $0x9c] sm:$0xff]
    %v2007 = vld [vmem:[%s986 + $0xa4] sm:$0xf]
    %v2008 = vld [vmem:[%s986 + $0xa8] sm:$0xff]
    %v2009 = vld [vmem:[%s986 + $0xb0] sm:$0xf]
    %v2010 = vld [vmem:[%s986 + $0xb4] sm:$0xff]
    %v2011 = vld [vmem:[%s986 + $0xbc] sm:$0xf]
    %v2044 = vunpack.c.l.b16 %v1980
    %v2045 = vunpack.c.h.b16 %v1980
    %v2046 = vunpack.c.l.b16 %v1981
    %v2047 = vunpack.c.l.b16 %v1982
    %v2048 = vunpack.c.h.b16 %v1982
    %v2049 = vunpack.c.l.b16 %v1983
    %v2050 = vunpack.c.l.b16 %v1984
    %v2051 = vunpack.c.h.b16 %v1984
    %v2052 = vunpack.c.l.b16 %v1985
    %v2053 = vunpack.c.l.b16 %v1986
    %v2054 = vunpack.c.h.b16 %v1986
    %v2055 = vunpack.c.l.b16 %v1987
    %v2056 = vunpack.c.l.b16 %v1988
    %v2057 = vunpack.c.h.b16 %v1988
    %v2058 = vunpack.c.l.b16 %v1989
    %v2059 = vunpack.c.l.b16 %v1990
    %v2060 = vunpack.c.h.b16 %v1990
    %v2061 = vunpack.c.l.b16 %v1991
    %v2062 = vunpack.c.l.b16 %v1992
    %v2063 = vunpack.c.h.b16 %v1992
    %v2064 = vunpack.c.l.b16 %v1993
    %v2065 = vunpack.c.l.b16 %v1994
    %v2066 = vunpack.c.h.b16 %v1994
    %v2067 = vunpack.c.l.b16 %v1995
    %v2068 = vunpack.c.l.b16 %v1996
    %v2069 = vunpack.c.h.b16 %v1996
    %v2070 = vunpack.c.l.b16 %v1997
    %v2071 = vunpack.c.l.b16 %v1998
    %v2072 = vunpack.c.h.b16 %v1998
    %v2073 = vunpack.c.l.b16 %v1999
    %v2074 = vunpack.c.l.b16 %v2000
    %v2075 = vunpack.c.h.b16 %v2000
    %v2076 = vunpack.c.l.b16 %v2001
    %v2077 = vunpack.c.l.b16 %v2002
    %v2078 = vunpack.c.h.b16 %v2002
    %v2079 = vunpack.c.l.b16 %v2003
    %v2080 = vunpack.c.l.b16 %v2004
    %v2081 = vunpack.c.h.b16 %v2004
    %v2082 = vunpack.c.l.b16 %v2005
    %v2083 = vunpack.c.l.b16 %v2006
    %v2084 = vunpack.c.h.b16 %v2006
    %v2085 = vunpack.c.l.b16 %v2007
    %v2086 = vunpack.c.l.b16 %v2008
    %v2087 = vunpack.c.h.b16 %v2008
    %v2088 = vunpack.c.l.b16 %v2009
    %v2089 = vunpack.c.l.b16 %v2010
    %v2090 = vunpack.c.h.b16 %v2010
    %v2091 = vunpack.c.l.b16 %v2011
    %v2092 = vpack.c.b16 %v2047, %v2044
    %v2093 = vpack.c.b16 %v2048, %v2045
    %v2094 = vpack.c.b16 %v2049, %v2046
    %v2095 = vpack.c.b16 %v2053, %v2050
    %v2096 = vpack.c.b16 %v2054, %v2051
    %v2097 = vpack.c.b16 %v2055, %v2052
    %v2098 = vpack.c.b16 %v2059, %v2056
    %v2099 = vpack.c.b16 %v2060, %v2057
    %v2100 = vpack.c.b16 %v2061, %v2058
    %v2101 = vpack.c.b16 %v2065, %v2062
    %v2102 = vpack.c.b16 %v2066, %v2063
    %v2103 = vpack.c.b16 %v2067, %v2064
    %v2104 = vpack.c.b16 %v2071, %v2068
    %v2105 = vpack.c.b16 %v2072, %v2069
    %v2106 = vpack.c.b16 %v2073, %v2070
    %v2107 = vpack.c.b16 %v2077, %v2074
    %v2108 = vpack.c.b16 %v2078, %v2075
    %v2109 = vpack.c.b16 %v2079, %v2076
    %v2110 = vpack.c.b16 %v2083, %v2080
    %v2111 = vpack.c.b16 %v2084, %v2081
    %v2112 = vpack.c.b16 %v2085, %v2082
    %v2113 = vpack.c.b16 %v2089, %v2086
    %v2114 = vpack.c.b16 %v2090, %v2087
    %v2115 = vpack.c.b16 %v2091, %v2088
    %2140 = vmatprep.subr.bf16.mxu0 %v2093
    %2141 = vmatpush1.bf16.msra.mxu0 %v2092
    %2142 = vmatprep.subr.bf16.mxu0 %v2096
    %2143 = vmatpush1.bf16.msra.mxu0 %v2095
    %2144 = vmatprep.subr.bf16.mxu0 %v2099
    %2145 = vmatpush1.bf16.msra.mxu0 %v2098
    %2146 = vmatprep.subr.bf16.mxu0 %v2102
    %2147 = vmatpush1.bf16.msra.mxu0 %v2101
    %2148 = vmatprep.subr.bf16.mxu0 %v2105
    %2149 = vmatpush1.bf16.msra.mxu0 %v2104
    %2150 = vmatprep.subr.bf16.mxu0 %v2108
    %2151 = vmatpush1.bf16.msra.mxu0 %v2107
    %2152 = vmatprep.subr.bf16.mxu0 %v2111
    %2153 = vmatpush1.bf16.msra.mxu0 %v2110
    %2154 = vmatprep.subr.bf16.mxu0 %v2114
    %2155 = vmatpush1.bf16.msra.mxu0 %v2113
    %2156 = vmatprep.subr.bf16.mxu0 0
    %2157 = vmatpush1.bf16.msra.mxu0 0
    %2158 = vmatprep.subr.bf16.mxu0 0
    %2159 = vmatpush1.bf16.msra.mxu0 0
    %2160 = vmatprep.subr.bf16.mxu0 0
    %2161 = vmatpush1.bf16.msra.mxu0 0
    %2162 = vmatprep.subr.bf16.mxu0 0
    %2163 = vmatpush1.bf16.msra.mxu0 0
    %2164 = vmatprep.subr.bf16.mxu0 0
    %2165 = vmatpush1.bf16.msra.mxu0 0
    %2166 = vmatprep.subr.bf16.mxu0 0
    %2167 = vmatpush1.bf16.msra.mxu0 0
    %2168 = vmatprep.subr.bf16.mxu0 0
    %2169 = vmatpush1.bf16.msra.mxu0 0
    %2170 = vmatprep.subr.bf16.mxu0 0
    %2171 = vmatpush1.bf16.msra.mxu0 0
    %2172 = vmatprep.mubr.bf16.mxu0 0
    %2173 = vmatmul.mubr.bf16.gmra.mrb[0].mxu0 %v1978
    %v2174 = vpop.f32.mrb[0].mxu0
    %v2175 = vadd.f32 0.0, %v2174
    %v2176 = vpop.f32.mrb[0].mxu0
    %v2177 = vadd.f32 0.0, %v2176
    %v2178 = vpop.f32.mrb[0].mxu0
    %v2179 = vadd.f32 0.0, %v2178
    %v2180 = vpop.f32.mrb[0].mxu0
    %v2181 = vadd.f32 0.0, %v2180
    %2182 = vmatprep.mubr.bf16.mxu0 0
    %2183 = vmatmul.mubr.bf16.gmra.mrb[0].mxu0 %v1979
    %v2184 = vpop.f32.mrb[0].mxu0
    %v2185 = vadd.f32 0.0, %v2184
    %v2186 = vpop.f32.mrb[0].mxu0
    %v2187 = vadd.f32 0.0, %v2186
    %v2188 = vpop.f32.mrb[0].mxu0
    %v2189 = vadd.f32 0.0, %v2188
    %v2190 = vpop.f32.mrb[0].mxu0
    %v2191 = vadd.f32 0.0, %v2190
    %2192 = vdwg.mxu0
    %2193 = vmatprep.subr.bf16.mxu0 0
    %2194 = vmatpush1.bf16.msra.mxu0 %v2094
    %2195 = vmatprep.subr.bf16.mxu0 0
    %2196 = vmatpush1.bf16.msra.mxu0 %v2097
    %2197 = vmatprep.subr.bf16.mxu0 0
    %2198 = vmatpush1.bf16.msra.mxu0 %v2100
    %2199 = vmatprep.subr.bf16.mxu0 0
    %2200 = vmatpush1.bf16.msra.mxu0 %v2103
    %2201 = vmatprep.subr.bf16.mxu0 0
    %2202 = vmatpush1.bf16.msra.mxu0 %v2106
    %2203 = vmatprep.subr.bf16.mxu0 0
    %2204 = vmatpush1.bf16.msra.mxu0 %v2109
    %2205 = vmatprep.subr.bf16.mxu0 0
    %2206 = vmatpush1.bf16.msra.mxu0 %v2112
    %2207 = vmatprep.subr.bf16.mxu0 0
    %2208 = vmatpush1.bf16.msra.mxu0 %v2115
    %2209 = vmatprep.subr.bf16.mxu0 0
    %2210 = vmatpush1.bf16.msra.mxu0 0
    %2211 = vmatprep.subr.bf16.mxu0 0
    %2212 = vmatpush1.bf16.msra.mxu0 0
    %2213 = vmatprep.subr.bf16.mxu0 0
    %2214 = vmatpush1.bf16.msra.mxu0 0
    %2215 = vmatprep.subr.bf16.mxu0 0
    %2216 = vmatpush1.bf16.msra.mxu0 0
    %2217 = vmatprep.subr.bf16.mxu0 0
    %2218 = vmatpush1.bf16.msra.mxu0 0
    %2219 = vmatprep.subr.bf16.mxu0 0
    %2220 = vmatpush1.bf16.msra.mxu0 0
    %2221 = vmatprep.subr.bf16.mxu0 0
    %2222 = vmatpush1.bf16.msra.mxu0 0
    %2223 = vmatprep.subr.bf16.mxu0 0
    %2224 = vmatpush1.bf16.msra.mxu0 0
    %2225 = vmatprep.mubr.bf16.mxu0 0
    %2226 = vmatmul.mubr.bf16.gmra.mrb[0].mxu0 %v1978
    %v2227 = vpop.f32.mrb[0].mxu0
    %v2228 = vadd.f32 0.0, %v2227
    %v2229 = vpop.f32.mrb[0].mxu0
    %v2230 = vpop.f32.mrb[0].mxu0
    %v2231 = vadd.f32 0.0, %v2230
    %v2232 = vpop.f32.mrb[0].mxu0
    %2233 = vmatprep.mubr.bf16.mxu0 0
    %2234 = vmatmul.mubr.bf16.gmra.mrb[0].mxu0 %v1979
    %v2235 = vpop.f32.mrb[0].mxu0
    %v2236 = vadd.f32 0.0, %v2235
    %v2237 = vpop.f32.mrb[0].mxu0
    %v2238 = vpop.f32.mrb[0].mxu0
    %v2239 = vadd.f32 0.0, %v2238
    %v2240 = vpop.f32.mrb[0].mxu0
    %2241 = vdwg.mxu0
    %v2242 = vpack.c.bf16 %v2179, %v2175
    %v2243 = vpack.c.bf16 %v2189, %v2185
    %v2244 = vpack.c.bf16 %v2181, %v2177
    %v2245 = vpack.c.bf16 %v2191, %v2187
    %v2246 = vpack.c.bf16 %v2231, %v2228
    %v2247 = vpack.c.bf16 %v2239, %v2236
    %v2250 = vunpack.c.l.b16 %v2244
    %v2251 = vunpack.c.h.b16 %v2244
    %v2252 = vunpack.c.l.b16 %v2245
    %v2253 = vunpack.c.h.b16 %v2245
    %v2254 = vpack.c.b16 %v2250, %v2250
    %v2255 = vpack.c.b16 %v2251, %v2251
    %v2256 = vpack.c.b16 %v2252, %v2252
    %v2257 = vpack.c.b16 %v2253, %v2253
    %2262 = vst [vmem:[%s1257] sm:$0xf] %v2254
    %2263 = vst [vmem:[%s1257 + $0x4] sm:$0xf] %v2255
    %2264 = vst [vmem:[%s1257 + $0xc] sm:$0xf] %v2256
    %2265 = vst [vmem:[%s1257 + $0x10] sm:$0xf] %v2257
    %v2268 = vunpack.c.l.b16 %v2246
    %v2269 = vunpack.c.h.b16 %v2246
    %v2270 = vunpack.c.l.b16 %v2247
    %v2271 = vunpack.c.h.b16 %v2247
    %v2272 = vpack.c.b16 %v2268, %v2268
    %v2273 = vpack.c.b16 %v2269, %v2269
    %v2274 = vpack.c.b16 %v2270, %v2270
    %v2275 = vpack.c.b16 %v2271, %v2271
    %2280 = vst [vmem:[%s1268] sm:$0xf] %v2272
    %2281 = vst [vmem:[%s1268 + $0x4] sm:$0xf] %v2273
    %2282 = vst [vmem:[%s1268 + $0xc] sm:$0xf] %v2274
    %2283 = vst [vmem:[%s1268 + $0x10] sm:$0xf] %v2275
    %v2284 = vld [vmem:[%s1257] sm:$0xf]
    %v2285 = vld [vmem:[%s1257 + $0x4] sm:$0xf]
    %v2286 = vld [vmem:[%s1257 + $0x8] sm:$0xf]
    %v2287 = vld [vmem:[%s1257 + $0xc] sm:$0xf]
    %v2288 = vld [vmem:[%s1257 + $0x10] sm:$0xf]
    %v2289 = vld [vmem:[%s1257 + $0x14] sm:$0xf]
    %v2290 = vld [vmem:[%s1268] sm:$0xf]
    %v2291 = vld [vmem:[%s1268 + $0x4] sm:$0xf]
    %v2292 = vld [vmem:[%s1268 + $0x8] sm:$0xf]
    %v2293 = vld [vmem:[%s1268 + $0xc] sm:$0xf]
    %v2294 = vld [vmem:[%s1268 + $0x10] sm:$0xf]
    %v2295 = vld [vmem:[%s1268 + $0x14] sm:$0xf]
    %v2299 = vunpack.c.l.b16 %v2284
    %v2300 = vunpack.c.l.b16 %v2285
    %v2301 = vunpack.c.l.b16 %v2286
    %v2302 = vpack.c.b16 %v2300, %v2299
    %v2303 = vpack.c.b16 %v2301, %v2301
    %2306 = vmatprep.subr.bf16.mxu0 0
    %2307 = vmatpush1.bf16.xpose.msra.mxu0 %v2302
    %2308 = vmatprep.subr.bf16.mxu0 0
    %2309 = vmatpush1.bf16.xpose.msra.mxu0 %v2303
    %2310 = vmatprep.subr.bf16.mxu0 0
    %2311 = vmatpush1.bf16.xpose.msra.mxu0 0
    %2312 = vmatprep.subr.bf16.mxu0 0
    %2313 = vmatpush1.bf16.xpose.msra.mxu0 0
    %2314 = vmatprep.subr.bf16.mxu0 0
    %2315 = vmatpush1.bf16.xpose.msra.mxu0 0
    %2316 = vmatprep.subr.bf16.mxu0 0
    %2317 = vmatpush1.bf16.xpose.msra.mxu0 0
    %2318 = vmatprep.subr.bf16.mxu0 0
    %2319 = vmatpush1.bf16.xpose.msra.mxu0 0
    %2320 = vmatprep.subr.bf16.mxu0 0
    %2321 = vmatpush1.bf16.xpose.msra.mxu0 0
    %2322 = vmatprep.subr.bf16.mxu0 0
    %2323 = vmatpush1.bf16.xpose.msra.mxu0 0
    %2324 = vmatprep.subr.bf16.mxu0 0
    %2325 = vmatpush1.bf16.xpose.msra.mxu0 0
    %2326 = vmatprep.subr.bf16.mxu0 0
    %2327 = vmatpush1.bf16.xpose.msra.mxu0 0
    %2328 = vmatprep.subr.bf16.mxu0 0
    %2329 = vmatpush1.bf16.xpose.msra.mxu0 0
    %2330 = vmatprep.subr.bf16.mxu0 0
    %2331 = vmatpush1.bf16.xpose.msra.mxu0 0
    %2332 = vmatprep.subr.bf16.mxu0 0
    %2333 = vmatpush1.bf16.xpose.msra.mxu0 0
    %2334 = vmatprep.subr.bf16.mxu0 0
    %2335 = vmatpush1.bf16.xpose.msra.mxu0 0
    %2336 = vmatprep.subr.bf16.mxu0 0
    %2337 = vmatpush1.bf16.xpose.msra.mxu0 0
    %2338 = vmatprep.mubr.bf16.mxu0 0
    %2339 = vmatmul.mubr.bf16.gmra.mrb[0].mxu0 %v2242
    %v2340 = vpop.f32.mrb[0].mxu0
    %v2341 = vadd.f32 0.0, %v2340
    %v2342 = vpop.f32.mrb[0].mxu0
    %v2343 = vpop.f32.mrb[0].mxu0
    %v2344 = vadd.f32 0.0, %v2343
    %v2345 = vpop.f32.mrb[0].mxu0
    %2346 = vdwg.mxu0
    %v2350 = vunpack.c.l.b16 %v2287
    %v2351 = vunpack.c.l.b16 %v2288
    %v2352 = vunpack.c.l.b16 %v2289
    %v2353 = vpack.c.b16 %v2351, %v2350
    %v2354 = vpack.c.b16 %v2352, %v2352
    %2357 = vmatprep.subr.bf16.mxu0 0
    %2358 = vmatpush1.bf16.xpose.msra.mxu0 %v2353
    %2359 = vmatprep.subr.bf16.mxu0 0
    %2360 = vmatpush1.bf16.xpose.msra.mxu0 %v2354
    %2361 = vmatprep.subr.bf16.mxu0 0
    %2362 = vmatpush1.bf16.xpose.msra.mxu0 0
    %2363 = vmatprep.subr.bf16.mxu0 0
    %2364 = vmatpush1.bf16.xpose.msra.mxu0 0
    %2365 = vmatprep.subr.bf16.mxu0 0
    %2366 = vmatpush1.bf16.xpose.msra.mxu0 0
    %2367 = vmatprep.subr.bf16.mxu0 0
    %2368 = vmatpush1.bf16.xpose.msra.mxu0 0
    %2369 = vmatprep.subr.bf16.mxu0 0
    %2370 = vmatpush1.bf16.xpose.msra.mxu0 0
    %2371 = vmatprep.subr.bf16.mxu0 0
    %2372 = vmatpush1.bf16.xpose.msra.mxu0 0
    %2373 = vmatprep.subr.bf16.mxu0 0
    %2374 = vmatpush1.bf16.xpose.msra.mxu0 0
    %2375 = vmatprep.subr.bf16.mxu0 0
    %2376 = vmatpush1.bf16.xpose.msra.mxu0 0
    %2377 = vmatprep.subr.bf16.mxu0 0
    %2378 = vmatpush1.bf16.xpose.msra.mxu0 0
    %2379 = vmatprep.subr.bf16.mxu0 0
    %2380 = vmatpush1.bf16.xpose.msra.mxu0 0
    %2381 = vmatprep.subr.bf16.mxu0 0
    %2382 = vmatpush1.bf16.xpose.msra.mxu0 0
    %2383 = vmatprep.subr.bf16.mxu0 0
    %2384 = vmatpush1.bf16.xpose.msra.mxu0 0
    %2385 = vmatprep.subr.bf16.mxu0 0
    %2386 = vmatpush1.bf16.xpose.msra.mxu0 0
    %2387 = vmatprep.subr.bf16.mxu0 0
    %2388 = vmatpush1.bf16.xpose.msra.mxu0 0
    %2389 = vmatprep.mubr.bf16.mxu0 0
    %2390 = vmatmul.mubr.bf16.gmra.mrb[0].mxu0 %v2243
    %v2391 = vpop.f32.mrb[0].mxu0
    %v2392 = vadd.f32 0.0, %v2391
    %v2393 = vpop.f32.mrb[0].mxu0
    %v2394 = vpop.f32.mrb[0].mxu0
    %v2395 = vadd.f32 0.0, %v2394
    %v2396 = vpop.f32.mrb[0].mxu0
    %2397 = vdwg.mxu0
    %v2398 = vmul.f32 %v2341, 0.088388346
    %v2399 = vmul.f32 %v2344, 0.088388346
    %v2400 = vmul.f32 %v2392, 0.088388346
    %v2401 = vmul.f32 %v2395, 0.088388346
    %v2402 = vsel %vm1695, %v2398, -1e+30
    %v2403 = vsel %vm1696, %v2399, -1e+30
    %v2404 = vsel %vm1695, %v2400, -1e+30
    %v2405 = vsel %vm1696, %v2401, -1e+30
    %v2406 = vsel %vm1701, %v2402, -inf
    %2407 = vmax.xlane.f32.xlu0 %v2406
    %v2408 = vpop.xlane.xlu0 %2407
    %v2409 = vsel %vm1701, %v2403, -inf
    %2410 = vmax.xlane.f32.xlu0 %v2409
    %v2411 = vpop.xlane.xlu0 %2410
    %v2412 = vsel %vm1701, %v2404, -inf
    %2413 = vmax.xlane.f32.xlu0 %v2412
    %v2414 = vpop.xlane.xlu0 %2413
    %v2415 = vsel %vm1701, %v2405, -inf
    %2416 = vmax.xlane.f32.xlu0 %v2415
    %v2417 = vpop.xlane.xlu0 %2416
    %v2418 = vsub.f32 %v2402, %v2408
    %v2419 = vsub.f32 %v2403, %v2411
    %v2420 = vsub.f32 %v2404, %v2414
    %v2421 = vsub.f32 %v2405, %v2417
    %v2422 = vmul.f32 %v2418, 1.442695
    %v2423 = vpow.pop %v2422
    %v2424 = vmul.f32 %v2419, 1.442695
    %v2425 = vpow.pop %v2424
    %v2426 = vmul.f32 %v2420, 1.442695
    %v2427 = vpow.pop %v2426
    %v2428 = vmul.f32 %v2421, 1.442695
    %v2429 = vpow.pop %v2428
    %v2430 = vsel %vm1701, %v2423, 0.0
    %2431 = vadd.xlane.f32.xlu0 %v2430
    %v2432 = vpop.xlane.xlu0 %2431
    %v2433 = vsel %vm1701, %v2425, 0.0
    %2434 = vadd.xlane.f32.xlu0 %v2433
    %v2435 = vpop.xlane.xlu0 %2434
    %v2436 = vsel %vm1701, %v2427, 0.0
    %2437 = vadd.xlane.f32.xlu0 %v2436
    %v2438 = vpop.xlane.xlu0 %2437
    %v2439 = vsel %vm1701, %v2429, 0.0
    %2440 = vadd.xlane.f32.xlu0 %v2439
    %v2441 = vpop.xlane.xlu0 %2440
    %v2442 = vrcp.pop %v2432
    %v2443 = vrcp.pop %v2435
    %v2444 = vrcp.pop %v2438
    %v2445 = vrcp.pop %v2441
    %v2446 = vmul.f32 %v2423, %v2442
    %v2447 = vmul.f32 %v2425, %v2443
    %v2448 = vmul.f32 %v2427, %v2444
    %v2449 = vmul.f32 %v2429, %v2445
    %v2450 = vpack.c.bf16 %v2447, %v2446
    %v2451 = vpack.c.bf16 %v2449, %v2448
    %v2455 = vunpack.c.l.b16 %v2290
    %v2456 = vunpack.c.l.b16 %v2291
    %v2457 = vunpack.c.l.b16 %v2292
    %v2458 = vpack.c.b16 %v2456, %v2455
    %v2459 = vpack.c.b16 %v2457, %v2457
    %v2462 = vsel %vm1701, %v2450, 0
    %v2465 = vsel %vm1760, %v2459, 0
    %2467 = vmatprep.subr.bf16.mxu0 0
    %2468 = vmatpush1.bf16.msra.mxu0 %v2458
    %2469 = vmatprep.subr.bf16.mxu0 0
    %2470 = vmatpush1.bf16.msra.mxu0 %v2465
    %2471 = vmatprep.subr.bf16.mxu0 0
    %2472 = vmatpush1.bf16.msra.mxu0 0
    %2473 = vmatprep.subr.bf16.mxu0 0
    %2474 = vmatpush1.bf16.msra.mxu0 0
    %2475 = vmatprep.subr.bf16.mxu0 0
    %2476 = vmatpush1.bf16.msra.mxu0 0
    %2477 = vmatprep.subr.bf16.mxu0 0
    %2478 = vmatpush1.bf16.msra.mxu0 0
    %2479 = vmatprep.subr.bf16.mxu0 0
    %2480 = vmatpush1.bf16.msra.mxu0 0
    %2481 = vmatprep.subr.bf16.mxu0 0
    %2482 = vmatpush1.bf16.msra.mxu0 0
    %2483 = vmatprep.subr.bf16.mxu0 0
    %2484 = vmatpush1.bf16.msra.mxu0 0
    %2485 = vmatprep.subr.bf16.mxu0 0
    %2486 = vmatpush1.bf16.msra.mxu0 0
    %2487 = vmatprep.subr.bf16.mxu0 0
    %2488 = vmatpush1.bf16.msra.mxu0 0
    %2489 = vmatprep.subr.bf16.mxu0 0
    %2490 = vmatpush1.bf16.msra.mxu0 0
    %2491 = vmatprep.subr.bf16.mxu0 0
    %2492 = vmatpush1.bf16.msra.mxu0 0
    %2493 = vmatprep.subr.bf16.mxu0 0
    %2494 = vmatpush1.bf16.msra.mxu0 0
    %2495 = vmatprep.subr.bf16.mxu0 0
    %2496 = vmatpush1.bf16.msra.mxu0 0
    %2497 = vmatprep.subr.bf16.mxu0 0
    %2498 = vmatpush1.bf16.msra.mxu0 0
    %2499 = vmatprep.mubr.bf16.mxu0 0
    %2500 = vmatmul.mubr.bf16.gmra.mrb[0].mxu0 %v2462
    %v2501 = vpop.f32.mrb[0].mxu0
    %v2502 = vadd.f32 0.0, %v2501
    %v2503 = vpop.f32.mrb[0].mxu0
    %v2504 = vpop.f32.mrb[0].mxu0
    %v2505 = vadd.f32 0.0, %v2504
    %v2506 = vpop.f32.mrb[0].mxu0
    %2507 = vdwg.mxu0
    %v2511 = vunpack.c.l.b16 %v2293
    %v2512 = vunpack.c.l.b16 %v2294
    %v2513 = vunpack.c.l.b16 %v2295
    %v2514 = vpack.c.b16 %v2512, %v2511
    %v2515 = vpack.c.b16 %v2513, %v2513
    %v2518 = vsel %vm1701, %v2451, 0
    %v2521 = vsel %vm1760, %v2515, 0
    %2523 = vmatprep.subr.bf16.mxu0 0
    %2524 = vmatpush1.bf16.msra.mxu0 %v2514
    %2525 = vmatprep.subr.bf16.mxu0 0
    %2526 = vmatpush1.bf16.msra.mxu0 %v2521
    %2527 = vmatprep.subr.bf16.mxu0 0
    %2528 = vmatpush1.bf16.msra.mxu0 0
    %2529 = vmatprep.subr.bf16.mxu0 0
    %2530 = vmatpush1.bf16.msra.mxu0 0
    %2531 = vmatprep.subr.bf16.mxu0 0
    %2532 = vmatpush1.bf16.msra.mxu0 0
    %2533 = vmatprep.subr.bf16.mxu0 0
    %2534 = vmatpush1.bf16.msra.mxu0 0
    %2535 = vmatprep.subr.bf16.mxu0 0
    %2536 = vmatpush1.bf16.msra.mxu0 0
    %2537 = vmatprep.subr.bf16.mxu0 0
    %2538 = vmatpush1.bf16.msra.mxu0 0
    %2539 = vmatprep.subr.bf16.mxu0 0
    %2540 = vmatpush1.bf16.msra.mxu0 0
    %2541 = vmatprep.subr.bf16.mxu0 0
    %2542 = vmatpush1.bf16.msra.mxu0 0
    %2543 = vmatprep.subr.bf16.mxu0 0
    %2544 = vmatpush1.bf16.msra.mxu0 0
    %2545 = vmatprep.subr.bf16.mxu0 0
    %2546 = vmatpush1.bf16.msra.mxu0 0
    %2547 = vmatprep.subr.bf16.mxu0 0
    %2548 = vmatpush1.bf16.msra.mxu0 0
    %2549 = vmatprep.subr.bf16.mxu0 0
    %2550 = vmatpush1.bf16.msra.mxu0 0
    %2551 = vmatprep.subr.bf16.mxu0 0
    %2552 = vmatpush1.bf16.msra.mxu0 0
    %2553 = vmatprep.subr.bf16.mxu0 0
    %2554 = vmatpush1.bf16.msra.mxu0 0
    %2555 = vmatprep.mubr.bf16.mxu0 0
    %2556 = vmatmul.mubr.bf16.gmra.mrb[0].mxu0 %v2518
    %v2557 = vpop.f32.mrb[0].mxu0
    %v2558 = vadd.f32 0.0, %v2557
    %v2559 = vpop.f32.mrb[0].mxu0
    %v2560 = vpop.f32.mrb[0].mxu0
    %v2561 = vadd.f32 0.0, %v2560
    %v2562 = vpop.f32.mrb[0].mxu0
    %2563 = vdwg.mxu0
    %v2564 = vpack.c.bf16 %v2505, %v2502
    %v2565 = vpack.c.bf16 %v2561, %v2558
    %s2566 = scalar_lea.vmem [#allocation7], 64
    %v2567 = vld [vmem:[%s2566] sm:$0xf]
    %v2568 = vld [vmem:[%s2566 + $0x4] sm:$0xf]
    %v2569 = vld [vmem:[%s2566 + $0x8] sm:$0xf]
    %v2570 = vld [vmem:[%s2566 + $0xc] sm:$0xf]
    %v2571 = vld [vmem:[%s2566 + $0x10] sm:$0xf]
    %v2572 = vld [vmem:[%s2566 + $0x14] sm:$0xf]
    %v2573 = vld [vmem:[%s2566 + $0x18] sm:$0xf]
    %v2574 = vld [vmem:[%s2566 + $0x1c] sm:$0xf]
    %v2575 = vld [vmem:[%s2566 + $0x20] sm:$0xf]
    %v2576 = vld [vmem:[%s2566 + $0x24] sm:$0xf]
    %v2577 = vld [vmem:[%s2566 + $0x28] sm:$0xf]
    %v2578 = vld [vmem:[%s2566 + $0x2c] sm:$0xf]
    %v2579 = vld [vmem:[%s2566 + $0x30] sm:$0xf]
    %v2580 = vld [vmem:[%s2566 + $0x34] sm:$0xf]
    %v2581 = vld [vmem:[%s2566 + $0x38] sm:$0xf]
    %v2582 = vld [vmem:[%s2566 + $0x3c] sm:$0xf]
    %v2599 = vunpack.c.l.b16 %v2567
    %v2600 = vunpack.c.l.b16 %v2568
    %v2601 = vunpack.c.l.b16 %v2569
    %v2602 = vunpack.c.l.b16 %v2570
    %v2603 = vunpack.c.l.b16 %v2571
    %v2604 = vunpack.c.l.b16 %v2572
    %v2605 = vunpack.c.l.b16 %v2573
    %v2606 = vunpack.c.l.b16 %v2574
    %v2607 = vunpack.c.l.b16 %v2575
    %v2608 = vunpack.c.l.b16 %v2576
    %v2609 = vunpack.c.l.b16 %v2577
    %v2610 = vunpack.c.l.b16 %v2578
    %v2611 = vunpack.c.l.b16 %v2579
    %v2612 = vunpack.c.l.b16 %v2580
    %v2613 = vunpack.c.l.b16 %v2581
    %v2614 = vunpack.c.l.b16 %v2582
    %v2615 = vpack.c.b16 %v2600, %v2599
    %v2616 = vpack.c.b16 %v2602, %v2601
    %v2617 = vpack.c.b16 %v2604, %v2603
    %v2618 = vpack.c.b16 %v2606, %v2605
    %v2619 = vpack.c.b16 %v2608, %v2607
    %v2620 = vpack.c.b16 %v2610, %v2609
    %v2621 = vpack.c.b16 %v2612, %v2611
    %v2622 = vpack.c.b16 %v2614, %v2613
    %2631 = vmatprep.subr.bf16.mxu0 0
    %2632 = vmatpush1.bf16.msra.mxu0 %v2615
    %2633 = vmatprep.subr.bf16.mxu0 0
    %2634 = vmatpush1.bf16.msra.mxu0 %v2616
    %2635 = vmatprep.subr.bf16.mxu0 0
    %2636 = vmatpush1.bf16.msra.mxu0 %v2617
    %2637 = vmatprep.subr.bf16.mxu0 0
    %2638 = vmatpush1.bf16.msra.mxu0 %v2618
    %2639 = vmatprep.subr.bf16.mxu0 0
    %2640 = vmatpush1.bf16.msra.mxu0 %v2619
    %2641 = vmatprep.subr.bf16.mxu0 0
    %2642 = vmatpush1.bf16.msra.mxu0 %v2620
    %2643 = vmatprep.subr.bf16.mxu0 0
    %2644 = vmatpush1.bf16.msra.mxu0 %v2621
    %2645 = vmatprep.subr.bf16.mxu0 0
    %2646 = vmatpush1.bf16.msra.mxu0 %v2622
    %2647 = vmatprep.subr.bf16.mxu0 0
    %2648 = vmatpush1.bf16.msra.mxu0 0
    %2649 = vmatprep.subr.bf16.mxu0 0
    %2650 = vmatpush1.bf16.msra.mxu0 0
    %2651 = vmatprep.subr.bf16.mxu0 0
    %2652 = vmatpush1.bf16.msra.mxu0 0
    %2653 = vmatprep.subr.bf16.mxu0 0
    %2654 = vmatpush1.bf16.msra.mxu0 0
    %2655 = vmatprep.subr.bf16.mxu0 0
    %2656 = vmatpush1.bf16.msra.mxu0 0
    %2657 = vmatprep.subr.bf16.mxu0 0
    %2658 = vmatpush1.bf16.msra.mxu0 0
    %2659 = vmatprep.subr.bf16.mxu0 0
    %2660 = vmatpush1.bf16.msra.mxu0 0
    %2661 = vmatprep.subr.bf16.mxu0 0
    %2662 = vmatpush1.bf16.msra.mxu0 0
    %2663 = vmatprep.mubr.bf16.mxu0 0
    %2664 = vmatmul.mubr.bf16.gmra.mrb[0].mxu0 %v2564
    %v2665 = vpop.f32.mrb[0].mxu0
    %v2666 = vadd.f32 0.0, %v2665
    %v2667 = vpop.f32.mrb[0].mxu0
    %v2668 = vpop.f32.mrb[0].mxu0
    %v2669 = vadd.f32 0.0, %v2668
    %v2670 = vpop.f32.mrb[0].mxu0
    %2671 = vmatprep.mubr.bf16.mxu0 0
    %2672 = vmatmul.mubr.bf16.gmra.mrb[0].mxu0 %v2565
    %v2673 = vpop.f32.mrb[0].mxu0
    %v2674 = vadd.f32 0.0, %v2673
    %v2675 = vpop.f32.mrb[0].mxu0
    %v2676 = vpop.f32.mrb[0].mxu0
    %v2677 = vadd.f32 0.0, %v2676
    %v2678 = vpop.f32.mrb[0].mxu0
    %2679 = vdwg.mxu0
    %v2680 = vpack.c.bf16 %v2669, %v2666
    %v2681 = vpack.c.bf16 %v2677, %v2674
    %v2682 = vadd.bf16 %v1978, %v2680
    %v2683 = vadd.bf16 %v1979, %v2681
    %2684 = vmatprep.subr.bf16.mxu0 0
    %2685 = vmatpush1.bf16.xpose.msra.mxu0 %v226
    %2686 = vmatprep.subr.bf16.mxu0 0
    %2687 = vmatpush1.bf16.xpose.msra.mxu0 %v227
    %2688 = vmatprep.subr.bf16.mxu0 0
    %2689 = vmatpush1.bf16.xpose.msra.mxu0 %v228
    %2690 = vmatprep.subr.bf16.mxu0 0
    %2691 = vmatpush1.bf16.xpose.msra.mxu0 %v229
    %2692 = vmatprep.subr.bf16.mxu0 0
    %2693 = vmatpush1.bf16.xpose.msra.mxu0 %v230
    %2694 = vmatprep.subr.bf16.mxu0 0
    %2695 = vmatpush1.bf16.xpose.msra.mxu0 %v231
    %2696 = vmatprep.subr.bf16.mxu0 0
    %2697 = vmatpush1.bf16.xpose.msra.mxu0 %v232
    %2698 = vmatprep.subr.bf16.mxu0 0
    %2699 = vmatpush1.bf16.xpose.msra.mxu0 %v233
    %2700 = vmatprep.subr.bf16.mxu0 0
    %2701 = vmatpush1.bf16.xpose.msra.mxu0 %v234
    %2702 = vmatprep.subr.bf16.mxu0 0
    %2703 = vmatpush1.bf16.xpose.msra.mxu0 %v235
    %2704 = vmatprep.subr.bf16.mxu0 0
    %2705 = vmatpush1.bf16.xpose.msra.mxu0 %v236
    %2706 = vmatprep.subr.bf16.mxu0 0
    %2707 = vmatpush1.bf16.xpose.msra.mxu0 %v237
    %2708 = vmatprep.subr.bf16.mxu0 0
    %2709 = vmatpush1.bf16.xpose.msra.mxu0 %v238
    %2710 = vmatprep.subr.bf16.mxu0 0
    %2711 = vmatpush1.bf16.xpose.msra.mxu0 %v239
    %2712 = vmatprep.subr.bf16.mxu0 0
    %2713 = vmatpush1.bf16.xpose.msra.mxu0 %v240
    %2714 = vmatprep.subr.bf16.mxu0 0
    %2715 = vmatpush1.bf16.xpose.msra.mxu0 %v241
    %2716 = vmatprep.mubr.bf16.mxu0 0
    %2717 = vmatmul.mubr.bf16.gmra.mrb[0].mxu0 %v2682
    %v2718 = vpop.f32.mrb[0].mxu0
    %v2719 = vadd.f32 0.0, %v2718
    %v2720 = vpop.f32.mrb[0].mxu0
    %v2721 = vadd.f32 0.0, %v2720
    %v2722 = vpop.f32.mrb[0].mxu0
    %v2723 = vadd.f32 0.0, %v2722
    %v2724 = vpop.f32.mrb[0].mxu0
    %v2725 = vadd.f32 0.0, %v2724
    %2726 = vmatprep.mubr.bf16.mxu0 0
    %2727 = vmatmul.mubr.bf16.gmra.mrb[0].mxu0 %v2683
    %v2728 = vpop.f32.mrb[0].mxu0
    %v2729 = vadd.f32 0.0, %v2728
    %v2730 = vpop.f32.mrb[0].mxu0
    %v2731 = vadd.f32 0.0, %v2730
    %v2732 = vpop.f32.mrb[0].mxu0
    %v2733 = vadd.f32 0.0, %v2732
    %v2734 = vpop.f32.mrb[0].mxu0
    %v2735 = vadd.f32 0.0, %v2734
    %2736 = vdwg.mxu0
    %2737 = vst [vmem:[%s6] sm:$0xff] %v2719
    %2738 = vst [vmem:[%s6 + $0x8] sm:$0xff] %v2721
    %2739 = vst [vmem:[%s6 + $0x10] sm:$0x1] %v2723
    %2740 = vst [vmem:[%s6 + $0x18] sm:$0x1] %v2725
    %2741 = vst [vmem:[%s6 + $0x20] sm:$0xff] %v2729
    %2742 = vst [vmem:[%s6 + $0x28] sm:$0xff] %v2731
    %2743 = vst [vmem:[%s6 + $0x30] sm:$0x1] %v2733
    %2744 = vst [vmem:[%s6 + $0x38] sm:$0x1] %v2735
    %v2745 = vld [vmem:[%s1] sm:$0xff]
    %v2746 = vld [vmem:[%s1 + $0x8] sm:$0xff]
    %v2747 = vld [vmem:[%s1 + $0x10] sm:$0xff]
    %v2748 = vld [vmem:[%s1 + $0x18] sm:$0xff]
    %v2749 = vmax.f32 %v2719, %v2721
    %2750 = vmax.xlane.f32.xlu0 %v2749
    %v2751 = vpop.xlane.xlu0 %2750
    %v2752 = vmax.f32 %v2723, %v2725
    %2753 = vmax.xlane.f32.xlu0 %v2752
    %v2754 = vpop.xlane.xlu0 %2753
    %v2755 = vmax.f32 %v2729, %v2731
    %2756 = vmax.xlane.f32.xlu0 %v2755
    %v2757 = vpop.xlane.xlu0 %2756
    %v2758 = vmax.f32 %v2733, %v2735
    %2759 = vmax.xlane.f32.xlu0 %v2758
    %v2760 = vpop.xlane.xlu0 %2759
    %v2761 = vsub.f32 %v2719, %v2751
    %v2762 = vsub.f32 %v2721, %v2751
    %v2763 = vsub.f32 %v2723, %v2754
    %v2764 = vsub.f32 %v2725, %v2754
    %v2765 = vsub.f32 %v2729, %v2757
    %v2766 = vsub.f32 %v2731, %v2757
    %v2767 = vsub.f32 %v2733, %v2760
    %v2768 = vsub.f32 %v2735, %v2760
    %v2769 = vmul.f32 %v2761, 1.442695
    %v2770 = vpow.pop %v2769
    %v2771 = vmul.f32 %v2762, 1.442695
    %v2772 = vpow.pop %v2771
    %v2773 = vmul.f32 %v2763, 1.442695
    %v2774 = vpow.pop %v2773
    %v2775 = vmul.f32 %v2764, 1.442695
    %v2776 = vpow.pop %v2775
    %v2777 = vmul.f32 %v2765, 1.442695
    %v2778 = vpow.pop %v2777
    %v2779 = vmul.f32 %v2766, 1.442695
    %v2780 = vpow.pop %v2779
    %v2781 = vmul.f32 %v2767, 1.442695
    %v2782 = vpow.pop %v2781
    %v2783 = vmul.f32 %v2768, 1.442695
    %v2784 = vpow.pop %v2783
    %v2785 = vadd.f32 %v2770, %v2772
    %2786 = vadd.xlane.f32.xlu0 %v2785
    %v2787 = vpop.xlane.xlu0 %2786
    %v2788 = vadd.f32 %v2774, %v2776
    %2789 = vadd.xlane.f32.xlu0 %v2788
    %v2790 = vpop.xlane.xlu0 %2789
    %v2791 = vadd.f32 %v2778, %v2780
    %2792 = vadd.xlane.f32.xlu0 %v2791
    %v2793 = vpop.xlane.xlu0 %2792
    %v2794 = vadd.f32 %v2782, %v2784
    %2795 = vadd.xlane.f32.xlu0 %v2794
    %v2796 = vpop.xlane.xlu0 %2795
    %v2797 = vlog2.pop %v2787
    %v2798 = vmul.f32 %v2797, 0.6931472
    %v2799 = vlog2.pop %v2790
    %v2800 = vmul.f32 %v2799, 0.6931472
    %v2801 = vlog2.pop %v2793
    %v2802 = vmul.f32 %v2801, 0.6931472
    %v2803 = vlog2.pop %v2796
    %v2804 = vmul.f32 %v2803, 0.6931472
    %v2805 = vadd.f32 %v2798, %v2751
    %v2806 = vadd.f32 %v2800, %v2754
    %v2807 = vadd.f32 %v2802, %v2757
    %v2808 = vadd.f32 %v2804, %v2760
    %2809 = vset.pattern.permute.xlu0 0
    %2810 = vperm.xlu0 %2809, %v2745
    %v2811 = vpop.permute.xlu0 %2810
    %2812 = vset.pattern.permute.xlu0 0
    %2813 = vperm.xlu0 %2812, %v2746
    %v2814 = vpop.permute.xlu0 %2813
    %2815 = vset.pattern.permute.xlu0 0
    %2816 = vperm.xlu0 %2815, %v2747
    %v2817 = vpop.permute.xlu0 %2816
    %2818 = vset.pattern.permute.xlu0 0
    %2819 = vperm.xlu0 %2818, %v2748
    %v2820 = vpop.permute.xlu0 %2819
    %vm2821 = vcmp.eq.s32.totalorder %v96, %v2811
    %vm2822 = vcmp.eq.s32.totalorder %v97, %v2811
    %vm2823 = vcmp.eq.s32.totalorder %v96, %v2814
    %vm2824 = vcmp.eq.s32.totalorder %v97, %v2814
    %vm2825 = vcmp.eq.s32.totalorder %v96, %v2817
    %vm2826 = vcmp.eq.s32.totalorder %v97, %v2817
    %vm2827 = vcmp.eq.s32.totalorder %v96, %v2820
    %vm2828 = vcmp.eq.s32.totalorder %v97, %v2820
    %v2829 = vsel %vm2821, %v2719, 0.0
    %v2830 = vsel %vm2822, %v2721, 0.0
    %v2831 = vsel %vm2823, %v2723, 0.0
    %v2832 = vsel %vm2824, %v2725, 0.0
    %v2833 = vsel %vm2825, %v2729, 0.0
    %v2834 = vsel %vm2826, %v2731, 0.0
    %v2835 = vsel %vm2827, %v2733, 0.0
    %v2836 = vsel %vm2828, %v2735, 0.0
    %v2837 = vadd.f32 %v2829, %v2830
    %2838 = vadd.xlane.f32.xlu0 %v2837
    %v2839 = vpop.xlane.xlu0 %2838
    %v2840 = vadd.f32 %v2831, %v2832
    %2841 = vadd.xlane.f32.xlu0 %v2840
    %v2842 = vpop.xlane.xlu0 %2841
    %v2843 = vadd.f32 %v2833, %v2834
    %2844 = vadd.xlane.f32.xlu0 %v2843
    %v2845 = vpop.xlane.xlu0 %2844
    %v2846 = vadd.f32 %v2835, %v2836
    %2847 = vadd.xlane.f32.xlu0 %v2846
    %v2848 = vpop.xlane.xlu0 %2847
    %vm2849 = vcmp.ne.s32.totalorder %v2745, 4294967196
    %vm2850 = vcmp.ne.s32.totalorder %v2746, 4294967196
    %vm2851 = vcmp.ne.s32.totalorder %v2747, 4294967196
    %vm2852 = vcmp.ne.s32.totalorder %v2748, 4294967196
    %v2853 = vsub.f32 %v2805, %v2839
    %v2854 = vsub.f32 %v2806, %v2842
    %v2855 = vsub.f32 %v2807, %v2845
    %v2856 = vsub.f32 %v2808, %v2848
    %v2857 = vsel %vm2849, %v2853, 0.0
    %v2858 = vsel %vm2850, %v2854, 0.0
    %v2859 = vsel %vm2851, %v2855, 0.0
    %v2860 = vsel %vm2852, %v2856, 0.0
    %vm2861 = vcmask 7168
    %v2862 = vsel %vm2861, %v2857, 0.0
    %v2863 = vsel %vm2861, %v2858, 0.0
    %v2864 = vadd.f32 %v2862, %v2863
    %v2865 = vsel %vm2861, %v2859, 0.0
    %v2866 = vadd.f32 %v2864, %v2865
    %v2867 = vsel %vm2861, %v2860, 0.0
    %v2868 = vadd.f32 %v2866, %v2867
    %v2869 = vrot.slane %v2868, 4
    %v2870 = vadd.f32 %v2868, %v2869
    %v2871 = vrot.slane %v2870, 2
    %v2872 = vadd.f32 %v2870, %v2871
    %v2873 = vrot.slane %v2872, 1
    %v2874 = vadd.f32 %v2872, %v2873
    %v2875 = vsel %vm2849, 1, 0
    %v2876 = vsel %vm2850, 1, 0
    %v2877 = vsel %vm2851, 1, 0
    %v2878 = vsel %vm2852, 1, 0
    %v2879 = vcvt.s32.f32 %v2875
    %v2880 = vcvt.s32.f32 %v2876
    %v2881 = vcvt.s32.f32 %v2877
    %v2882 = vcvt.s32.f32 %v2878
    %v2883 = vsel %vm2861, %v2879, 0.0
    %v2884 = vsel %vm2861, %v2880, 0.0
    %v2885 = vadd.f32 %v2883, %v2884
    %v2886 = vsel %vm2861, %v2881, 0.0
    %v2887 = vadd.f32 %v2885, %v2886
    %v2888 = vsel %vm2861, %v2882, 0.0
    %v2889 = vadd.f32 %v2887, %v2888
    %v2890 = vrot.slane %v2889, 4
    %v2891 = vadd.f32 %v2889, %v2890
    %v2892 = vrot.slane %v2891, 2
    %v2893 = vadd.f32 %v2891, %v2892
    %v2894 = vrot.slane %v2893, 1
    %v2895 = vadd.f32 %v2893, %v2894
    %v2896 = vmax.f32 %v2895, 1.0
    %v2897 = vrcp.pop %v2896
    %v2898 = vmul.f32 %v2874, %v2897
    %vm2899 = vcmask 0
    %2900 = vst.msk [vmem:[#allocation9] sm:$0x1] %vm2899, %v2898
    // Predicated region
    $region34: #{forward.1} parent=1 // pred_check
      _
    $region35: #{forward.1} parent=1 // pred_check_branch
      %2902 = sbr.rel (0) target = $region37
    $region36: #{forward.1} parent=1 // pred_region
      _
    $region37: #{forward.1} parent=1 // pred_fallthru
      _
    // Predicated region
    $region38: #{forward.1} parent=1 // pred_check
      _
    $region39: #{forward.1} parent=1 // pred_check_branch
      %2904 = sbr.rel (0) target = $region41
    $region40: #{forward.1} parent=1 // pred_region
      %s2906 = ssub.s32 16, 16
      %2907 = vsyncadd [#allocation6], %s2906
      %s2909 = sshll.u32 [#allocation9], 4
      %s2910 = int_to_ptr.vmem [resolvable:$true] %s2909
      %2912 = dma.vmem_to_hbm [thread:$0]  %s2910, 16, %s7, [#allocation6]
    $region41: #{forward.1} parent=1 // pred_fallthru
      _
    // Predicated region
    $region42: #{forward.1} parent=1 // pred_check
      _
    $region43: #{forward.1} parent=1 // pred_check_branch
      %2914 = sbr.rel (0) target = $region45
    $region44: #{forward.1} parent=1 // pred_region
      _
    $region45: #{forward.1} parent=1 // pred_fallthru
      _
    // Predicated region
    $region46: #{forward.1} parent=1 // pred_check
      _
    $region47: #{forward.1} parent=1 // pred_check_branch
      %2916 = sbr.rel (0) target = $region49
    $region48: #{forward.1} parent=1 // pred_region
      %2917 = dma.done [#allocation6], 16
    $region49: #{forward.1} parent=1 // pred_fallthru
      _
    %2918 = vsyncpa [#allocation5], 1
    %2919 = vsyncpa [#allocation8], 1
    %2920 = vsyncpa [#allocation6], 1

</llo_original>
